<compile_context>
chip_gen: v6e
topology: v6e:2x2x1
jax: 0.10.0
libtpu: 0.0.40
codegen_flags: <defaults>
</compile_context>

<pallas_src>
import jax
import jax.numpy as jnp
from jax.experimental import pallas as pl
from jax.experimental.pallas import tpu as pltpu


def _round_up(x, m):
    return ((x + m - 1) // m) * m


def _cdiv(a, b):
    return -(-a // b)


# -----------------------------------------------------------------------------
# Kernel
# -----------------------------------------------------------------------------

def _conv1d_relu(h, w_ref, b_ref):
    """Fused 3-tap conv1d + bias + ReLU as three accumulated per-tap MXU dots.

    h     : (L, TB, Cin)    bf16 activations in (length, batch, channels) layout.
    w_ref : (3, Cin, Cout)  bf16 per-tap weight slabs.
    b_ref : (1, Cout)       f32 bias.
    returns (L-2, TB, Cout) bf16.

    TB is a multiple of 16 (bf16 sublane tile), so the h[k:k+Lout] slices and
    the (Lout*TB, Cin) leading-dim merges are relayout-free; no im2col copy.
    """
    L, TB, Cin = h.shape
    Lout = L - 2
    Cout = w_ref.shape[2]
    acc = jnp.dot(h[0:Lout].reshape(Lout * TB, Cin), w_ref[0],
                  preferred_element_type=jnp.float32)
    acc = acc + jnp.dot(h[1:1 + Lout].reshape(Lout * TB, Cin), w_ref[1],
                        preferred_element_type=jnp.float32)
    acc = acc + jnp.dot(h[2:2 + Lout].reshape(Lout * TB, Cin), w_ref[2],
                        preferred_element_type=jnp.float32)
    acc = acc.reshape(Lout, TB, Cout) + b_ref[...]          # bias + ReLU in f32
    return jnp.maximum(acc, 0.0).astype(jnp.bfloat16)


def cnn_kernel(x_ref,
               w1_ref, b1_ref, w2_ref, b2_ref, w3_ref, b3_ref, w4_ref, b4_ref,
               wf1_ref, bf1_ref, wf2_ref, bf2_ref,
               out_ref):
    x = x_ref[...]                      # (TB, 14) f32 batch tile
    TB = x.shape[0]
    xt = x.T[:, :, None]                # (14, TB, 1): (L, B, 1) for the conv stack

    # conv1 (Cin=1, K=3) + ReLU as a VPU broadcast MAC (MaxPool1d(1) == identity).
    w1 = w1_ref[...]                    # (3, 64) f32
    L1 = xt.shape[0] - 2                # 12
    h = (xt[0:L1] * w1[0]
         + xt[1:1 + L1] * w1[1]
         + xt[2:2 + L1] * w1[2]
         + b1_ref[...])                 # (12, TB, 64) f32
    h = jnp.maximum(h, 0.0).astype(jnp.bfloat16)

    # conv2/3/4 + ReLU: per-tap accumulated MXU matmuls (no im2col concat).
    h = _conv1d_relu(h, w2_ref, b2_ref)   # (10, TB, 128)
    h = _conv1d_relu(h, w3_ref, b3_ref)   # (8,  TB, 256)
    h = _conv1d_relu(h, w4_ref, b4_ref)   # (6,  TB, 512)

    # fc1 + ReLU without the (B, 3072) flatten relayout: 6 accumulated
    # (TB,512)@(512,128) dots; per-position weight slabs built in prepare_params.
    z = jnp.broadcast_to(bf1_ref[...], (TB, 128)).astype(jnp.float32)
    for l in range(6):
        z = z + jnp.dot(h[l], wf1_ref[l], preferred_element_type=jnp.float32)
    z = jnp.maximum(z, 0.0).astype(jnp.bfloat16)

    # Dropout(0.5) == identity in eval mode.  fc2 writes a 128-lane-dense padded
    # output (zero-padded weight/bias columns; wrapper slices off the padding).
    out_ref[...] = (jnp.dot(z, wf2_ref[...], preferred_element_type=jnp.float32)
                    + bf2_ref[...])


# -----------------------------------------------------------------------------
# Parameters
# -----------------------------------------------------------------------------

def init_params(key, output_size):
    """Deterministic params in PyTorch shapes (uniform +-1/sqrt(fan_in))."""
    def uni(k, shape, fan_in):
        bound = 1.0 / jnp.sqrt(jnp.float32(fan_in))
        return jax.random.uniform(k, shape, jnp.float32, -bound, bound)

    ks = jax.random.split(key, 12)
    return {
        "conv1_w": uni(ks[0], (64, 1, 3), 1 * 3),
        "conv1_b": uni(ks[1], (64,), 1 * 3),
        "conv2_w": uni(ks[2], (128, 64, 3), 64 * 3),
        "conv2_b": uni(ks[3], (128,), 64 * 3),
        "conv3_w": uni(ks[4], (256, 128, 3), 128 * 3),
        "conv3_b": uni(ks[5], (256,), 128 * 3),
        "conv4_w": uni(ks[6], (512, 256, 3), 256 * 3),
        "conv4_b": uni(ks[7], (512,), 256 * 3),
        "fc1_w": uni(ks[8], (128, 512 * 6), 512 * 6),
        "fc1_b": uni(ks[9], (128,), 512 * 6),
        "fc2_w": uni(ks[10], (output_size, 128), 128),
        "fc2_b": uni(ks[11], (output_size,), 128),
    }


def prepare_params(params):
    """One-time re-layout of PyTorch-shaped weights into kernel layouts.

    MXU weights (conv2/3/4, fc1, fc2) are stored bf16; conv1 weight and all
    biases stay f32 (VPU / f32-accumulate path).  Call once, reuse per step.
    """
    out_size = params["fc2_b"].shape[0]
    n_out_pad = _round_up(out_size, 128)

    def conv_taps(w):   # (Cout, Cin, 3) -> (3, Cin, Cout) per-tap slabs
        return jnp.transpose(w, (2, 1, 0)).astype(jnp.bfloat16)

    p = {}
    p["w1"] = params["conv1_w"][:, 0, :].T.astype(jnp.float32)        # (3, 64)
    p["b1"] = params["conv1_b"].reshape(1, -1).astype(jnp.float32)    # (1, 64)
    p["w2"] = conv_taps(params["conv2_w"])                            # (3, 64, 128)
    p["b2"] = params["conv2_b"].reshape(1, -1).astype(jnp.float32)
    p["w3"] = conv_taps(params["conv3_w"])                            # (3, 128, 256)
    p["b3"] = params["conv3_b"].reshape(1, -1).astype(jnp.float32)
    p["w4"] = conv_taps(params["conv4_w"])                            # (3, 256, 512)
    p["b4"] = params["conv4_b"].reshape(1, -1).astype(jnp.float32)
    # fc1: PyTorch flattens (B, 512, 6) channel-major (column = c*6 + l); build
    # per-position slabs wf1[l, c, n] = fc1_w[n, c*6 + l] so no in-kernel flatten.
    p["wf1"] = (params["fc1_w"].reshape(128, 512, 6)
                .transpose(2, 1, 0).astype(jnp.bfloat16))             # (6, 512, 128)
    p["bf1"] = params["fc1_b"].reshape(1, -1).astype(jnp.float32)     # (1, 128)
    # fc2: transpose + zero-pad columns so the kernel output is 128-lane dense.
    wf2 = jnp.zeros((128, n_out_pad), jnp.float32).at[:, :out_size].set(params["fc2_w"].T)
    bf2 = jnp.zeros((1, n_out_pad), jnp.float32).at[:, :out_size].set(params["fc2_b"])
    p["wf2"] = wf2.astype(jnp.bfloat16)                               # (128, n_out_pad)
    p["bf2"] = bf2                                                    # (1, n_out_pad)
    p["out_size"] = out_size
    return p


# -----------------------------------------------------------------------------
# Wrapper
# -----------------------------------------------------------------------------

def _chip_config():
    """Returns (tb_max, vmem_limit_bytes, cores_per_chip).

    Conservative default fits v7x (64 MiB VMEM per TC, 2 TensorCores); v5e/v6e
    (128 MiB VMEM, single TC) get a bigger batch tile and VMEM budget.
    """
    try:
        kind = jax.devices()[0].device_kind.lower()
    except Exception:
        kind = ""
    if any(s in kind for s in ("v5e", "v5 lite", "v5lite", "v6e", "v6 lite", "v6lite")):
        return 1024, 96 * 1024 * 1024, 1
    return 512, 48 * 1024 * 1024, 2


def _choose_tile(batch, tb_max, n_cores):
    """Batch tile: multiple of 16 (bf16 sublane tile), minimal padding, and a
    core-count multiple of tiles on 2-TC chips so the "parallel" grid axis
    keeps every TensorCore busy."""
    n_tiles = max(1, _cdiv(batch, tb_max))
    if n_cores > 1 and batch >= 16 * n_cores:
        n_tiles = _round_up(max(n_tiles, n_cores), n_cores)
    tb = _round_up(_cdiv(batch, n_tiles), 16)
    return tb, n_tiles * tb


def cnn_forward(x, p, *, tb_max=None):
    """x: (B, 14) f32, p: prepare_params() output -> (B, output_size) f32."""
    B, L = x.shape
    out_size = p["out_size"]
    n_out_pad = p["wf2"].shape[1]

    chip_tb_max, vmem_limit, n_cores = _chip_config()
    tb, b_pad = _choose_tile(B, tb_max or chip_tb_max, n_cores)
    if b_pad != B:
        x = jnp.pad(x, ((0, b_pad - B), (0, 0)))

    weights = (p["w1"], p["b1"], p["w2"], p["b2"], p["w3"], p["b3"],
               p["w4"], p["b4"], p["wf1"], p["bf1"], p["wf2"], p["bf2"])

    def _resident(a):
        # Full-array block + constant index map -> fetched once, stays VMEM-
        # resident across the whole batch grid; single-buffer it (never
        # refetched) to free the second pipeline buffer's VMEM.
        nd = a.ndim
        idx = lambda i, _nd=nd: (0,) * _nd
        try:
            return pl.BlockSpec(a.shape, idx, pipeline_mode=pl.Buffered(1))
        except TypeError:       # BlockSpec without pipeline_mode support
            return pl.BlockSpec(a.shape, idx)

    out = pl.pallas_call(
        cnn_kernel,
        out_shape=jax.ShapeDtypeStruct((b_pad, n_out_pad), jnp.float32),
        grid=(b_pad // tb,),
        in_specs=[pl.BlockSpec((tb, L), lambda i: (i, 0))]
                 + [_resident(w) for w in weights],
        out_specs=pl.BlockSpec((tb, n_out_pad), lambda i: (i, 0)),
        compiler_params=pltpu.CompilerParams(
            dimension_semantics=("parallel",),
            vmem_limit_bytes=vmem_limit),
    )(x, *weights)
    return out[:B, :out_size]


if __name__ == "__main__":
    key = jax.random.PRNGKey(0)
    k_param, k_x = jax.random.split(key)

    input_size = 14     # required so that 512 * (14 - 8) == 512 * 6 matches fc1
    output_size = 4
    batch = 8

    params = init_params(k_param, output_size)
    prepared = prepare_params(params)          # one-time weight re-layout (hoisted)
    x = jax.random.normal(k_x, (batch, input_size), jnp.float32)

    out = cnn_forward(x, prepared)
    out = jax.block_until_ready(out)
    assert out.shape == (batch, output_size)
    assert bool(jnp.all(jnp.isfinite(out)))
    print("KERNEL_OK")
</pallas_src>

<mosaic_0001>
module attributes {stable_mosaic.version = 11 : i64} {
  func.func @cnn_kernel(%arg0: i32, %arg1: memref<16x14xf32, #tpu.memory_space<vmem>>, %arg2: memref<3x64xf32, #tpu.memory_space<vmem>>, %arg3: memref<1x64xf32, #tpu.memory_space<vmem>>, %arg4: memref<3x64x128xbf16, #tpu.memory_space<vmem>>, %arg5: memref<1x128xf32, #tpu.memory_space<vmem>>, %arg6: memref<3x128x256xbf16, #tpu.memory_space<vmem>>, %arg7: memref<1x256xf32, #tpu.memory_space<vmem>>, %arg8: memref<3x256x512xbf16, #tpu.memory_space<vmem>>, %arg9: memref<1x512xf32, #tpu.memory_space<vmem>>, %arg10: memref<6x512x128xbf16, #tpu.memory_space<vmem>>, %arg11: memref<1x128xf32, #tpu.memory_space<vmem>>, %arg12: memref<128x128xbf16, #tpu.memory_space<vmem>>, %arg13: memref<1x128xf32, #tpu.memory_space<vmem>>, %arg14: memref<16x128xf32, #tpu.memory_space<vmem>>) attributes {dimension_semantics = [#tpu.dimension_semantics<parallel>], iteration_bounds = array<i64: 1>, scalar_prefetch = 0 : i64, scratch_operands = 0 : i64, tpu.core_type = #tpu.core_type<tc>, window_params = [{transform_indices = @transform_0, window_bounds = array<i64: 16, 14>}, {pipeline_mode = #tpu.pipeline_mode<synchronous>, transform_indices = @transform_1, window_bounds = array<i64: 3, 64>}, {pipeline_mode = #tpu.pipeline_mode<synchronous>, transform_indices = @transform_2, window_bounds = array<i64: 1, 64>}, {pipeline_mode = #tpu.pipeline_mode<synchronous>, transform_indices = @transform_3, window_bounds = array<i64: 3, 64, 128>}, {pipeline_mode = #tpu.pipeline_mode<synchronous>, transform_indices = @transform_4, window_bounds = array<i64: 1, 128>}, {pipeline_mode = #tpu.pipeline_mode<synchronous>, transform_indices = @transform_5, window_bounds = array<i64: 3, 128, 256>}, {pipeline_mode = #tpu.pipeline_mode<synchronous>, transform_indices = @transform_6, window_bounds = array<i64: 1, 256>}, {pipeline_mode = #tpu.pipeline_mode<synchronous>, transform_indices = @transform_7, window_bounds = array<i64: 3, 256, 512>}, {pipeline_mode = #tpu.pipeline_mode<synchronous>, transform_indices = @transform_8, window_bounds = array<i64: 1, 512>}, {pipeline_mode = #tpu.pipeline_mode<synchronous>, transform_indices = @transform_9, window_bounds = array<i64: 6, 512, 128>}, {pipeline_mode = #tpu.pipeline_mode<synchronous>, transform_indices = @transform_10, window_bounds = array<i64: 1, 128>}, {pipeline_mode = #tpu.pipeline_mode<synchronous>, transform_indices = @transform_11, window_bounds = array<i64: 128, 128>}, {pipeline_mode = #tpu.pipeline_mode<synchronous>, transform_indices = @transform_12, window_bounds = array<i64: 1, 128>}, {transform_indices = @transform_13, window_bounds = array<i64: 16, 128>}]} {
    %c0 = arith.constant 0 : index
    %c0_0 = arith.constant 0 : index
    %0 = vector.load %arg1[%c0, %c0_0] : memref<16x14xf32, #tpu.memory_space<vmem>>, vector<16x14xf32>
    %1 = tpu.transpose %0, [1, 0] : vector<16x14xf32> -> vector<14x16xf32>
    %2 = vector.shape_cast %1 : vector<14x16xf32> to vector<14x16x1xf32>
    %c0_1 = arith.constant 0 : index
    %c0_2 = arith.constant 0 : index
    %3 = vector.load %arg2[%c0_1, %c0_2] : memref<3x64xf32, #tpu.memory_space<vmem>>, vector<3x64xf32>
    %4 = vector.extract_strided_slice %2 {offsets = [0, 0, 0], sizes = [12, 16, 1], strides = [1, 1, 1]} : vector<14x16x1xf32> to vector<12x16x1xf32>
    %5 = vector.extract_strided_slice %3 {offsets = [0, 0], sizes = [1, 64], strides = [1, 1]} : vector<3x64xf32> to vector<1x64xf32>
    %6 = vector.shape_cast %5 : vector<1x64xf32> to vector<64xf32>
    %7 = vector.shape_cast %6 : vector<64xf32> to vector<1x1x64xf32>
    %8 = vector.broadcast %4 : vector<12x16x1xf32> to vector<12x16x64xf32>
    %9 = vector.broadcast %7 : vector<1x1x64xf32> to vector<12x16x64xf32>
    %10 = arith.mulf %8, %9 : vector<12x16x64xf32>
    %11 = vector.extract_strided_slice %2 {offsets = [1, 0, 0], sizes = [12, 16, 1], strides = [1, 1, 1]} : vector<14x16x1xf32> to vector<12x16x1xf32>
    %12 = vector.extract_strided_slice %3 {offsets = [1, 0], sizes = [1, 64], strides = [1, 1]} : vector<3x64xf32> to vector<1x64xf32>
    %13 = vector.shape_cast %12 : vector<1x64xf32> to vector<64xf32>
    %14 = vector.shape_cast %13 : vector<64xf32> to vector<1x1x64xf32>
    %15 = vector.broadcast %11 : vector<12x16x1xf32> to vector<12x16x64xf32>
    %16 = vector.broadcast %14 : vector<1x1x64xf32> to vector<12x16x64xf32>
    %17 = arith.mulf %15, %16 : vector<12x16x64xf32>
    %18 = arith.addf %10, %17 : vector<12x16x64xf32>
    %19 = vector.extract_strided_slice %2 {offsets = [2, 0, 0], sizes = [12, 16, 1], strides = [1, 1, 1]} : vector<14x16x1xf32> to vector<12x16x1xf32>
    %20 = vector.extract_strided_slice %3 {offsets = [2, 0], sizes = [1, 64], strides = [1, 1]} : vector<3x64xf32> to vector<1x64xf32>
    %21 = vector.shape_cast %20 : vector<1x64xf32> to vector<64xf32>
    %22 = vector.shape_cast %21 : vector<64xf32> to vector<1x1x64xf32>
    %23 = vector.broadcast %19 : vector<12x16x1xf32> to vector<12x16x64xf32>
    %24 = vector.broadcast %22 : vector<1x1x64xf32> to vector<12x16x64xf32>
    %25 = arith.mulf %23, %24 : vector<12x16x64xf32>
    %26 = arith.addf %18, %25 : vector<12x16x64xf32>
    %c0_3 = arith.constant 0 : index
    %c0_4 = arith.constant 0 : index
    %27 = vector.load %arg3[%c0_3, %c0_4] : memref<1x64xf32, #tpu.memory_space<vmem>>, vector<1x64xf32>
    %28 = vector.shape_cast %27 : vector<1x64xf32> to vector<1x1x64xf32>
    %29 = vector.broadcast %28 : vector<1x1x64xf32> to vector<12x16x64xf32>
    %30 = arith.addf %26, %29 : vector<12x16x64xf32>
    %cst = arith.constant 0.000000e+00 : f32
    %31 = vector.broadcast %cst : f32 to vector<12x16x64xf32>
    %32 = arith.maximumf %30, %31 : vector<12x16x64xf32>
    %33 = arith.truncf %32 : vector<12x16x64xf32> to vector<12x16x64xbf16>
    %34 = vector.extract_strided_slice %33 {offsets = [0, 0, 0], sizes = [10, 16, 64], strides = [1, 1, 1]} : vector<12x16x64xbf16> to vector<10x16x64xbf16>
    %35 = vector.shape_cast %34 : vector<10x16x64xbf16> to vector<160x64xbf16>
    %c0_5 = arith.constant 0 : index
    %c0_6 = arith.constant 0 : index
    %c0_7 = arith.constant 0 : index
    %36 = vector.load %arg4[%c0_5, %c0_6, %c0_7] : memref<3x64x128xbf16, #tpu.memory_space<vmem>>, vector<1x64x128xbf16>
    %37 = vector.shape_cast %36 : vector<1x64x128xbf16> to vector<64x128xbf16>
    %cst_8 = arith.constant dense<0.000000e+00> : vector<160x128xf32>
    %38 = tpu.matmul %35, %37, %cst_8 {dimension_numbers = #tpu.dot_dimension_numbers<[1], [0], [0], [1], [0, 0, 1, 1], [], []>} : vector<160x64xbf16>, vector<64x128xbf16>, vector<160x128xf32> -> vector<160x128xf32>
    %39 = vector.extract_strided_slice %33 {offsets = [1, 0, 0], sizes = [10, 16, 64], strides = [1, 1, 1]} : vector<12x16x64xbf16> to vector<10x16x64xbf16>
    %40 = vector.shape_cast %39 : vector<10x16x64xbf16> to vector<160x64xbf16>
    %c1 = arith.constant 1 : index
    %c0_9 = arith.constant 0 : index
    %c0_10 = arith.constant 0 : index
    %41 = vector.load %arg4[%c1, %c0_9, %c0_10] : memref<3x64x128xbf16, #tpu.memory_space<vmem>>, vector<1x64x128xbf16>
    %42 = vector.shape_cast %41 : vector<1x64x128xbf16> to vector<64x128xbf16>
    %cst_11 = arith.constant dense<0.000000e+00> : vector<160x128xf32>
    %43 = tpu.matmul %40, %42, %cst_11 {dimension_numbers = #tpu.dot_dimension_numbers<[1], [0], [0], [1], [0, 0, 1, 1], [], []>} : vector<160x64xbf16>, vector<64x128xbf16>, vector<160x128xf32> -> vector<160x128xf32>
    %44 = arith.addf %38, %43 : vector<160x128xf32>
    %45 = vector.extract_strided_slice %33 {offsets = [2, 0, 0], sizes = [10, 16, 64], strides = [1, 1, 1]} : vector<12x16x64xbf16> to vector<10x16x64xbf16>
    %46 = vector.shape_cast %45 : vector<10x16x64xbf16> to vector<160x64xbf16>
    %c2 = arith.constant 2 : index
    %c0_12 = arith.constant 0 : index
    %c0_13 = arith.constant 0 : index
    %47 = vector.load %arg4[%c2, %c0_12, %c0_13] : memref<3x64x128xbf16, #tpu.memory_space<vmem>>, vector<1x64x128xbf16>
    %48 = vector.shape_cast %47 : vector<1x64x128xbf16> to vector<64x128xbf16>
    %cst_14 = arith.constant dense<0.000000e+00> : vector<160x128xf32>
    %49 = tpu.matmul %46, %48, %cst_14 {dimension_numbers = #tpu.dot_dimension_numbers<[1], [0], [0], [1], [0, 0, 1, 1], [], []>} : vector<160x64xbf16>, vector<64x128xbf16>, vector<160x128xf32> -> vector<160x128xf32>
    %50 = arith.addf %44, %49 : vector<160x128xf32>
    %51 = vector.shape_cast %50 : vector<160x128xf32> to vector<10x16x128xf32>
    %c0_15 = arith.constant 0 : index
    %c0_16 = arith.constant 0 : index
    %52 = vector.load %arg5[%c0_15, %c0_16] : memref<1x128xf32, #tpu.memory_space<vmem>>, vector<1x128xf32>
    %53 = vector.shape_cast %52 : vector<1x128xf32> to vector<1x1x128xf32>
    %54 = vector.broadcast %53 : vector<1x1x128xf32> to vector<10x16x128xf32>
    %55 = arith.addf %51, %54 : vector<10x16x128xf32>
    %cst_17 = arith.constant 0.000000e+00 : f32
    %56 = vector.broadcast %cst_17 : f32 to vector<10x16x128xf32>
    %57 = arith.maximumf %55, %56 : vector<10x16x128xf32>
    %58 = arith.truncf %57 : vector<10x16x128xf32> to vector<10x16x128xbf16>
    %59 = vector.extract_strided_slice %58 {offsets = [0, 0, 0], sizes = [8, 16, 128], strides = [1, 1, 1]} : vector<10x16x128xbf16> to vector<8x16x128xbf16>
    %60 = vector.shape_cast %59 : vector<8x16x128xbf16> to vector<128x128xbf16>
    %c0_18 = arith.constant 0 : index
    %c0_19 = arith.constant 0 : index
    %c0_20 = arith.constant 0 : index
    %61 = vector.load %arg6[%c0_18, %c0_19, %c0_20] : memref<3x128x256xbf16, #tpu.memory_space<vmem>>, vector<1x128x256xbf16>
    %62 = vector.shape_cast %61 : vector<1x128x256xbf16> to vector<128x256xbf16>
    %cst_21 = arith.constant dense<0.000000e+00> : vector<128x256xf32>
    %63 = tpu.matmul %60, %62, %cst_21 {dimension_numbers = #tpu.dot_dimension_numbers<[1], [0], [0], [1], [0, 0, 1, 1], [], []>} : vector<128x128xbf16>, vector<128x256xbf16>, vector<128x256xf32> -> vector<128x256xf32>
    %64 = vector.extract_strided_slice %58 {offsets = [1, 0, 0], sizes = [8, 16, 128], strides = [1, 1, 1]} : vector<10x16x128xbf16> to vector<8x16x128xbf16>
    %65 = vector.shape_cast %64 : vector<8x16x128xbf16> to vector<128x128xbf16>
    %c1_22 = arith.constant 1 : index
    %c0_23 = arith.constant 0 : index
    %c0_24 = arith.constant 0 : index
    %66 = vector.load %arg6[%c1_22, %c0_23, %c0_24] : memref<3x128x256xbf16, #tpu.memory_space<vmem>>, vector<1x128x256xbf16>
    %67 = vector.shape_cast %66 : vector<1x128x256xbf16> to vector<128x256xbf16>
    %cst_25 = arith.constant dense<0.000000e+00> : vector<128x256xf32>
    %68 = tpu.matmul %65, %67, %cst_25 {dimension_numbers = #tpu.dot_dimension_numbers<[1], [0], [0], [1], [0, 0, 1, 1], [], []>} : vector<128x128xbf16>, vector<128x256xbf16>, vector<128x256xf32> -> vector<128x256xf32>
    %69 = arith.addf %63, %68 : vector<128x256xf32>
    %70 = vector.extract_strided_slice %58 {offsets = [2, 0, 0], sizes = [8, 16, 128], strides = [1, 1, 1]} : vector<10x16x128xbf16> to vector<8x16x128xbf16>
    %71 = vector.shape_cast %70 : vector<8x16x128xbf16> to vector<128x128xbf16>
    %c2_26 = arith.constant 2 : index
    %c0_27 = arith.constant 0 : index
    %c0_28 = arith.constant 0 : index
    %72 = vector.load %arg6[%c2_26, %c0_27, %c0_28] : memref<3x128x256xbf16, #tpu.memory_space<vmem>>, vector<1x128x256xbf16>
    %73 = vector.shape_cast %72 : vector<1x128x256xbf16> to vector<128x256xbf16>
    %cst_29 = arith.constant dense<0.000000e+00> : vector<128x256xf32>
    %74 = tpu.matmul %71, %73, %cst_29 {dimension_numbers = #tpu.dot_dimension_numbers<[1], [0], [0], [1], [0, 0, 1, 1], [], []>} : vector<128x128xbf16>, vector<128x256xbf16>, vector<128x256xf32> -> vector<128x256xf32>
    %75 = arith.addf %69, %74 : vector<128x256xf32>
    %76 = vector.shape_cast %75 : vector<128x256xf32> to vector<8x16x256xf32>
    %c0_30 = arith.constant 0 : index
    %c0_31 = arith.constant 0 : index
    %77 = vector.load %arg7[%c0_30, %c0_31] : memref<1x256xf32, #tpu.memory_space<vmem>>, vector<1x256xf32>
    %78 = vector.shape_cast %77 : vector<1x256xf32> to vector<1x1x256xf32>
    %79 = vector.broadcast %78 : vector<1x1x256xf32> to vector<8x16x256xf32>
    %80 = arith.addf %76, %79 : vector<8x16x256xf32>
    %cst_32 = arith.constant 0.000000e+00 : f32
    %81 = vector.broadcast %cst_32 : f32 to vector<8x16x256xf32>
    %82 = arith.maximumf %80, %81 : vector<8x16x256xf32>
    %83 = arith.truncf %82 : vector<8x16x256xf32> to vector<8x16x256xbf16>
    %84 = vector.extract_strided_slice %83 {offsets = [0, 0, 0], sizes = [6, 16, 256], strides = [1, 1, 1]} : vector<8x16x256xbf16> to vector<6x16x256xbf16>
    %85 = vector.shape_cast %84 : vector<6x16x256xbf16> to vector<96x256xbf16>
    %c0_33 = arith.constant 0 : index
    %c0_34 = arith.constant 0 : index
    %c0_35 = arith.constant 0 : index
    %86 = vector.load %arg8[%c0_33, %c0_34, %c0_35] : memref<3x256x512xbf16, #tpu.memory_space<vmem>>, vector<1x256x512xbf16>
    %87 = vector.shape_cast %86 : vector<1x256x512xbf16> to vector<256x512xbf16>
    %cst_36 = arith.constant dense<0.000000e+00> : vector<96x512xf32>
    %88 = tpu.matmul %85, %87, %cst_36 {dimension_numbers = #tpu.dot_dimension_numbers<[1], [0], [0], [1], [0, 0, 1, 1], [], []>} : vector<96x256xbf16>, vector<256x512xbf16>, vector<96x512xf32> -> vector<96x512xf32>
    %89 = vector.extract_strided_slice %83 {offsets = [1, 0, 0], sizes = [6, 16, 256], strides = [1, 1, 1]} : vector<8x16x256xbf16> to vector<6x16x256xbf16>
    %90 = vector.shape_cast %89 : vector<6x16x256xbf16> to vector<96x256xbf16>
    %c1_37 = arith.constant 1 : index
    %c0_38 = arith.constant 0 : index
    %c0_39 = arith.constant 0 : index
    %91 = vector.load %arg8[%c1_37, %c0_38, %c0_39] : memref<3x256x512xbf16, #tpu.memory_space<vmem>>, vector<1x256x512xbf16>
    %92 = vector.shape_cast %91 : vector<1x256x512xbf16> to vector<256x512xbf16>
    %cst_40 = arith.constant dense<0.000000e+00> : vector<96x512xf32>
    %93 = tpu.matmul %90, %92, %cst_40 {dimension_numbers = #tpu.dot_dimension_numbers<[1], [0], [0], [1], [0, 0, 1, 1], [], []>} : vector<96x256xbf16>, vector<256x512xbf16>, vector<96x512xf32> -> vector<96x512xf32>
    %94 = arith.addf %88, %93 : vector<96x512xf32>
    %95 = vector.extract_strided_slice %83 {offsets = [2, 0, 0], sizes = [6, 16, 256], strides = [1, 1, 1]} : vector<8x16x256xbf16> to vector<6x16x256xbf16>
    %96 = vector.shape_cast %95 : vector<6x16x256xbf16> to vector<96x256xbf16>
    %c2_41 = arith.constant 2 : index
    %c0_42 = arith.constant 0 : index
    %c0_43 = arith.constant 0 : index
    %97 = vector.load %arg8[%c2_41, %c0_42, %c0_43] : memref<3x256x512xbf16, #tpu.memory_space<vmem>>, vector<1x256x512xbf16>
    %98 = vector.shape_cast %97 : vector<1x256x512xbf16> to vector<256x512xbf16>
    %cst_44 = arith.constant dense<0.000000e+00> : vector<96x512xf32>
    %99 = tpu.matmul %96, %98, %cst_44 {dimension_numbers = #tpu.dot_dimension_numbers<[1], [0], [0], [1], [0, 0, 1, 1], [], []>} : vector<96x256xbf16>, vector<256x512xbf16>, vector<96x512xf32> -> vector<96x512xf32>
    %100 = arith.addf %94, %99 : vector<96x512xf32>
    %101 = vector.shape_cast %100 : vector<96x512xf32> to vector<6x16x512xf32>
    %c0_45 = arith.constant 0 : index
    %c0_46 = arith.constant 0 : index
    %102 = vector.load %arg9[%c0_45, %c0_46] : memref<1x512xf32, #tpu.memory_space<vmem>>, vector<1x512xf32>
    %103 = vector.shape_cast %102 : vector<1x512xf32> to vector<1x1x512xf32>
    %104 = vector.broadcast %103 : vector<1x1x512xf32> to vector<6x16x512xf32>
    %105 = arith.addf %101, %104 : vector<6x16x512xf32>
    %cst_47 = arith.constant 0.000000e+00 : f32
    %106 = vector.broadcast %cst_47 : f32 to vector<6x16x512xf32>
    %107 = arith.maximumf %105, %106 : vector<6x16x512xf32>
    %108 = arith.truncf %107 : vector<6x16x512xf32> to vector<6x16x512xbf16>
    %c0_48 = arith.constant 0 : index
    %c0_49 = arith.constant 0 : index
    %109 = vector.load %arg11[%c0_48, %c0_49] : memref<1x128xf32, #tpu.memory_space<vmem>>, vector<1x128xf32>
    %110 = vector.shape_cast %109 : vector<1x128xf32> to vector<1x128xf32>
    %111 = vector.broadcast %110 : vector<1x128xf32> to vector<16x128xf32>
    %112 = vector.extract_strided_slice %108 {offsets = [0, 0, 0], sizes = [1, 16, 512], strides = [1, 1, 1]} : vector<6x16x512xbf16> to vector<1x16x512xbf16>
    %113 = vector.shape_cast %112 : vector<1x16x512xbf16> to vector<16x512xbf16>
    %c0_50 = arith.constant 0 : index
    %c0_51 = arith.constant 0 : index
    %c0_52 = arith.constant 0 : index
    %114 = vector.load %arg10[%c0_50, %c0_51, %c0_52] : memref<6x512x128xbf16, #tpu.memory_space<vmem>>, vector<1x512x128xbf16>
    %115 = vector.shape_cast %114 : vector<1x512x128xbf16> to vector<512x128xbf16>
    %cst_53 = arith.constant dense<0.000000e+00> : vector<16x128xf32>
    %116 = tpu.matmul %113, %115, %cst_53 {dimension_numbers = #tpu.dot_dimension_numbers<[1], [0], [0], [1], [0, 0, 1, 1], [], []>} : vector<16x512xbf16>, vector<512x128xbf16>, vector<16x128xf32> -> vector<16x128xf32>
    %117 = arith.addf %111, %116 : vector<16x128xf32>
    %118 = vector.extract_strided_slice %108 {offsets = [1, 0, 0], sizes = [1, 16, 512], strides = [1, 1, 1]} : vector<6x16x512xbf16> to vector<1x16x512xbf16>
    %119 = vector.shape_cast %118 : vector<1x16x512xbf16> to vector<16x512xbf16>
    %c1_54 = arith.constant 1 : index
    %c0_55 = arith.constant 0 : index
    %c0_56 = arith.constant 0 : index
    %120 = vector.load %arg10[%c1_54, %c0_55, %c0_56] : memref<6x512x128xbf16, #tpu.memory_space<vmem>>, vector<1x512x128xbf16>
    %121 = vector.shape_cast %120 : vector<1x512x128xbf16> to vector<512x128xbf16>
    %cst_57 = arith.constant dense<0.000000e+00> : vector<16x128xf32>
    %122 = tpu.matmul %119, %121, %cst_57 {dimension_numbers = #tpu.dot_dimension_numbers<[1], [0], [0], [1], [0, 0, 1, 1], [], []>} : vector<16x512xbf16>, vector<512x128xbf16>, vector<16x128xf32> -> vector<16x128xf32>
    %123 = arith.addf %117, %122 : vector<16x128xf32>
    %124 = vector.extract_strided_slice %108 {offsets = [2, 0, 0], sizes = [1, 16, 512], strides = [1, 1, 1]} : vector<6x16x512xbf16> to vector<1x16x512xbf16>
    %125 = vector.shape_cast %124 : vector<1x16x512xbf16> to vector<16x512xbf16>
    %c2_58 = arith.constant 2 : index
    %c0_59 = arith.constant 0 : index
    %c0_60 = arith.constant 0 : index
    %126 = vector.load %arg10[%c2_58, %c0_59, %c0_60] : memref<6x512x128xbf16, #tpu.memory_space<vmem>>, vector<1x512x128xbf16>
    %127 = vector.shape_cast %126 : vector<1x512x128xbf16> to vector<512x128xbf16>
    %cst_61 = arith.constant dense<0.000000e+00> : vector<16x128xf32>
    %128 = tpu.matmul %125, %127, %cst_61 {dimension_numbers = #tpu.dot_dimension_numbers<[1], [0], [0], [1], [0, 0, 1, 1], [], []>} : vector<16x512xbf16>, vector<512x128xbf16>, vector<16x128xf32> -> vector<16x128xf32>
    %129 = arith.addf %123, %128 : vector<16x128xf32>
    %130 = vector.extract_strided_slice %108 {offsets = [3, 0, 0], sizes = [1, 16, 512], strides = [1, 1, 1]} : vector<6x16x512xbf16> to vector<1x16x512xbf16>
    %131 = vector.shape_cast %130 : vector<1x16x512xbf16> to vector<16x512xbf16>
    %c3 = arith.constant 3 : index
    %c0_62 = arith.constant 0 : index
    %c0_63 = arith.constant 0 : index
    %132 = vector.load %arg10[%c3, %c0_62, %c0_63] : memref<6x512x128xbf16, #tpu.memory_space<vmem>>, vector<1x512x128xbf16>
    %133 = vector.shape_cast %132 : vector<1x512x128xbf16> to vector<512x128xbf16>
    %cst_64 = arith.constant dense<0.000000e+00> : vector<16x128xf32>
    %134 = tpu.matmul %131, %133, %cst_64 {dimension_numbers = #tpu.dot_dimension_numbers<[1], [0], [0], [1], [0, 0, 1, 1], [], []>} : vector<16x512xbf16>, vector<512x128xbf16>, vector<16x128xf32> -> vector<16x128xf32>
    %135 = arith.addf %129, %134 : vector<16x128xf32>
    %136 = vector.extract_strided_slice %108 {offsets = [4, 0, 0], sizes = [1, 16, 512], strides = [1, 1, 1]} : vector<6x16x512xbf16> to vector<1x16x512xbf16>
    %137 = vector.shape_cast %136 : vector<1x16x512xbf16> to vector<16x512xbf16>
    %c4 = arith.constant 4 : index
    %c0_65 = arith.constant 0 : index
    %c0_66 = arith.constant 0 : index
    %138 = vector.load %arg10[%c4, %c0_65, %c0_66] : memref<6x512x128xbf16, #tpu.memory_space<vmem>>, vector<1x512x128xbf16>
    %139 = vector.shape_cast %138 : vector<1x512x128xbf16> to vector<512x128xbf16>
    %cst_67 = arith.constant dense<0.000000e+00> : vector<16x128xf32>
    %140 = tpu.matmul %137, %139, %cst_67 {dimension_numbers = #tpu.dot_dimension_numbers<[1], [0], [0], [1], [0, 0, 1, 1], [], []>} : vector<16x512xbf16>, vector<512x128xbf16>, vector<16x128xf32> -> vector<16x128xf32>
    %141 = arith.addf %135, %140 : vector<16x128xf32>
    %142 = vector.extract_strided_slice %108 {offsets = [5, 0, 0], sizes = [1, 16, 512], strides = [1, 1, 1]} : vector<6x16x512xbf16> to vector<1x16x512xbf16>
    %143 = vector.shape_cast %142 : vector<1x16x512xbf16> to vector<16x512xbf16>
    %c5 = arith.constant 5 : index
    %c0_68 = arith.constant 0 : index
    %c0_69 = arith.constant 0 : index
    %144 = vector.load %arg10[%c5, %c0_68, %c0_69] : memref<6x512x128xbf16, #tpu.memory_space<vmem>>, vector<1x512x128xbf16>
    %145 = vector.shape_cast %144 : vector<1x512x128xbf16> to vector<512x128xbf16>
    %cst_70 = arith.constant dense<0.000000e+00> : vector<16x128xf32>
    %146 = tpu.matmul %143, %145, %cst_70 {dimension_numbers = #tpu.dot_dimension_numbers<[1], [0], [0], [1], [0, 0, 1, 1], [], []>} : vector<16x512xbf16>, vector<512x128xbf16>, vector<16x128xf32> -> vector<16x128xf32>
    %147 = arith.addf %141, %146 : vector<16x128xf32>
    %cst_71 = arith.constant 0.000000e+00 : f32
    %148 = vector.broadcast %cst_71 : f32 to vector<16x128xf32>
    %149 = arith.maximumf %147, %148 : vector<16x128xf32>
    %150 = arith.truncf %149 : vector<16x128xf32> to vector<16x128xbf16>
    %c0_72 = arith.constant 0 : index
    %c0_73 = arith.constant 0 : index
    %151 = vector.load %arg12[%c0_72, %c0_73] : memref<128x128xbf16, #tpu.memory_space<vmem>>, vector<128x128xbf16>
    %cst_74 = arith.constant dense<0.000000e+00> : vector<16x128xf32>
    %152 = tpu.matmul %150, %151, %cst_74 {dimension_numbers = #tpu.dot_dimension_numbers<[1], [0], [0], [1], [0, 0, 1, 1], [], []>} : vector<16x128xbf16>, vector<128x128xbf16>, vector<16x128xf32> -> vector<16x128xf32>
    %c0_75 = arith.constant 0 : index
    %c0_76 = arith.constant 0 : index
    %153 = vector.load %arg13[%c0_75, %c0_76] : memref<1x128xf32, #tpu.memory_space<vmem>>, vector<1x128xf32>
    %154 = vector.broadcast %153 : vector<1x128xf32> to vector<16x128xf32>
    %155 = arith.addf %152, %154 : vector<16x128xf32>
    %c0_77 = arith.constant 0 : index
    %c0_78 = arith.constant 0 : index
    %156 = vector.load %arg14[%c0_77, %c0_78] : memref<16x128xf32, #tpu.memory_space<vmem>>, vector<16x128xf32>
    tpu.vector_store %arg14[%c0_77, %c0_78], %155 {strides = array<i32>} : memref<16x128xf32, #tpu.memory_space<vmem>>, vector<16x128xf32>,
    return
  }
  func.func @transform_0(%arg0: i32) -> (i32, i32) {
    %c0_i32 = arith.constant 0 : i32
    %c0_i32_0 = arith.constant 0 : i32
    return %arg0, %c0_i32 : i32, i32
  }
  func.func @transform_1(%arg0: i32) -> (i32, i32) {
    %c0_i32 = arith.constant 0 : i32
    %c0_i32_0 = arith.constant 0 : i32
    %c0_i32_1 = arith.constant 0 : i32
    return %c0_i32, %c0_i32_0 : i32, i32
  }
  func.func @transform_2(%arg0: i32) -> (i32, i32) {
    %c0_i32 = arith.constant 0 : i32
    %c0_i32_0 = arith.constant 0 : i32
    %c0_i32_1 = arith.constant 0 : i32
    return %c0_i32, %c0_i32_0 : i32, i32
  }
  func.func @transform_3(%arg0: i32) -> (i32, i32, i32) {
    %c0_i32 = arith.constant 0 : i32
    %c0_i32_0 = arith.constant 0 : i32
    %c0_i32_1 = arith.constant 0 : i32
    %c0_i32_2 = arith.constant 0 : i32
    return %c0_i32, %c0_i32_0, %c0_i32_1 : i32, i32, i32
  }
  func.func @transform_4(%arg0: i32) -> (i32, i32) {
    %c0_i32 = arith.constant 0 : i32
    %c0_i32_0 = arith.constant 0 : i32
    %c0_i32_1 = arith.constant 0 : i32
    return %c0_i32, %c0_i32_0 : i32, i32
  }
  func.func @transform_5(%arg0: i32) -> (i32, i32, i32) {
    %c0_i32 = arith.constant 0 : i32
    %c0_i32_0 = arith.constant 0 : i32
    %c0_i32_1 = arith.constant 0 : i32
    %c0_i32_2 = arith.constant 0 : i32
    return %c0_i32, %c0_i32_0, %c0_i32_1 : i32, i32, i32
  }
  func.func @transform_6(%arg0: i32) -> (i32, i32) {
    %c0_i32 = arith.constant 0 : i32
    %c0_i32_0 = arith.constant 0 : i32
    %c0_i32_1 = arith.constant 0 : i32
    return %c0_i32, %c0_i32_0 : i32, i32
  }
  func.func @transform_7(%arg0: i32) -> (i32, i32, i32) {
    %c0_i32 = arith.constant 0 : i32
    %c0_i32_0 = arith.constant 0 : i32
    %c0_i32_1 = arith.constant 0 : i32
    %c0_i32_2 = arith.constant 0 : i32
    return %c0_i32, %c0_i32_0, %c0_i32_1 : i32, i32, i32
  }
  func.func @transform_8(%arg0: i32) -> (i32, i32) {
    %c0_i32 = arith.constant 0 : i32
    %c0_i32_0 = arith.constant 0 : i32
    %c0_i32_1 = arith.constant 0 : i32
    return %c0_i32, %c0_i32_0 : i32, i32
  }
  func.func @transform_9(%arg0: i32) -> (i32, i32, i32) {
    %c0_i32 = arith.constant 0 : i32
    %c0_i32_0 = arith.constant 0 : i32
    %c0_i32_1 = arith.constant 0 : i32
    %c0_i32_2 = arith.constant 0 : i32
    return %c0_i32, %c0_i32_0, %c0_i32_1 : i32, i32, i32
  }
  func.func @transform_10(%arg0: i32) -> (i32, i32) {
    %c0_i32 = arith.constant 0 : i32
    %c0_i32_0 = arith.constant 0 : i32
    %c0_i32_1 = arith.constant 0 : i32
    return %c0_i32, %c0_i32_0 : i32, i32
  }
  func.func @transform_11(%arg0: i32) -> (i32, i32) {
    %c0_i32 = arith.constant 0 : i32
    %c0_i32_0 = arith.constant 0 : i32
    %c0_i32_1 = arith.constant 0 : i32
    return %c0_i32, %c0_i32_0 : i32, i32
  }
  func.func @transform_12(%arg0: i32) -> (i32, i32) {
    %c0_i32 = arith.constant 0 : i32
    %c0_i32_0 = arith.constant 0 : i32
    %c0_i32_1 = arith.constant 0 : i32
    return %c0_i32, %c0_i32_0 : i32, i32
  }
  func.func @transform_13(%arg0: i32) -> (i32, i32) {
    %c0_i32 = arith.constant 0 : i32
    %c0_i32_0 = arith.constant 0 : i32
    return %arg0, %c0_i32 : i32, i32
  }
}

</mosaic_0001>

<llo_original>
// kernel: tpu_custom_call.1
$region0: #{tpu_custom_call.1}
  #allocation0 [shape = 'u32[]', space=smem, size = 0x4, offset = 0x4, fixed_abs, tag = 'smem constant byte address 0x4 - core index']
  #allocation1 [shape = 'u32[144,128]{1,0:T(1,128)}', space=vmem, size = 0x12000, scoped, tag = 'internal scratch']
  %s0 = inlined_call_operand.hbm [shape: f32[16,14], index: 0, kind: input, shape index: {}]
  %s1 = inlined_call_operand.hbm [shape: f32[3,64], index: 1, kind: input, shape index: {}]
  %s2 = inlined_call_operand.vmem [shape: f32[1,64], index: 2, kind: input, shape index: {}]
  %s3 = inlined_call_operand.hbm [shape: bf16[3,64,128], index: 3, kind: input, shape index: {}]
  %s4 = inlined_call_operand.hbm [shape: f32[1,128], index: 4, kind: input, shape index: {}]
  %s5 = inlined_call_operand.hbm [shape: bf16[3,128,256], index: 5, kind: input, shape index: {}]
  %s6 = inlined_call_operand.vmem [shape: f32[1,256], index: 6, kind: input, shape index: {}]
  %s7 = inlined_call_operand.hbm [shape: bf16[3,256,512], index: 7, kind: input, shape index: {}]
  %s8 = inlined_call_operand.vmem [shape: f32[1,512], index: 8, kind: input, shape index: {}]
  %s9 = inlined_call_operand.hbm [shape: bf16[6,512,128], index: 9, kind: input, shape index: {}]
  %s10 = inlined_call_operand.vmem [shape: f32[1,128], index: 10, kind: input, shape index: {}]
  %s11 = inlined_call_operand.hbm [shape: bf16[128,128], index: 11, kind: input, shape index: {}]
  %s12 = inlined_call_operand.vmem [shape: f32[1,128], index: 12, kind: input, shape index: {}]
  %s13 = inlined_call_operand.hbm [shape: f32[16,128], index: 13, kind: output, shape index: {}]
  %s14 = sld [smem:[#allocation0]]
  $region94: #{tpu_custom_call.1} parent=0
    _
  %s16 = ssub.s32 1, %s14
  %s17 = scalar_select 0, %s16, %s14
  $region1: #{tpu_custom_call.1} parent=0
    #allocation2 [shape = 'u8[8192]{0}', space=vmem, size = 0x2000, scoped, tag = 'input window, operand 0, single buffered']
    #allocation3 [shape = 's32[1]{0}', space=sflag, size = 0x4, scoped, tag = 'scoped memory for tpu_custom_call.1']
    #allocation4 [shape = 's32[1]{0}', space=sflag, size = 0x4, scoped, tag = 'scoped memory for tpu_custom_call.1']
    #allocation5 [shape = 'u8[2048]{0}', space=vmem, size = 0x800, scoped, tag = 'input window, operand 1, single buffered']
    #allocation6 [shape = 's32[1]{0}', space=sflag, size = 0x4, scoped, tag = 'scoped memory for tpu_custom_call.1']
    #allocation7 [shape = 'u8[49152]{0}', space=vmem, size = 0xc000, scoped, tag = 'input window, operand 3, single buffered']
    #allocation8 [shape = 'u8[512]{0}', space=vmem, size = 0x400, scoped, tag = 'input window, operand 4, single buffered']
    #allocation9 [shape = 's32[1]{0}', space=sflag, size = 0x4, scoped, tag = 'scoped memory for tpu_custom_call.1']
    #allocation10 [shape = 'u8[196608]{0}', space=vmem, size = 0x30000, scoped, tag = 'input window, operand 5, single buffered']
    #allocation11 [shape = 'u8[786432]{0}', space=vmem, size = 0xc0000, scoped, tag = 'input window, operand 7, single buffered']
    #allocation12 [shape = 's32[1]{0}', space=sflag, size = 0x4, scoped, tag = 'scoped memory for tpu_custom_call.1']
    #allocation13 [shape = 'u8[786432]{0}', space=vmem, size = 0xc0000, scoped, tag = 'input window, operand 9, single buffered']
    #allocation14 [shape = 'u8[32768]{0}', space=vmem, size = 0x8000, scoped, tag = 'input window, operand 11, single buffered']
    #allocation15 [shape = 's32[1]{0}', space=sflag, size = 0x4, scoped, tag = 'scoped memory for tpu_custom_call.1']
    #allocation16 [shape = 'u8[8192]{0}', space=vmem, size = 0x2000, scoped, tag = 'output window, operand 0, single buffered']
    %18 = vsyncpa [#allocation3], 0
    %19 = vsyncpa [#allocation6], 0
    %20 = vsyncpa [#allocation9], 0
    %21 = vsyncpa [#allocation12], 0
    %22 = vsyncpa [#allocation15], 0
    %23 = vsyncpa [#allocation4], 0
    // Predicated region
    $region2: #{tpu_custom_call.1} parent=1 // pred_check
      _
    $region3: #{tpu_custom_call.1} parent=1 // pred_check_branch
      %25 = sbr.rel (0) target = $region5
    $region4: #{tpu_custom_call.1} parent=1 // pred_region
      %s27 = ssub.s32 256, 256
      %28 = vsyncadd [#allocation3], %s27
      %s29 = sshll.u32 [#allocation2], 4
      %s30 = int_to_ptr.vmem [resolvable:$true] %s29
      %35 = dma.hbm_to_vmem [thread:$0]  %s0, 256, %s30, [#allocation3], 128, 128, 8
    $region5: #{tpu_custom_call.1} parent=1 // pred_fallthru
      _
    // Predicated region
    $region6: #{tpu_custom_call.1} parent=1 // pred_check
      _
    $region7: #{tpu_custom_call.1} parent=1 // pred_check_branch
      %37 = sbr.rel (0) target = $region9
    $region8: #{tpu_custom_call.1} parent=1 // pred_region
      %s39 = ssub.s32 64, 64
      %40 = vsyncadd [#allocation6], %s39
      %s42 = sshll.u32 [#allocation5], 4
      %s43 = int_to_ptr.vmem [resolvable:$true] %s42
      %45 = dma.hbm_to_vmem [thread:$0]  %s1, 64, %s43, [#allocation6]
    $region9: #{tpu_custom_call.1} parent=1 // pred_fallthru
      _
    // Predicated region
    $region10: #{tpu_custom_call.1} parent=1 // pred_check
      _
    $region11: #{tpu_custom_call.1} parent=1 // pred_check_branch
      %47 = sbr.rel (0) target = $region13
    $region12: #{tpu_custom_call.1} parent=1 // pred_region
      _
    $region13: #{tpu_custom_call.1} parent=1 // pred_fallthru
      _
    // Predicated region
    $region14: #{tpu_custom_call.1} parent=1 // pred_check
      _
    $region15: #{tpu_custom_call.1} parent=1 // pred_check_branch
      %49 = sbr.rel (0) target = $region17
    $region16: #{tpu_custom_call.1} parent=1 // pred_region
      %s51 = ssub.s32 1536, 1536
      %52 = vsyncadd [#allocation6], %s51
      %s53 = sshll.u32 [#allocation7], 4
      %s54 = int_to_ptr.vmem [resolvable:$true] %s53
      %59 = dma.hbm_to_vmem [thread:$0]  %s3, 1536, %s54, [#allocation6], 64, 64, 4
    $region17: #{tpu_custom_call.1} parent=1 // pred_fallthru
      _
    // Predicated region
    $region18: #{tpu_custom_call.1} parent=1 // pred_check
      _
    $region19: #{tpu_custom_call.1} parent=1 // pred_check_branch
      %61 = sbr.rel (0) target = $region21
    $region20: #{tpu_custom_call.1} parent=1 // pred_region
      %s63 = ssub.s32 16, 16
      %64 = vsyncadd [#allocation9], %s63
      %s66 = sshll.u32 [#allocation8], 4
      %s67 = int_to_ptr.vmem [resolvable:$true] %s66
      %69 = dma.hbm_to_vmem [thread:$0]  %s4, 16, %s67, [#allocation9]
    $region21: #{tpu_custom_call.1} parent=1 // pred_fallthru
      _
    // Predicated region
    $region22: #{tpu_custom_call.1} parent=1 // pred_check
      _
    $region23: #{tpu_custom_call.1} parent=1 // pred_check_branch
      %71 = sbr.rel (0) target = $region25
    $region24: #{tpu_custom_call.1} parent=1 // pred_region
      %s73 = ssub.s32 6144, 6144
      %74 = vsyncadd [#allocation9], %s73
      %s75 = sshll.u32 [#allocation10], 4
      %s76 = int_to_ptr.vmem [resolvable:$true] %s75
      %81 = dma.hbm_to_vmem [thread:$0]  %s5, 6144, %s76, [#allocation9], 128, 128, 8
    $region25: #{tpu_custom_call.1} parent=1 // pred_fallthru
      _
    // Predicated region
    $region26: #{tpu_custom_call.1} parent=1 // pred_check
      _
    $region27: #{tpu_custom_call.1} parent=1 // pred_check_branch
      %83 = sbr.rel (0) target = $region29
    $region28: #{tpu_custom_call.1} parent=1 // pred_region
      _
    $region29: #{tpu_custom_call.1} parent=1 // pred_fallthru
      _
    // Predicated region
    $region30: #{tpu_custom_call.1} parent=1 // pred_check
      _
    $region31: #{tpu_custom_call.1} parent=1 // pred_check_branch
      %85 = sbr.rel (0) target = $region33
    $region32: #{tpu_custom_call.1} parent=1 // pred_region
      %s87 = ssub.s32 24576, 24576
      %88 = vsyncadd [#allocation12], %s87
      %s89 = sshll.u32 [#allocation11], 4
      %s90 = int_to_ptr.vmem [resolvable:$true] %s89
      %95 = dma.hbm_to_vmem [thread:$0]  %s7, 24576, %s90, [#allocation12], 256, 256, 16
    $region33: #{tpu_custom_call.1} parent=1 // pred_fallthru
      _
    // Predicated region
    $region34: #{tpu_custom_call.1} parent=1 // pred_check
      _
    $region35: #{tpu_custom_call.1} parent=1 // pred_check_branch
      %97 = sbr.rel (0) target = $region37
    $region36: #{tpu_custom_call.1} parent=1 // pred_region
      _
    $region37: #{tpu_custom_call.1} parent=1 // pred_fallthru
      _
    // Predicated region
    $region38: #{tpu_custom_call.1} parent=1 // pred_check
      _
    $region39: #{tpu_custom_call.1} parent=1 // pred_check_branch
      %99 = sbr.rel (0) target = $region41
    $region40: #{tpu_custom_call.1} parent=1 // pred_region
      %s101 = ssub.s32 24576, 24576
      %102 = vsyncadd [#allocation12], %s101
      %s103 = sshll.u32 [#allocation13], 4
      %s104 = int_to_ptr.vmem [resolvable:$true] %s103
      %109 = dma.hbm_to_vmem [thread:$0]  %s9, 24576, %s104, [#allocation12], 64, 64, 4
    $region41: #{tpu_custom_call.1} parent=1 // pred_fallthru
      _
    // Predicated region
    $region42: #{tpu_custom_call.1} parent=1 // pred_check
      _
    $region43: #{tpu_custom_call.1} parent=1 // pred_check_branch
      %111 = sbr.rel (0) target = $region45
    $region44: #{tpu_custom_call.1} parent=1 // pred_region
      _
    $region45: #{tpu_custom_call.1} parent=1 // pred_fallthru
      _
    // Predicated region
    $region46: #{tpu_custom_call.1} parent=1 // pred_check
      _
    $region47: #{tpu_custom_call.1} parent=1 // pred_check_branch
      %113 = sbr.rel (0) target = $region49
    $region48: #{tpu_custom_call.1} parent=1 // pred_region
      %s115 = ssub.s32 1024, 1024
      %116 = vsyncadd [#allocation15], %s115
      %s117 = sshll.u32 [#allocation14], 4
      %s118 = int_to_ptr.vmem [resolvable:$true] %s117
      %123 = dma.hbm_to_vmem [thread:$0]  %s11, 1024, %s118, [#allocation15], 64, 64, 4
    $region49: #{tpu_custom_call.1} parent=1 // pred_fallthru
      _
    // Predicated region
    $region50: #{tpu_custom_call.1} parent=1 // pred_check
      _
    $region51: #{tpu_custom_call.1} parent=1 // pred_check_branch
      %125 = sbr.rel (0) target = $region53
    $region52: #{tpu_custom_call.1} parent=1 // pred_region
      _
    $region53: #{tpu_custom_call.1} parent=1 // pred_fallthru
      _
    // Predicated region
    $region54: #{tpu_custom_call.1} parent=1 // pred_check
      _
    $region55: #{tpu_custom_call.1} parent=1 // pred_check_branch
      %127 = sbr.rel (0) target = $region57
    $region56: #{tpu_custom_call.1} parent=1 // pred_region
      %128 = dma.done [#allocation3], 256
    $region57: #{tpu_custom_call.1} parent=1 // pred_fallthru
      _
    // Predicated region
    $region58: #{tpu_custom_call.1} parent=1 // pred_check
      _
    $region59: #{tpu_custom_call.1} parent=1 // pred_check_branch
      %130 = sbr.rel (0) target = $region61
    $region60: #{tpu_custom_call.1} parent=1 // pred_region
      %131 = dma.done [#allocation6], 64
    $region61: #{tpu_custom_call.1} parent=1 // pred_fallthru
      _
    // Predicated region
    $region62: #{tpu_custom_call.1} parent=1 // pred_check
      _
    $region63: #{tpu_custom_call.1} parent=1 // pred_check_branch
      %133 = sbr.rel (0) target = $region65
    $region64: #{tpu_custom_call.1} parent=1 // pred_region
      %134 = dma.done [#allocation6], 1536
    $region65: #{tpu_custom_call.1} parent=1 // pred_fallthru
      _
    // Predicated region
    $region66: #{tpu_custom_call.1} parent=1 // pred_check
      _
    $region67: #{tpu_custom_call.1} parent=1 // pred_check_branch
      %136 = sbr.rel (0) target = $region69
    $region68: #{tpu_custom_call.1} parent=1 // pred_region
      %137 = dma.done [#allocation9], 16
    $region69: #{tpu_custom_call.1} parent=1 // pred_fallthru
      _
    // Predicated region
    $region70: #{tpu_custom_call.1} parent=1 // pred_check
      _
    $region71: #{tpu_custom_call.1} parent=1 // pred_check_branch
      %139 = sbr.rel (0) target = $region73
    $region72: #{tpu_custom_call.1} parent=1 // pred_region
      %140 = dma.done [#allocation9], 6144
    $region73: #{tpu_custom_call.1} parent=1 // pred_fallthru
      _
    // Predicated region
    $region74: #{tpu_custom_call.1} parent=1 // pred_check
      _
    $region75: #{tpu_custom_call.1} parent=1 // pred_check_branch
      %142 = sbr.rel (0) target = $region77
    $region76: #{tpu_custom_call.1} parent=1 // pred_region
      %143 = dma.done [#allocation12], 24576
    $region77: #{tpu_custom_call.1} parent=1 // pred_fallthru
      _
    // Predicated region
    $region78: #{tpu_custom_call.1} parent=1 // pred_check
      _
    $region79: #{tpu_custom_call.1} parent=1 // pred_check_branch
      %145 = sbr.rel (0) target = $region81
    $region80: #{tpu_custom_call.1} parent=1 // pred_region
      %146 = dma.done [#allocation12], 24576
    $region81: #{tpu_custom_call.1} parent=1 // pred_fallthru
      _
    // Predicated region
    $region82: #{tpu_custom_call.1} parent=1 // pred_check
      _
    $region83: #{tpu_custom_call.1} parent=1 // pred_check_branch
      %148 = sbr.rel (0) target = $region85
    $region84: #{tpu_custom_call.1} parent=1 // pred_region
      %149 = dma.done [#allocation15], 1024
    $region85: #{tpu_custom_call.1} parent=1 // pred_fallthru
      _
    %v151 = vld [vmem:[#allocation2] sm:$0xff]
    %v152 = vld [vmem:[#allocation2 + $0x8] sm:$0xff]
    %153 = vxpose.xlu0.b32.start [1/16] %v151, 128
    %154 = vxpose.xlu0.b32.cont [2/16] %v152, 128
    %155 = vxpose.xlu0.b32.cont [3/16] 0.0, 128
    %156 = vxpose.xlu0.b32.cont [4/16] 0.0, 128
    %157 = vxpose.xlu0.b32.cont [5/16] 0.0, 128
    %158 = vxpose.xlu0.b32.cont [6/16] 0.0, 128
    %159 = vxpose.xlu0.b32.cont [7/16] 0.0, 128
    %160 = vxpose.xlu0.b32.cont [8/16] 0.0, 128
    %161 = vxpose.xlu0.b32.cont [9/16] 0.0, 128
    %162 = vxpose.xlu0.b32.cont [10/16] 0.0, 128
    %163 = vxpose.xlu0.b32.cont [11/16] 0.0, 128
    %164 = vxpose.xlu0.b32.cont [12/16] 0.0, 128
    %165 = vxpose.xlu0.b32.cont [13/16] 0.0, 128
    %166 = vxpose.xlu0.b32.cont [14/16] 0.0, 128
    %167 = vxpose.xlu0.b32.cont [15/16] 0.0, 128
    %168 = vxpose.xlu0.b32.end [16/16] 0.0, 128
    %v169 = vpop.trf.xlu0
    %v170 = vpop.trf.xlu0
    %v171 = vpop.trf.xlu0
    %v172 = vpop.trf.xlu0
    %v173 = vpop.trf.xlu0
    %v174 = vpop.trf.xlu0
    %v175 = vpop.trf.xlu0
    %v176 = vpop.trf.xlu0
    %v177 = vpop.trf.xlu0
    %v178 = vpop.trf.xlu0
    %v179 = vpop.trf.xlu0
    %v180 = vpop.trf.xlu0
    %v181 = vpop.trf.xlu0
    %v182 = vpop.trf.xlu0
    %v183 = vpop.trf.xlu0
    %v184 = vpop.trf.xlu0
    %v185 = vlaneseq
    %v186 = vshrl.u32 %v185, 7
    %v187 = vsub.s32 0, %v186
    %v188 = vrot.slane %v169, %v187
    %190 = vbcast.lane.b32.xlu0 %v188, 256
    %v191 = vpop.permute.xlu0 %190
    %s193 = sor.u32 256, 8
    %194 = vbcast.lane.b32.xlu0 %v188, %s193
    %v195 = vpop.permute.xlu0 %194
    %v196 = vlaneseq
    %v197 = vshrl.u32 %v196, 7
    %v198 = vsub.s32 1, %v197
    %v199 = vrot.slane %v169, %v198
    %201 = vbcast.lane.b32.xlu0 %v199, 256
    %v202 = vpop.permute.xlu0 %201
    %s204 = sor.u32 256, 8
    %205 = vbcast.lane.b32.xlu0 %v199, %s204
    %v206 = vpop.permute.xlu0 %205
    %v207 = vlaneseq
    %v208 = vshrl.u32 %v207, 7
    %v209 = vsub.s32 2, %v208
    %v210 = vrot.slane %v169, %v209
    %212 = vbcast.lane.b32.xlu0 %v210, 256
    %v213 = vpop.permute.xlu0 %212
    %s215 = sor.u32 256, 8
    %216 = vbcast.lane.b32.xlu0 %v210, %s215
    %v217 = vpop.permute.xlu0 %216
    %v218 = vlaneseq
    %v219 = vshrl.u32 %v218, 7
    %v220 = vsub.s32 3, %v219
    %v221 = vrot.slane %v169, %v220
    %223 = vbcast.lane.b32.xlu0 %v221, 256
    %v224 = vpop.permute.xlu0 %223
    %s226 = sor.u32 256, 8
    %227 = vbcast.lane.b32.xlu0 %v221, %s226
    %v228 = vpop.permute.xlu0 %227
    %v229 = vlaneseq
    %v230 = vshrl.u32 %v229, 7
    %v231 = vsub.s32 4, %v230
    %v232 = vrot.slane %v169, %v231
    %234 = vbcast.lane.b32.xlu0 %v232, 256
    %v235 = vpop.permute.xlu0 %234
    %s237 = sor.u32 256, 8
    %238 = vbcast.lane.b32.xlu0 %v232, %s237
    %v239 = vpop.permute.xlu0 %238
    %v240 = vlaneseq
    %v241 = vshrl.u32 %v240, 7
    %v242 = vsub.s32 5, %v241
    %v243 = vrot.slane %v169, %v242
    %245 = vbcast.lane.b32.xlu0 %v243, 256
    %v246 = vpop.permute.xlu0 %245
    %s248 = sor.u32 256, 8
    %249 = vbcast.lane.b32.xlu0 %v243, %s248
    %v250 = vpop.permute.xlu0 %249
    %v251 = vlaneseq
    %v252 = vshrl.u32 %v251, 7
    %v253 = vsub.s32 6, %v252
    %v254 = vrot.slane %v169, %v253
    %256 = vbcast.lane.b32.xlu0 %v254, 256
    %v257 = vpop.permute.xlu0 %256
    %s259 = sor.u32 256, 8
    %260 = vbcast.lane.b32.xlu0 %v254, %s259
    %v261 = vpop.permute.xlu0 %260
    %v262 = vlaneseq
    %v263 = vshrl.u32 %v262, 7
    %v264 = vsub.s32 7, %v263
    %v265 = vrot.slane %v169, %v264
    %267 = vbcast.lane.b32.xlu0 %v265, 256
    %v268 = vpop.permute.xlu0 %267
    %s270 = sor.u32 256, 8
    %271 = vbcast.lane.b32.xlu0 %v265, %s270
    %v272 = vpop.permute.xlu0 %271
    %v273 = vlaneseq
    %v274 = vshrl.u32 %v273, 7
    %v275 = vsub.s32 0, %v274
    %v276 = vrot.slane %v170, %v275
    %278 = vbcast.lane.b32.xlu0 %v276, 256
    %v279 = vpop.permute.xlu0 %278
    %s281 = sor.u32 256, 8
    %282 = vbcast.lane.b32.xlu0 %v276, %s281
    %v283 = vpop.permute.xlu0 %282
    %v284 = vlaneseq
    %v285 = vshrl.u32 %v284, 7
    %v286 = vsub.s32 1, %v285
    %v287 = vrot.slane %v170, %v286
    %289 = vbcast.lane.b32.xlu0 %v287, 256
    %v290 = vpop.permute.xlu0 %289
    %s292 = sor.u32 256, 8
    %293 = vbcast.lane.b32.xlu0 %v287, %s292
    %v294 = vpop.permute.xlu0 %293
    %v295 = vlaneseq
    %v296 = vshrl.u32 %v295, 7
    %v297 = vsub.s32 2, %v296
    %v298 = vrot.slane %v170, %v297
    %300 = vbcast.lane.b32.xlu0 %v298, 256
    %v301 = vpop.permute.xlu0 %300
    %s303 = sor.u32 256, 8
    %304 = vbcast.lane.b32.xlu0 %v298, %s303
    %v305 = vpop.permute.xlu0 %304
    %v306 = vlaneseq
    %v307 = vshrl.u32 %v306, 7
    %v308 = vsub.s32 3, %v307
    %v309 = vrot.slane %v170, %v308
    %311 = vbcast.lane.b32.xlu0 %v309, 256
    %v312 = vpop.permute.xlu0 %311
    %s314 = sor.u32 256, 8
    %315 = vbcast.lane.b32.xlu0 %v309, %s314
    %v316 = vpop.permute.xlu0 %315
    %v317 = vlaneseq
    %v318 = vshrl.u32 %v317, 7
    %v319 = vsub.s32 4, %v318
    %v320 = vrot.slane %v170, %v319
    %322 = vbcast.lane.b32.xlu0 %v320, 256
    %v323 = vpop.permute.xlu0 %322
    %s325 = sor.u32 256, 8
    %326 = vbcast.lane.b32.xlu0 %v320, %s325
    %v327 = vpop.permute.xlu0 %326
    %v328 = vlaneseq
    %v329 = vshrl.u32 %v328, 7
    %v330 = vsub.s32 5, %v329
    %v331 = vrot.slane %v170, %v330
    %333 = vbcast.lane.b32.xlu0 %v331, 256
    %v334 = vpop.permute.xlu0 %333
    %s336 = sor.u32 256, 8
    %337 = vbcast.lane.b32.xlu0 %v331, %s336
    %v338 = vpop.permute.xlu0 %337
    %v339 = vld [vmem:[#allocation5] sm:$0x7]
    %v340 = vlaneseq
    %v341 = vshrl.u32 %v340, 7
    %v342 = vsub.s32 0, %v341
    %v343 = vrot.slane %v339, %v342
    %v344 = vmul.f32 %v191, %v343
    %v345 = vmul.f32 %v195, %v343
    %v346 = vmul.f32 %v202, %v343
    %v347 = vmul.f32 %v206, %v343
    %v348 = vmul.f32 %v213, %v343
    %v349 = vmul.f32 %v217, %v343
    %v350 = vmul.f32 %v224, %v343
    %v351 = vmul.f32 %v228, %v343
    %v352 = vmul.f32 %v235, %v343
    %v353 = vmul.f32 %v239, %v343
    %v354 = vmul.f32 %v246, %v343
    %v355 = vmul.f32 %v250, %v343
    %v356 = vmul.f32 %v257, %v343
    %v357 = vmul.f32 %v261, %v343
    %v358 = vmul.f32 %v268, %v343
    %v359 = vmul.f32 %v272, %v343
    %v360 = vmul.f32 %v279, %v343
    %v361 = vmul.f32 %v283, %v343
    %v362 = vmul.f32 %v290, %v343
    %v363 = vmul.f32 %v294, %v343
    %v364 = vmul.f32 %v301, %v343
    %v365 = vmul.f32 %v305, %v343
    %v366 = vmul.f32 %v312, %v343
    %v367 = vmul.f32 %v316, %v343
    %v368 = vlaneseq
    %v369 = vshrl.u32 %v368, 7
    %v370 = vsub.s32 1, %v369
    %v371 = vrot.slane %v339, %v370
    %v372 = vmul.f32 %v202, %v371
    %v373 = vmul.f32 %v206, %v371
    %v374 = vmul.f32 %v213, %v371
    %v375 = vmul.f32 %v217, %v371
    %v376 = vmul.f32 %v224, %v371
    %v377 = vmul.f32 %v228, %v371
    %v378 = vmul.f32 %v235, %v371
    %v379 = vmul.f32 %v239, %v371
    %v380 = vmul.f32 %v246, %v371
    %v381 = vmul.f32 %v250, %v371
    %v382 = vmul.f32 %v257, %v371
    %v383 = vmul.f32 %v261, %v371
    %v384 = vmul.f32 %v268, %v371
    %v385 = vmul.f32 %v272, %v371
    %v386 = vmul.f32 %v279, %v371
    %v387 = vmul.f32 %v283, %v371
    %v388 = vmul.f32 %v290, %v371
    %v389 = vmul.f32 %v294, %v371
    %v390 = vmul.f32 %v301, %v371
    %v391 = vmul.f32 %v305, %v371
    %v392 = vmul.f32 %v312, %v371
    %v393 = vmul.f32 %v316, %v371
    %v394 = vmul.f32 %v323, %v371
    %v395 = vmul.f32 %v327, %v371
    %v396 = vadd.f32 %v344, %v372
    %v397 = vadd.f32 %v345, %v373
    %v398 = vadd.f32 %v346, %v374
    %v399 = vadd.f32 %v347, %v375
    %v400 = vadd.f32 %v348, %v376
    %v401 = vadd.f32 %v349, %v377
    %v402 = vadd.f32 %v350, %v378
    %v403 = vadd.f32 %v351, %v379
    %v404 = vadd.f32 %v352, %v380
    %v405 = vadd.f32 %v353, %v381
    %v406 = vadd.f32 %v354, %v382
    %v407 = vadd.f32 %v355, %v383
    %v408 = vadd.f32 %v356, %v384
    %v409 = vadd.f32 %v357, %v385
    %v410 = vadd.f32 %v358, %v386
    %v411 = vadd.f32 %v359, %v387
    %v412 = vadd.f32 %v360, %v388
    %v413 = vadd.f32 %v361, %v389
    %v414 = vadd.f32 %v362, %v390
    %v415 = vadd.f32 %v363, %v391
    %v416 = vadd.f32 %v364, %v392
    %v417 = vadd.f32 %v365, %v393
    %v418 = vadd.f32 %v366, %v394
    %v419 = vadd.f32 %v367, %v395
    %v420 = vlaneseq
    %v421 = vshrl.u32 %v420, 7
    %v422 = vsub.s32 2, %v421
    %v423 = vrot.slane %v339, %v422
    %v424 = vmul.f32 %v213, %v423
    %v425 = vmul.f32 %v217, %v423
    %v426 = vmul.f32 %v224, %v423
    %v427 = vmul.f32 %v228, %v423
    %v428 = vmul.f32 %v235, %v423
    %v429 = vmul.f32 %v239, %v423
    %v430 = vmul.f32 %v246, %v423
    %v431 = vmul.f32 %v250, %v423
    %v432 = vmul.f32 %v257, %v423
    %v433 = vmul.f32 %v261, %v423
    %v434 = vmul.f32 %v268, %v423
    %v435 = vmul.f32 %v272, %v423
    %v436 = vmul.f32 %v279, %v423
    %v437 = vmul.f32 %v283, %v423
    %v438 = vmul.f32 %v290, %v423
    %v439 = vmul.f32 %v294, %v423
    %v440 = vmul.f32 %v301, %v423
    %v441 = vmul.f32 %v305, %v423
    %v442 = vmul.f32 %v312, %v423
    %v443 = vmul.f32 %v316, %v423
    %v444 = vmul.f32 %v323, %v423
    %v445 = vmul.f32 %v327, %v423
    %v446 = vmul.f32 %v334, %v423
    %v447 = vmul.f32 %v338, %v423
    %v448 = vadd.f32 %v396, %v424
    %v449 = vadd.f32 %v397, %v425
    %v450 = vadd.f32 %v398, %v426
    %v451 = vadd.f32 %v399, %v427
    %v452 = vadd.f32 %v400, %v428
    %v453 = vadd.f32 %v401, %v429
    %v454 = vadd.f32 %v402, %v430
    %v455 = vadd.f32 %v403, %v431
    %v456 = vadd.f32 %v404, %v432
    %v457 = vadd.f32 %v405, %v433
    %v458 = vadd.f32 %v406, %v434
    %v459 = vadd.f32 %v407, %v435
    %v460 = vadd.f32 %v408, %v436
    %v461 = vadd.f32 %v409, %v437
    %v462 = vadd.f32 %v410, %v438
    %v463 = vadd.f32 %v411, %v439
    %v464 = vadd.f32 %v412, %v440
    %v465 = vadd.f32 %v413, %v441
    %v466 = vadd.f32 %v414, %v442
    %v467 = vadd.f32 %v415, %v443
    %v468 = vadd.f32 %v416, %v444
    %v469 = vadd.f32 %v417, %v445
    %v470 = vadd.f32 %v418, %v446
    %v471 = vadd.f32 %v419, %v447
    %v472 = vld [vmem:[%s2] sm:$0x1]
    %v474 = vlaneseq
    %v475 = vshrl.u32 %v474, 7
    %v476 = vsub.s32 0, %v475
    %v477 = vrot.slane %v472, %v476
    %v479 = vadd.f32 %v448, %v477
    %v480 = vadd.f32 %v449, %v477
    %v481 = vadd.f32 %v450, %v477
    %v482 = vadd.f32 %v451, %v477
    %v483 = vadd.f32 %v452, %v477
    %v484 = vadd.f32 %v453, %v477
    %v485 = vadd.f32 %v454, %v477
    %v486 = vadd.f32 %v455, %v477
    %v487 = vadd.f32 %v456, %v477
    %v488 = vadd.f32 %v457, %v477
    %v489 = vadd.f32 %v458, %v477
    %v490 = vadd.f32 %v459, %v477
    %v491 = vadd.f32 %v460, %v477
    %v492 = vadd.f32 %v461, %v477
    %v493 = vadd.f32 %v462, %v477
    %v494 = vadd.f32 %v463, %v477
    %v495 = vadd.f32 %v464, %v477
    %v496 = vadd.f32 %v465, %v477
    %v497 = vadd.f32 %v466, %v477
    %v498 = vadd.f32 %v467, %v477
    %v499 = vadd.f32 %v468, %v477
    %v500 = vadd.f32 %v469, %v477
    %v501 = vadd.f32 %v470, %v477
    %v502 = vadd.f32 %v471, %v477
    %v503 = vmax.f32 %v479, 0.0
    %v504 = vmax.f32 %v480, 0.0
    %v505 = vmax.f32 %v481, 0.0
    %v506 = vmax.f32 %v482, 0.0
    %v507 = vmax.f32 %v483, 0.0
    %v508 = vmax.f32 %v484, 0.0
    %v509 = vmax.f32 %v485, 0.0
    %v510 = vmax.f32 %v486, 0.0
    %v511 = vmax.f32 %v487, 0.0
    %v512 = vmax.f32 %v488, 0.0
    %v513 = vmax.f32 %v489, 0.0
    %v514 = vmax.f32 %v490, 0.0
    %v515 = vmax.f32 %v491, 0.0
    %v516 = vmax.f32 %v492, 0.0
    %v517 = vmax.f32 %v493, 0.0
    %v518 = vmax.f32 %v494, 0.0
    %v519 = vmax.f32 %v495, 0.0
    %v520 = vmax.f32 %v496, 0.0
    %v521 = vmax.f32 %v497, 0.0
    %v522 = vmax.f32 %v498, 0.0
    %v523 = vmax.f32 %v499, 0.0
    %v524 = vmax.f32 %v500, 0.0
    %v525 = vmax.f32 %v501, 0.0
    %v526 = vmax.f32 %v502, 0.0
    %v527 = vpack.c.bf16 %v504, %v503
    %v528 = vpack.c.bf16 %v506, %v505
    %v529 = vpack.c.bf16 %v508, %v507
    %v530 = vpack.c.bf16 %v510, %v509
    %v531 = vpack.c.bf16 %v512, %v511
    %v532 = vpack.c.bf16 %v514, %v513
    %v533 = vpack.c.bf16 %v516, %v515
    %v534 = vpack.c.bf16 %v518, %v517
    %v535 = vpack.c.bf16 %v520, %v519
    %v536 = vpack.c.bf16 %v522, %v521
    %v537 = vpack.c.bf16 %v524, %v523
    %v538 = vpack.c.bf16 %v526, %v525
    %v539 = vld [vmem:[#allocation7] sm:$0xf]
    %v540 = vld [vmem:[#allocation7 + $0x4] sm:$0xf]
    %v541 = vld [vmem:[#allocation7 + $0x8] sm:$0xf]
    %v542 = vld [vmem:[#allocation7 + $0xc] sm:$0xf]
    %v543 = vld [vmem:[#allocation7 + $0x10] sm:$0xf]
    %v544 = vld [vmem:[#allocation7 + $0x14] sm:$0xf]
    %v545 = vld [vmem:[#allocation7 + $0x18] sm:$0xf]
    %v546 = vld [vmem:[#allocation7 + $0x1c] sm:$0xf]
    %s547 = scalar_lea.vmem [#allocation7], 32
    %v548 = vld [vmem:[%s547] sm:$0xf]
    %v549 = vld [vmem:[%s547 + $0x4] sm:$0xf]
    %v550 = vld [vmem:[%s547 + $0x8] sm:$0xf]
    %v551 = vld [vmem:[%s547 + $0xc] sm:$0xf]
    %v552 = vld [vmem:[%s547 + $0x10] sm:$0xf]
    %v553 = vld [vmem:[%s547 + $0x14] sm:$0xf]
    %v554 = vld [vmem:[%s547 + $0x18] sm:$0xf]
    %v555 = vld [vmem:[%s547 + $0x1c] sm:$0xf]
    %v564 = vunpack.c.l.b16 %v548
    %v565 = vunpack.c.l.b16 %v549
    %v566 = vunpack.c.l.b16 %v550
    %v567 = vunpack.c.l.b16 %v551
    %v568 = vunpack.c.l.b16 %v552
    %v569 = vunpack.c.l.b16 %v553
    %v570 = vunpack.c.l.b16 %v554
    %v571 = vunpack.c.l.b16 %v555
    %v572 = vpack.c.b16 %v565, %v564
    %v573 = vpack.c.b16 %v567, %v566
    %v574 = vpack.c.b16 %v569, %v568
    %v575 = vpack.c.b16 %v571, %v570
    %vm580 = vcmask 523264
    %v582 = vsel %vm580, %v528, 0
    %v585 = vsel %vm580, %v529, 0
    %v588 = vsel %vm580, %v530, 0
    %v591 = vsel %vm580, %v531, 0
    %v594 = vsel %vm580, %v532, 0
    %v597 = vsel %vm580, %v533, 0
    %v600 = vsel %vm580, %v534, 0
    %v603 = vsel %vm580, %v535, 0
    %v606 = vsel %vm580, %v536, 0
    %v609 = vsel %vm580, %v537, 0
    %611 = vmatprep.subr.bf16.mxu0 0
    %612 = vmatpush1.bf16.msra.mxu0 0
    %613 = vmatprep.subr.bf16.mxu0 0
    %614 = vmatpush1.bf16.msra.mxu0 0
    %615 = vmatprep.subr.bf16.mxu0 0
    %616 = vmatpush1.bf16.msra.mxu0 0
    %617 = vmatprep.subr.bf16.mxu0 0
    %618 = vmatpush1.bf16.msra.mxu0 0
    %619 = vmatprep.subr.bf16.mxu0 0
    %620 = vmatpush1.bf16.msra.mxu0 %v575
    %621 = vmatprep.subr.bf16.mxu0 0
    %622 = vmatpush1.bf16.msra.mxu0 %v574
    %623 = vmatprep.subr.bf16.mxu0 0
    %624 = vmatpush1.bf16.msra.mxu0 %v573
    %625 = vmatprep.subr.bf16.mxu0 0
    %626 = vmatpush1.bf16.msra.mxu0 %v572
    %627 = vmatprep.subr.bf16.mxu0 0
    %628 = vmatpush2.bf16.msra.mxu0 0
    %629 = vmatprep.subr.bf16.mxu0 0
    %630 = vmatpush2.bf16.msra.mxu0 0
    %631 = vmatprep.subr.bf16.mxu0 0
    %632 = vmatpush2.bf16.msra.mxu0 0
    %633 = vmatprep.subr.bf16.mxu0 0
    %634 = vmatpush2.bf16.msra.mxu0 0
    %635 = vmatprep.subr.bf16.mxu0 0
    %636 = vmatpush2.bf16.msra.mxu0 0
    %637 = vmatprep.subr.bf16.mxu0 0
    %638 = vmatpush2.bf16.msra.mxu0 0
    %639 = vmatprep.subr.bf16.mxu0 0
    %640 = vmatpush2.bf16.msra.mxu0 0
    %641 = vmatprep.subr.bf16.mxu0 0
    %642 = vmatpush2.bf16.msra.mxu0 0
    %643 = vmatprep.mubr.bf16.mxu0 0
    %644 = vmatmul.mubr.bf16.gmra.mxu0 %v582
    %v645 = vpop.f32.mrf.mxu0
    %v646 = vadd.f32 0.0, %v645
    %v647 = vpop.f32.mrf.mxu0
    %v648 = vpop.f32.mrf.mxu0
    %v649 = vadd.f32 0.0, %v648
    %v650 = vpop.f32.mrf.mxu0
    %651 = vmatprep.mubr.bf16.mxu0 0
    %652 = vmatmul.mubr.bf16.gmra.mxu0 %v585
    %v653 = vpop.f32.mrf.mxu0
    %v654 = vadd.f32 0.0, %v653
    %v655 = vpop.f32.mrf.mxu0
    %v656 = vpop.f32.mrf.mxu0
    %v657 = vadd.f32 0.0, %v656
    %v658 = vpop.f32.mrf.mxu0
    %659 = vmatprep.mubr.bf16.mxu0 0
    %660 = vmatmul.mubr.bf16.gmra.mxu0 %v588
    %v661 = vpop.f32.mrf.mxu0
    %v662 = vadd.f32 0.0, %v661
    %v663 = vpop.f32.mrf.mxu0
    %v664 = vpop.f32.mrf.mxu0
    %v665 = vadd.f32 0.0, %v664
    %v666 = vpop.f32.mrf.mxu0
    %667 = vmatprep.mubr.bf16.mxu0 0
    %668 = vmatmul.mubr.bf16.gmra.mxu0 %v591
    %v669 = vpop.f32.mrf.mxu0
    %v670 = vadd.f32 0.0, %v669
    %v671 = vpop.f32.mrf.mxu0
    %v672 = vpop.f32.mrf.mxu0
    %v673 = vadd.f32 0.0, %v672
    %v674 = vpop.f32.mrf.mxu0
    %675 = vmatprep.mubr.bf16.mxu0 0
    %676 = vmatmul.mubr.bf16.gmra.mxu0 %v594
    %v677 = vpop.f32.mrf.mxu0
    %v678 = vadd.f32 0.0, %v677
    %v679 = vpop.f32.mrf.mxu0
    %v680 = vpop.f32.mrf.mxu0
    %v681 = vadd.f32 0.0, %v680
    %v682 = vpop.f32.mrf.mxu0
    %683 = vmatprep.mubr.bf16.mxu0 0
    %684 = vmatmul.mubr.bf16.gmra.mxu0 %v597
    %v685 = vpop.f32.mrf.mxu0
    %v686 = vadd.f32 0.0, %v685
    %v687 = vpop.f32.mrf.mxu0
    %v688 = vpop.f32.mrf.mxu0
    %v689 = vadd.f32 0.0, %v688
    %v690 = vpop.f32.mrf.mxu0
    %691 = vmatprep.mubr.bf16.mxu0 0
    %692 = vmatmul.mubr.bf16.gmra.mxu0 %v600
    %v693 = vpop.f32.mrf.mxu0
    %v694 = vadd.f32 0.0, %v693
    %v695 = vpop.f32.mrf.mxu0
    %v696 = vpop.f32.mrf.mxu0
    %v697 = vadd.f32 0.0, %v696
    %v698 = vpop.f32.mrf.mxu0
    %699 = vmatprep.mubr.bf16.mxu0 0
    %700 = vmatmul.mubr.bf16.gmra.mxu0 %v603
    %v701 = vpop.f32.mrf.mxu0
    %v702 = vadd.f32 0.0, %v701
    %v703 = vpop.f32.mrf.mxu0
    %v704 = vpop.f32.mrf.mxu0
    %v705 = vadd.f32 0.0, %v704
    %v706 = vpop.f32.mrf.mxu0
    %707 = vmatprep.mubr.bf16.mxu0 0
    %708 = vmatmul.mubr.bf16.gmra.mxu0 %v606
    %v709 = vpop.f32.mrf.mxu0
    %v710 = vadd.f32 0.0, %v709
    %v711 = vpop.f32.mrf.mxu0
    %v712 = vpop.f32.mrf.mxu0
    %v713 = vadd.f32 0.0, %v712
    %v714 = vpop.f32.mrf.mxu0
    %715 = vmatprep.mubr.bf16.mxu0 0
    %716 = vmatmul.mubr.bf16.gmra.mxu0 %v609
    %v717 = vpop.f32.mrf.mxu0
    %v718 = vadd.f32 0.0, %v717
    %v719 = vpop.f32.mrf.mxu0
    %v720 = vpop.f32.mrf.mxu0
    %v721 = vadd.f32 0.0, %v720
    %v722 = vpop.f32.mrf.mxu0
    %723 = vdwg.mxu0
    %v732 = vunpack.c.l.b16 %v539
    %v733 = vunpack.c.l.b16 %v540
    %v734 = vunpack.c.l.b16 %v541
    %v735 = vunpack.c.l.b16 %v542
    %v736 = vunpack.c.l.b16 %v543
    %v737 = vunpack.c.l.b16 %v544
    %v738 = vunpack.c.l.b16 %v545
    %v739 = vunpack.c.l.b16 %v546
    %v740 = vpack.c.b16 %v733, %v732
    %v741 = vpack.c.b16 %v735, %v734
    %v742 = vpack.c.b16 %v737, %v736
    %v743 = vpack.c.b16 %v739, %v738
    %v749 = vsel %vm580, %v527, 0
    %751 = vmatprep.subr.bf16.mxu0 0
    %752 = vmatpush1.bf16.msra.mxu0 0
    %753 = vmatprep.subr.bf16.mxu0 0
    %754 = vmatpush1.bf16.msra.mxu0 0
    %755 = vmatprep.subr.bf16.mxu0 0
    %756 = vmatpush1.bf16.msra.mxu0 0
    %757 = vmatprep.subr.bf16.mxu0 0
    %758 = vmatpush1.bf16.msra.mxu0 0
    %759 = vmatprep.subr.bf16.mxu0 0
    %760 = vmatpush1.bf16.msra.mxu0 %v743
    %761 = vmatprep.subr.bf16.mxu0 0
    %762 = vmatpush1.bf16.msra.mxu0 %v742
    %763 = vmatprep.subr.bf16.mxu0 0
    %764 = vmatpush1.bf16.msra.mxu0 %v741
    %765 = vmatprep.subr.bf16.mxu0 0
    %766 = vmatpush1.bf16.msra.mxu0 %v740
    %767 = vmatprep.subr.bf16.mxu0 0
    %768 = vmatpush2.bf16.msra.mxu0 0
    %769 = vmatprep.subr.bf16.mxu0 0
    %770 = vmatpush2.bf16.msra.mxu0 0
    %771 = vmatprep.subr.bf16.mxu0 0
    %772 = vmatpush2.bf16.msra.mxu0 0
    %773 = vmatprep.subr.bf16.mxu0 0
    %774 = vmatpush2.bf16.msra.mxu0 0
    %775 = vmatprep.subr.bf16.mxu0 0
    %776 = vmatpush2.bf16.msra.mxu0 0
    %777 = vmatprep.subr.bf16.mxu0 0
    %778 = vmatpush2.bf16.msra.mxu0 0
    %779 = vmatprep.subr.bf16.mxu0 0
    %780 = vmatpush2.bf16.msra.mxu0 0
    %781 = vmatprep.subr.bf16.mxu0 0
    %782 = vmatpush2.bf16.msra.mxu0 0
    %783 = vmatprep.mubr.bf16.mxu0 0
    %784 = vmatmul.mubr.bf16.gmra.mxu0 %v749
    %v785 = vpop.f32.mrf.mxu0
    %v786 = vadd.f32 %v646, %v785
    %v787 = vpop.f32.mrf.mxu0
    %v788 = vpop.f32.mrf.mxu0
    %v789 = vadd.f32 %v649, %v788
    %v790 = vpop.f32.mrf.mxu0
    %791 = vmatprep.mubr.bf16.mxu0 0
    %792 = vmatmul.mubr.bf16.gmra.mxu0 %v582
    %v793 = vpop.f32.mrf.mxu0
    %v794 = vadd.f32 %v654, %v793
    %v795 = vpop.f32.mrf.mxu0
    %v796 = vpop.f32.mrf.mxu0
    %v797 = vadd.f32 %v657, %v796
    %v798 = vpop.f32.mrf.mxu0
    %799 = vmatprep.mubr.bf16.mxu0 0
    %800 = vmatmul.mubr.bf16.gmra.mxu0 %v585
    %v801 = vpop.f32.mrf.mxu0
    %v802 = vadd.f32 %v662, %v801
    %v803 = vpop.f32.mrf.mxu0
    %v804 = vpop.f32.mrf.mxu0
    %v805 = vadd.f32 %v665, %v804
    %v806 = vpop.f32.mrf.mxu0
    %807 = vmatprep.mubr.bf16.mxu0 0
    %808 = vmatmul.mubr.bf16.gmra.mxu0 %v588
    %v809 = vpop.f32.mrf.mxu0
    %v810 = vadd.f32 %v670, %v809
    %v811 = vpop.f32.mrf.mxu0
    %v812 = vpop.f32.mrf.mxu0
    %v813 = vadd.f32 %v673, %v812
    %v814 = vpop.f32.mrf.mxu0
    %815 = vmatprep.mubr.bf16.mxu0 0
    %816 = vmatmul.mubr.bf16.gmra.mxu0 %v591
    %v817 = vpop.f32.mrf.mxu0
    %v818 = vadd.f32 %v678, %v817
    %v819 = vpop.f32.mrf.mxu0
    %v820 = vpop.f32.mrf.mxu0
    %v821 = vadd.f32 %v681, %v820
    %v822 = vpop.f32.mrf.mxu0
    %823 = vmatprep.mubr.bf16.mxu0 0
    %824 = vmatmul.mubr.bf16.gmra.mxu0 %v594
    %v825 = vpop.f32.mrf.mxu0
    %v826 = vadd.f32 %v686, %v825
    %v827 = vpop.f32.mrf.mxu0
    %v828 = vpop.f32.mrf.mxu0
    %v829 = vadd.f32 %v689, %v828
    %v830 = vpop.f32.mrf.mxu0
    %831 = vmatprep.mubr.bf16.mxu0 0
    %832 = vmatmul.mubr.bf16.gmra.mxu0 %v597
    %v833 = vpop.f32.mrf.mxu0
    %v834 = vadd.f32 %v694, %v833
    %v835 = vpop.f32.mrf.mxu0
    %v836 = vpop.f32.mrf.mxu0
    %v837 = vadd.f32 %v697, %v836
    %v838 = vpop.f32.mrf.mxu0
    %839 = vmatprep.mubr.bf16.mxu0 0
    %840 = vmatmul.mubr.bf16.gmra.mxu0 %v600
    %v841 = vpop.f32.mrf.mxu0
    %v842 = vadd.f32 %v702, %v841
    %v843 = vpop.f32.mrf.mxu0
    %v844 = vpop.f32.mrf.mxu0
    %v845 = vadd.f32 %v705, %v844
    %v846 = vpop.f32.mrf.mxu0
    %847 = vmatprep.mubr.bf16.mxu0 0
    %848 = vmatmul.mubr.bf16.gmra.mxu0 %v603
    %v849 = vpop.f32.mrf.mxu0
    %v850 = vadd.f32 %v710, %v849
    %v851 = vpop.f32.mrf.mxu0
    %v852 = vpop.f32.mrf.mxu0
    %v853 = vadd.f32 %v713, %v852
    %v854 = vpop.f32.mrf.mxu0
    %855 = vmatprep.mubr.bf16.mxu0 0
    %856 = vmatmul.mubr.bf16.gmra.mxu0 %v606
    %v857 = vpop.f32.mrf.mxu0
    %v858 = vadd.f32 %v718, %v857
    %v859 = vpop.f32.mrf.mxu0
    %v860 = vpop.f32.mrf.mxu0
    %v861 = vadd.f32 %v721, %v860
    %v862 = vpop.f32.mrf.mxu0
    %863 = vdwg.mxu0
    %s864 = scalar_lea.vmem [#allocation7], 64
    %v865 = vld [vmem:[%s864] sm:$0xf]
    %v866 = vld [vmem:[%s864 + $0x4] sm:$0xf]
    %v867 = vld [vmem:[%s864 + $0x8] sm:$0xf]
    %v868 = vld [vmem:[%s864 + $0xc] sm:$0xf]
    %v869 = vld [vmem:[%s864 + $0x10] sm:$0xf]
    %v870 = vld [vmem:[%s864 + $0x14] sm:$0xf]
    %v871 = vld [vmem:[%s864 + $0x18] sm:$0xf]
    %v872 = vld [vmem:[%s864 + $0x1c] sm:$0xf]
    %v881 = vunpack.c.l.b16 %v865
    %v882 = vunpack.c.l.b16 %v866
    %v883 = vunpack.c.l.b16 %v867
    %v884 = vunpack.c.l.b16 %v868
    %v885 = vunpack.c.l.b16 %v869
    %v886 = vunpack.c.l.b16 %v870
    %v887 = vunpack.c.l.b16 %v871
    %v888 = vunpack.c.l.b16 %v872
    %v889 = vpack.c.b16 %v882, %v881
    %v890 = vpack.c.b16 %v884, %v883
    %v891 = vpack.c.b16 %v886, %v885
    %v892 = vpack.c.b16 %v888, %v887
    %v898 = vsel %vm580, %v538, 0
    %900 = vmatprep.subr.bf16.mxu0 0
    %901 = vmatpush1.bf16.msra.mxu0 0
    %902 = vmatprep.subr.bf16.mxu0 0
    %903 = vmatpush1.bf16.msra.mxu0 0
    %904 = vmatprep.subr.bf16.mxu0 0
    %905 = vmatpush1.bf16.msra.mxu0 0
    %906 = vmatprep.subr.bf16.mxu0 0
    %907 = vmatpush1.bf16.msra.mxu0 0
    %908 = vmatprep.subr.bf16.mxu0 0
    %909 = vmatpush1.bf16.msra.mxu0 %v892
    %910 = vmatprep.subr.bf16.mxu0 0
    %911 = vmatpush1.bf16.msra.mxu0 %v891
    %912 = vmatprep.subr.bf16.mxu0 0
    %913 = vmatpush1.bf16.msra.mxu0 %v890
    %914 = vmatprep.subr.bf16.mxu0 0
    %915 = vmatpush1.bf16.msra.mxu0 %v889
    %916 = vmatprep.subr.bf16.mxu0 0
    %917 = vmatpush2.bf16.msra.mxu0 0
    %918 = vmatprep.subr.bf16.mxu0 0
    %919 = vmatpush2.bf16.msra.mxu0 0
    %920 = vmatprep.subr.bf16.mxu0 0
    %921 = vmatpush2.bf16.msra.mxu0 0
    %922 = vmatprep.subr.bf16.mxu0 0
    %923 = vmatpush2.bf16.msra.mxu0 0
    %924 = vmatprep.subr.bf16.mxu0 0
    %925 = vmatpush2.bf16.msra.mxu0 0
    %926 = vmatprep.subr.bf16.mxu0 0
    %927 = vmatpush2.bf16.msra.mxu0 0
    %928 = vmatprep.subr.bf16.mxu0 0
    %929 = vmatpush2.bf16.msra.mxu0 0
    %930 = vmatprep.subr.bf16.mxu0 0
    %931 = vmatpush2.bf16.msra.mxu0 0
    %932 = vmatprep.mubr.bf16.mxu0 0
    %933 = vmatmul.mubr.bf16.gmra.mxu0 %v585
    %v934 = vpop.f32.mrf.mxu0
    %v935 = vadd.f32 0.0, %v934
    %v936 = vpop.f32.mrf.mxu0
    %v937 = vpop.f32.mrf.mxu0
    %v938 = vadd.f32 0.0, %v937
    %v939 = vpop.f32.mrf.mxu0
    %940 = vmatprep.mubr.bf16.mxu0 0
    %941 = vmatmul.mubr.bf16.gmra.mxu0 %v588
    %v942 = vpop.f32.mrf.mxu0
    %v943 = vadd.f32 0.0, %v942
    %v944 = vpop.f32.mrf.mxu0
    %v945 = vpop.f32.mrf.mxu0
    %v946 = vadd.f32 0.0, %v945
    %v947 = vpop.f32.mrf.mxu0
    %948 = vmatprep.mubr.bf16.mxu0 0
    %949 = vmatmul.mubr.bf16.gmra.mxu0 %v591
    %v950 = vpop.f32.mrf.mxu0
    %v951 = vadd.f32 0.0, %v950
    %v952 = vpop.f32.mrf.mxu0
    %v953 = vpop.f32.mrf.mxu0
    %v954 = vadd.f32 0.0, %v953
    %v955 = vpop.f32.mrf.mxu0
    %956 = vmatprep.mubr.bf16.mxu0 0
    %957 = vmatmul.mubr.bf16.gmra.mxu0 %v594
    %v958 = vpop.f32.mrf.mxu0
    %v959 = vadd.f32 0.0, %v958
    %v960 = vpop.f32.mrf.mxu0
    %v961 = vpop.f32.mrf.mxu0
    %v962 = vadd.f32 0.0, %v961
    %v963 = vpop.f32.mrf.mxu0
    %964 = vmatprep.mubr.bf16.mxu0 0
    %965 = vmatmul.mubr.bf16.gmra.mxu0 %v597
    %v966 = vpop.f32.mrf.mxu0
    %v967 = vadd.f32 0.0, %v966
    %v968 = vpop.f32.mrf.mxu0
    %v969 = vpop.f32.mrf.mxu0
    %v970 = vadd.f32 0.0, %v969
    %v971 = vpop.f32.mrf.mxu0
    %972 = vmatprep.mubr.bf16.mxu0 0
    %973 = vmatmul.mubr.bf16.gmra.mxu0 %v600
    %v974 = vpop.f32.mrf.mxu0
    %v975 = vadd.f32 0.0, %v974
    %v976 = vpop.f32.mrf.mxu0
    %v977 = vpop.f32.mrf.mxu0
    %v978 = vadd.f32 0.0, %v977
    %v979 = vpop.f32.mrf.mxu0
    %980 = vmatprep.mubr.bf16.mxu0 0
    %981 = vmatmul.mubr.bf16.gmra.mxu0 %v603
    %v982 = vpop.f32.mrf.mxu0
    %v983 = vadd.f32 0.0, %v982
    %v984 = vpop.f32.mrf.mxu0
    %v985 = vpop.f32.mrf.mxu0
    %v986 = vadd.f32 0.0, %v985
    %v987 = vpop.f32.mrf.mxu0
    %988 = vmatprep.mubr.bf16.mxu0 0
    %989 = vmatmul.mubr.bf16.gmra.mxu0 %v606
    %v990 = vpop.f32.mrf.mxu0
    %v991 = vadd.f32 0.0, %v990
    %v992 = vpop.f32.mrf.mxu0
    %v993 = vpop.f32.mrf.mxu0
    %v994 = vadd.f32 0.0, %v993
    %v995 = vpop.f32.mrf.mxu0
    %996 = vmatprep.mubr.bf16.mxu0 0
    %997 = vmatmul.mubr.bf16.gmra.mxu0 %v609
    %v998 = vpop.f32.mrf.mxu0
    %v999 = vadd.f32 0.0, %v998
    %v1000 = vpop.f32.mrf.mxu0
    %v1001 = vpop.f32.mrf.mxu0
    %v1002 = vadd.f32 0.0, %v1001
    %v1003 = vpop.f32.mrf.mxu0
    %1004 = vmatprep.mubr.bf16.mxu0 0
    %1005 = vmatmul.mubr.bf16.gmra.mxu0 %v898
    %v1006 = vpop.f32.mrf.mxu0
    %v1007 = vadd.f32 0.0, %v1006
    %v1008 = vpop.f32.mrf.mxu0
    %v1009 = vpop.f32.mrf.mxu0
    %v1010 = vadd.f32 0.0, %v1009
    %v1011 = vpop.f32.mrf.mxu0
    %1012 = vdwg.mxu0
    %v1013 = vadd.f32 %v786, %v935
    %v1014 = vadd.f32 %v789, %v938
    %v1015 = vadd.f32 %v794, %v943
    %v1016 = vadd.f32 %v797, %v946
    %v1017 = vadd.f32 %v802, %v951
    %v1018 = vadd.f32 %v805, %v954
    %v1019 = vadd.f32 %v810, %v959
    %v1020 = vadd.f32 %v813, %v962
    %v1021 = vadd.f32 %v818, %v967
    %v1022 = vadd.f32 %v821, %v970
    %v1023 = vadd.f32 %v826, %v975
    %v1024 = vadd.f32 %v829, %v978
    %v1025 = vadd.f32 %v834, %v983
    %v1026 = vadd.f32 %v837, %v986
    %v1027 = vadd.f32 %v842, %v991
    %v1028 = vadd.f32 %v845, %v994
    %v1029 = vadd.f32 %v850, %v999
    %v1030 = vadd.f32 %v853, %v1002
    %v1031 = vadd.f32 %v858, %v1007
    %v1032 = vadd.f32 %v861, %v1010
    %v1033 = vld [vmem:[#allocation8] sm:$0x1]
    %v1035 = vlaneseq
    %v1036 = vshrl.u32 %v1035, 7
    %v1037 = vsub.s32 0, %v1036
    %v1038 = vrot.slane %v1033, %v1037
    %v1040 = vadd.f32 %v1013, %v1038
    %v1041 = vadd.f32 %v1014, %v1038
    %v1042 = vadd.f32 %v1015, %v1038
    %v1043 = vadd.f32 %v1016, %v1038
    %v1044 = vadd.f32 %v1017, %v1038
    %v1045 = vadd.f32 %v1018, %v1038
    %v1046 = vadd.f32 %v1019, %v1038
    %v1047 = vadd.f32 %v1020, %v1038
    %v1048 = vadd.f32 %v1021, %v1038
    %v1049 = vadd.f32 %v1022, %v1038
    %v1050 = vadd.f32 %v1023, %v1038
    %v1051 = vadd.f32 %v1024, %v1038
    %v1052 = vadd.f32 %v1025, %v1038
    %v1053 = vadd.f32 %v1026, %v1038
    %v1054 = vadd.f32 %v1027, %v1038
    %v1055 = vadd.f32 %v1028, %v1038
    %v1056 = vadd.f32 %v1029, %v1038
    %v1057 = vadd.f32 %v1030, %v1038
    %v1058 = vadd.f32 %v1031, %v1038
    %v1059 = vadd.f32 %v1032, %v1038
    %v1060 = vmax.f32 %v1040, 0.0
    %v1061 = vmax.f32 %v1041, 0.0
    %v1062 = vmax.f32 %v1042, 0.0
    %v1063 = vmax.f32 %v1043, 0.0
    %v1064 = vmax.f32 %v1044, 0.0
    %v1065 = vmax.f32 %v1045, 0.0
    %v1066 = vmax.f32 %v1046, 0.0
    %v1067 = vmax.f32 %v1047, 0.0
    %v1068 = vmax.f32 %v1048, 0.0
    %v1069 = vmax.f32 %v1049, 0.0
    %v1070 = vmax.f32 %v1050, 0.0
    %v1071 = vmax.f32 %v1051, 0.0
    %v1072 = vmax.f32 %v1052, 0.0
    %v1073 = vmax.f32 %v1053, 0.0
    %v1074 = vmax.f32 %v1054, 0.0
    %v1075 = vmax.f32 %v1055, 0.0
    %v1076 = vmax.f32 %v1056, 0.0
    %v1077 = vmax.f32 %v1057, 0.0
    %v1078 = vmax.f32 %v1058, 0.0
    %v1079 = vmax.f32 %v1059, 0.0
    %v1080 = vpack.c.bf16 %v1061, %v1060
    %v1081 = vpack.c.bf16 %v1063, %v1062
    %v1082 = vpack.c.bf16 %v1065, %v1064
    %v1083 = vpack.c.bf16 %v1067, %v1066
    %v1084 = vpack.c.bf16 %v1069, %v1068
    %v1085 = vpack.c.bf16 %v1071, %v1070
    %v1086 = vpack.c.bf16 %v1073, %v1072
    %v1087 = vpack.c.bf16 %v1075, %v1074
    %v1088 = vpack.c.bf16 %v1077, %v1076
    %v1089 = vpack.c.bf16 %v1079, %v1078
    %v1090 = vld [vmem:[#allocation10] sm:$0xff]
    %v1091 = vld [vmem:[#allocation10 + $0x8] sm:$0xff]
    %v1092 = vld [vmem:[#allocation10 + $0x10] sm:$0xff]
    %v1093 = vld [vmem:[#allocation10 + $0x18] sm:$0xff]
    %v1094 = vld [vmem:[#allocation10 + $0x20] sm:$0xff]
    %v1095 = vld [vmem:[#allocation10 + $0x28] sm:$0xff]
    %v1096 = vld [vmem:[#allocation10 + $0x30] sm:$0xff]
    %v1097 = vld [vmem:[#allocation10 + $0x38] sm:$0xff]
    %v1098 = vld [vmem:[#allocation10 + $0x40] sm:$0xff]
    %v1099 = vld [vmem:[#allocation10 + $0x48] sm:$0xff]
    %v1100 = vld [vmem:[#allocation10 + $0x50] sm:$0xff]
    %v1101 = vld [vmem:[#allocation10 + $0x58] sm:$0xff]
    %v1102 = vld [vmem:[#allocation10 + $0x60] sm:$0xff]
    %v1103 = vld [vmem:[#allocation10 + $0x68] sm:$0xff]
    %v1104 = vld [vmem:[#allocation10 + $0x70] sm:$0xff]
    %v1105 = vld [vmem:[#allocation10 + $0x78] sm:$0xff]
    %s1106 = scalar_lea.vmem [#allocation10], 128
    %v1107 = vld [vmem:[%s1106] sm:$0xff]
    %v1108 = vld [vmem:[%s1106 + $0x8] sm:$0xff]
    %v1109 = vld [vmem:[%s1106 + $0x10] sm:$0xff]
    %v1110 = vld [vmem:[%s1106 + $0x18] sm:$0xff]
    %v1111 = vld [vmem:[%s1106 + $0x20] sm:$0xff]
    %v1112 = vld [vmem:[%s1106 + $0x28] sm:$0xff]
    %v1113 = vld [vmem:[%s1106 + $0x30] sm:$0xff]
    %v1114 = vld [vmem:[%s1106 + $0x38] sm:$0xff]
    %v1115 = vld [vmem:[%s1106 + $0x40] sm:$0xff]
    %v1116 = vld [vmem:[%s1106 + $0x48] sm:$0xff]
    %v1117 = vld [vmem:[%s1106 + $0x50] sm:$0xff]
    %v1118 = vld [vmem:[%s1106 + $0x58] sm:$0xff]
    %v1119 = vld [vmem:[%s1106 + $0x60] sm:$0xff]
    %v1120 = vld [vmem:[%s1106 + $0x68] sm:$0xff]
    %v1121 = vld [vmem:[%s1106 + $0x70] sm:$0xff]
    %v1122 = vld [vmem:[%s1106 + $0x78] sm:$0xff]
    %v1139 = vunpack.c.l.b16 %v1107
    %v1140 = vunpack.c.h.b16 %v1107
    %v1141 = vunpack.c.l.b16 %v1108
    %v1142 = vunpack.c.h.b16 %v1108
    %v1143 = vunpack.c.l.b16 %v1109
    %v1144 = vunpack.c.h.b16 %v1109
    %v1145 = vunpack.c.l.b16 %v1110
    %v1146 = vunpack.c.h.b16 %v1110
    %v1147 = vunpack.c.l.b16 %v1111
    %v1148 = vunpack.c.h.b16 %v1111
    %v1149 = vunpack.c.l.b16 %v1112
    %v1150 = vunpack.c.h.b16 %v1112
    %v1151 = vunpack.c.l.b16 %v1113
    %v1152 = vunpack.c.h.b16 %v1113
    %v1153 = vunpack.c.l.b16 %v1114
    %v1154 = vunpack.c.h.b16 %v1114
    %v1155 = vunpack.c.l.b16 %v1115
    %v1156 = vunpack.c.h.b16 %v1115
    %v1157 = vunpack.c.l.b16 %v1116
    %v1158 = vunpack.c.h.b16 %v1116
    %v1159 = vunpack.c.l.b16 %v1117
    %v1160 = vunpack.c.h.b16 %v1117
    %v1161 = vunpack.c.l.b16 %v1118
    %v1162 = vunpack.c.h.b16 %v1118
    %v1163 = vunpack.c.l.b16 %v1119
    %v1164 = vunpack.c.h.b16 %v1119
    %v1165 = vunpack.c.l.b16 %v1120
    %v1166 = vunpack.c.h.b16 %v1120
    %v1167 = vunpack.c.l.b16 %v1121
    %v1168 = vunpack.c.h.b16 %v1121
    %v1169 = vunpack.c.l.b16 %v1122
    %v1170 = vunpack.c.h.b16 %v1122
    %v1171 = vpack.c.b16 %v1141, %v1139
    %v1172 = vpack.c.b16 %v1142, %v1140
    %v1173 = vpack.c.b16 %v1145, %v1143
    %v1174 = vpack.c.b16 %v1146, %v1144
    %v1175 = vpack.c.b16 %v1149, %v1147
    %v1176 = vpack.c.b16 %v1150, %v1148
    %v1177 = vpack.c.b16 %v1153, %v1151
    %v1178 = vpack.c.b16 %v1154, %v1152
    %v1179 = vpack.c.b16 %v1157, %v1155
    %v1180 = vpack.c.b16 %v1158, %v1156
    %v1181 = vpack.c.b16 %v1161, %v1159
    %v1182 = vpack.c.b16 %v1162, %v1160
    %v1183 = vpack.c.b16 %v1165, %v1163
    %v1184 = vpack.c.b16 %v1166, %v1164
    %v1185 = vpack.c.b16 %v1169, %v1167
    %v1186 = vpack.c.b16 %v1170, %v1168
    %1203 = vmatprep.subr.bf16.mxu0 %v1186
    %1204 = vmatpush1.bf16.msra.mxu0 %v1185
    %1205 = vmatprep.subr.bf16.mxu0 %v1184
    %1206 = vmatpush1.bf16.msra.mxu0 %v1183
    %1207 = vmatprep.subr.bf16.mxu0 %v1182
    %1208 = vmatpush1.bf16.msra.mxu0 %v1181
    %1209 = vmatprep.subr.bf16.mxu0 %v1180
    %1210 = vmatpush1.bf16.msra.mxu0 %v1179
    %1211 = vmatprep.subr.bf16.mxu0 %v1178
    %1212 = vmatpush1.bf16.msra.mxu0 %v1177
    %1213 = vmatprep.subr.bf16.mxu0 %v1176
    %1214 = vmatpush1.bf16.msra.mxu0 %v1175
    %1215 = vmatprep.subr.bf16.mxu0 %v1174
    %1216 = vmatpush1.bf16.msra.mxu0 %v1173
    %1217 = vmatprep.subr.bf16.mxu0 %v1172
    %1218 = vmatpush1.bf16.msra.mxu0 %v1171
    %1219 = vmatprep.subr.bf16.mxu0 0
    %1220 = vmatpush2.bf16.msra.mxu0 0
    %1221 = vmatprep.subr.bf16.mxu0 0
    %1222 = vmatpush2.bf16.msra.mxu0 0
    %1223 = vmatprep.subr.bf16.mxu0 0
    %1224 = vmatpush2.bf16.msra.mxu0 0
    %1225 = vmatprep.subr.bf16.mxu0 0
    %1226 = vmatpush2.bf16.msra.mxu0 0
    %1227 = vmatprep.subr.bf16.mxu0 0
    %1228 = vmatpush2.bf16.msra.mxu0 0
    %1229 = vmatprep.subr.bf16.mxu0 0
    %1230 = vmatpush2.bf16.msra.mxu0 0
    %1231 = vmatprep.subr.bf16.mxu0 0
    %1232 = vmatpush2.bf16.msra.mxu0 0
    %1233 = vmatprep.subr.bf16.mxu0 0
    %1234 = vmatpush2.bf16.msra.mxu0 0
    %1235 = vmatprep.mubr.bf16.mxu0 0
    %1236 = vmatmul.mubr.bf16.gmra.mxu0 %v1081
    %v1237 = vpop.f32.mrf.mxu0
    %v1238 = vadd.f32 0.0, %v1237
    %v1239 = vpop.f32.mrf.mxu0
    %v1240 = vadd.f32 0.0, %v1239
    %v1241 = vpop.f32.mrf.mxu0
    %v1242 = vadd.f32 0.0, %v1241
    %v1243 = vpop.f32.mrf.mxu0
    %v1244 = vadd.f32 0.0, %v1243
    %1245 = vmatprep.mubr.bf16.mxu0 0
    %1246 = vmatmul.mubr.bf16.gmra.mxu0 %v1082
    %v1247 = vpop.f32.mrf.mxu0
    %v1248 = vadd.f32 0.0, %v1247
    %v1249 = vpop.f32.mrf.mxu0
    %v1250 = vadd.f32 0.0, %v1249
    %v1251 = vpop.f32.mrf.mxu0
    %v1252 = vadd.f32 0.0, %v1251
    %v1253 = vpop.f32.mrf.mxu0
    %v1254 = vadd.f32 0.0, %v1253
    %1255 = vmatprep.mubr.bf16.mxu0 0
    %1256 = vmatmul.mubr.bf16.gmra.mxu0 %v1083
    %v1257 = vpop.f32.mrf.mxu0
    %v1258 = vadd.f32 0.0, %v1257
    %v1259 = vpop.f32.mrf.mxu0
    %v1260 = vadd.f32 0.0, %v1259
    %v1261 = vpop.f32.mrf.mxu0
    %v1262 = vadd.f32 0.0, %v1261
    %v1263 = vpop.f32.mrf.mxu0
    %v1264 = vadd.f32 0.0, %v1263
    %1265 = vmatprep.mubr.bf16.mxu0 0
    %1266 = vmatmul.mubr.bf16.gmra.mxu0 %v1084
    %v1267 = vpop.f32.mrf.mxu0
    %v1268 = vadd.f32 0.0, %v1267
    %v1269 = vpop.f32.mrf.mxu0
    %v1270 = vadd.f32 0.0, %v1269
    %v1271 = vpop.f32.mrf.mxu0
    %v1272 = vadd.f32 0.0, %v1271
    %v1273 = vpop.f32.mrf.mxu0
    %v1274 = vadd.f32 0.0, %v1273
    %1275 = vmatprep.mubr.bf16.mxu0 0
    %1276 = vmatmul.mubr.bf16.gmra.mxu0 %v1085
    %v1277 = vpop.f32.mrf.mxu0
    %v1278 = vadd.f32 0.0, %v1277
    %v1279 = vpop.f32.mrf.mxu0
    %v1280 = vadd.f32 0.0, %v1279
    %v1281 = vpop.f32.mrf.mxu0
    %v1282 = vadd.f32 0.0, %v1281
    %v1283 = vpop.f32.mrf.mxu0
    %v1284 = vadd.f32 0.0, %v1283
    %1285 = vmatprep.mubr.bf16.mxu0 0
    %1286 = vmatmul.mubr.bf16.gmra.mxu0 %v1086
    %v1287 = vpop.f32.mrf.mxu0
    %v1288 = vadd.f32 0.0, %v1287
    %v1289 = vpop.f32.mrf.mxu0
    %v1290 = vadd.f32 0.0, %v1289
    %v1291 = vpop.f32.mrf.mxu0
    %v1292 = vadd.f32 0.0, %v1291
    %v1293 = vpop.f32.mrf.mxu0
    %v1294 = vadd.f32 0.0, %v1293
    %1295 = vmatprep.mubr.bf16.mxu0 0
    %1296 = vmatmul.mubr.bf16.gmra.mxu0 %v1087
    %v1297 = vpop.f32.mrf.mxu0
    %v1298 = vadd.f32 0.0, %v1297
    %v1299 = vpop.f32.mrf.mxu0
    %v1300 = vadd.f32 0.0, %v1299
    %v1301 = vpop.f32.mrf.mxu0
    %v1302 = vadd.f32 0.0, %v1301
    %v1303 = vpop.f32.mrf.mxu0
    %v1304 = vadd.f32 0.0, %v1303
    %1305 = vmatprep.mubr.bf16.mxu0 0
    %1306 = vmatmul.mubr.bf16.gmra.mxu0 %v1088
    %v1307 = vpop.f32.mrf.mxu0
    %v1308 = vadd.f32 0.0, %v1307
    %v1309 = vpop.f32.mrf.mxu0
    %v1310 = vadd.f32 0.0, %v1309
    %v1311 = vpop.f32.mrf.mxu0
    %v1312 = vadd.f32 0.0, %v1311
    %v1313 = vpop.f32.mrf.mxu0
    %v1314 = vadd.f32 0.0, %v1313
    %1315 = vdwg.mxu0
    %v1332 = vunpack.c.l.b16 %v1090
    %v1333 = vunpack.c.h.b16 %v1090
    %v1334 = vunpack.c.l.b16 %v1091
    %v1335 = vunpack.c.h.b16 %v1091
    %v1336 = vunpack.c.l.b16 %v1092
    %v1337 = vunpack.c.h.b16 %v1092
    %v1338 = vunpack.c.l.b16 %v1093
    %v1339 = vunpack.c.h.b16 %v1093
    %v1340 = vunpack.c.l.b16 %v1094
    %v1341 = vunpack.c.h.b16 %v1094
    %v1342 = vunpack.c.l.b16 %v1095
    %v1343 = vunpack.c.h.b16 %v1095
    %v1344 = vunpack.c.l.b16 %v1096
    %v1345 = vunpack.c.h.b16 %v1096
    %v1346 = vunpack.c.l.b16 %v1097
    %v1347 = vunpack.c.h.b16 %v1097
    %v1348 = vunpack.c.l.b16 %v1098
    %v1349 = vunpack.c.h.b16 %v1098
    %v1350 = vunpack.c.l.b16 %v1099
    %v1351 = vunpack.c.h.b16 %v1099
    %v1352 = vunpack.c.l.b16 %v1100
    %v1353 = vunpack.c.h.b16 %v1100
    %v1354 = vunpack.c.l.b16 %v1101
    %v1355 = vunpack.c.h.b16 %v1101
    %v1356 = vunpack.c.l.b16 %v1102
    %v1357 = vunpack.c.h.b16 %v1102
    %v1358 = vunpack.c.l.b16 %v1103
    %v1359 = vunpack.c.h.b16 %v1103
    %v1360 = vunpack.c.l.b16 %v1104
    %v1361 = vunpack.c.h.b16 %v1104
    %v1362 = vunpack.c.l.b16 %v1105
    %v1363 = vunpack.c.h.b16 %v1105
    %v1364 = vpack.c.b16 %v1334, %v1332
    %v1365 = vpack.c.b16 %v1335, %v1333
    %v1366 = vpack.c.b16 %v1338, %v1336
    %v1367 = vpack.c.b16 %v1339, %v1337
    %v1368 = vpack.c.b16 %v1342, %v1340
    %v1369 = vpack.c.b16 %v1343, %v1341
    %v1370 = vpack.c.b16 %v1346, %v1344
    %v1371 = vpack.c.b16 %v1347, %v1345
    %v1372 = vpack.c.b16 %v1350, %v1348
    %v1373 = vpack.c.b16 %v1351, %v1349
    %v1374 = vpack.c.b16 %v1354, %v1352
    %v1375 = vpack.c.b16 %v1355, %v1353
    %v1376 = vpack.c.b16 %v1358, %v1356
    %v1377 = vpack.c.b16 %v1359, %v1357
    %v1378 = vpack.c.b16 %v1362, %v1360
    %v1379 = vpack.c.b16 %v1363, %v1361
    %1396 = vmatprep.subr.bf16.mxu0 %v1379
    %1397 = vmatpush1.bf16.msra.mxu0 %v1378
    %1398 = vmatprep.subr.bf16.mxu0 %v1377
    %1399 = vmatpush1.bf16.msra.mxu0 %v1376
    %1400 = vmatprep.subr.bf16.mxu0 %v1375
    %1401 = vmatpush1.bf16.msra.mxu0 %v1374
    %1402 = vmatprep.subr.bf16.mxu0 %v1373
    %1403 = vmatpush1.bf16.msra.mxu0 %v1372
    %1404 = vmatprep.subr.bf16.mxu0 %v1371
    %1405 = vmatpush1.bf16.msra.mxu0 %v1370
    %1406 = vmatprep.subr.bf16.mxu0 %v1369
    %1407 = vmatpush1.bf16.msra.mxu0 %v1368
    %1408 = vmatprep.subr.bf16.mxu0 %v1367
    %1409 = vmatpush1.bf16.msra.mxu0 %v1366
    %1410 = vmatprep.subr.bf16.mxu0 %v1365
    %1411 = vmatpush1.bf16.msra.mxu0 %v1364
    %1412 = vmatprep.subr.bf16.mxu0 0
    %1413 = vmatpush2.bf16.msra.mxu0 0
    %1414 = vmatprep.subr.bf16.mxu0 0
    %1415 = vmatpush2.bf16.msra.mxu0 0
    %1416 = vmatprep.subr.bf16.mxu0 0
    %1417 = vmatpush2.bf16.msra.mxu0 0
    %1418 = vmatprep.subr.bf16.mxu0 0
    %1419 = vmatpush2.bf16.msra.mxu0 0
    %1420 = vmatprep.subr.bf16.mxu0 0
    %1421 = vmatpush2.bf16.msra.mxu0 0
    %1422 = vmatprep.subr.bf16.mxu0 0
    %1423 = vmatpush2.bf16.msra.mxu0 0
    %1424 = vmatprep.subr.bf16.mxu0 0
    %1425 = vmatpush2.bf16.msra.mxu0 0
    %1426 = vmatprep.subr.bf16.mxu0 0
    %1427 = vmatpush2.bf16.msra.mxu0 0
    %1428 = vmatprep.mubr.bf16.mxu0 0
    %1429 = vmatmul.mubr.bf16.gmra.mxu0 %v1080
    %v1430 = vpop.f32.mrf.mxu0
    %v1431 = vadd.f32 %v1238, %v1430
    %v1432 = vpop.f32.mrf.mxu0
    %v1433 = vadd.f32 %v1240, %v1432
    %v1434 = vpop.f32.mrf.mxu0
    %v1435 = vadd.f32 %v1242, %v1434
    %v1436 = vpop.f32.mrf.mxu0
    %v1437 = vadd.f32 %v1244, %v1436
    %1438 = vmatprep.mubr.bf16.mxu0 0
    %1439 = vmatmul.mubr.bf16.gmra.mxu0 %v1081
    %v1440 = vpop.f32.mrf.mxu0
    %v1441 = vadd.f32 %v1248, %v1440
    %v1442 = vpop.f32.mrf.mxu0
    %v1443 = vadd.f32 %v1250, %v1442
    %v1444 = vpop.f32.mrf.mxu0
    %v1445 = vadd.f32 %v1252, %v1444
    %v1446 = vpop.f32.mrf.mxu0
    %v1447 = vadd.f32 %v1254, %v1446
    %1448 = vmatprep.mubr.bf16.mxu0 0
    %1449 = vmatmul.mubr.bf16.gmra.mxu0 %v1082
    %v1450 = vpop.f32.mrf.mxu0
    %v1451 = vadd.f32 %v1258, %v1450
    %v1452 = vpop.f32.mrf.mxu0
    %v1453 = vadd.f32 %v1260, %v1452
    %v1454 = vpop.f32.mrf.mxu0
    %v1455 = vadd.f32 %v1262, %v1454
    %v1456 = vpop.f32.mrf.mxu0
    %v1457 = vadd.f32 %v1264, %v1456
    %1458 = vmatprep.mubr.bf16.mxu0 0
    %1459 = vmatmul.mubr.bf16.gmra.mxu0 %v1083
    %v1460 = vpop.f32.mrf.mxu0
    %v1461 = vadd.f32 %v1268, %v1460
    %v1462 = vpop.f32.mrf.mxu0
    %v1463 = vadd.f32 %v1270, %v1462
    %v1464 = vpop.f32.mrf.mxu0
    %v1465 = vadd.f32 %v1272, %v1464
    %v1466 = vpop.f32.mrf.mxu0
    %v1467 = vadd.f32 %v1274, %v1466
    %1468 = vmatprep.mubr.bf16.mxu0 0
    %1469 = vmatmul.mubr.bf16.gmra.mxu0 %v1084
    %v1470 = vpop.f32.mrf.mxu0
    %v1471 = vadd.f32 %v1278, %v1470
    %v1472 = vpop.f32.mrf.mxu0
    %v1473 = vadd.f32 %v1280, %v1472
    %v1474 = vpop.f32.mrf.mxu0
    %v1475 = vadd.f32 %v1282, %v1474
    %v1476 = vpop.f32.mrf.mxu0
    %v1477 = vadd.f32 %v1284, %v1476
    %1478 = vmatprep.mubr.bf16.mxu0 0
    %1479 = vmatmul.mubr.bf16.gmra.mxu0 %v1085
    %v1480 = vpop.f32.mrf.mxu0
    %v1481 = vadd.f32 %v1288, %v1480
    %v1482 = vpop.f32.mrf.mxu0
    %v1483 = vadd.f32 %v1290, %v1482
    %v1484 = vpop.f32.mrf.mxu0
    %v1485 = vadd.f32 %v1292, %v1484
    %v1486 = vpop.f32.mrf.mxu0
    %v1487 = vadd.f32 %v1294, %v1486
    %1488 = vmatprep.mubr.bf16.mxu0 0
    %1489 = vmatmul.mubr.bf16.gmra.mxu0 %v1086
    %v1490 = vpop.f32.mrf.mxu0
    %v1491 = vadd.f32 %v1298, %v1490
    %v1492 = vpop.f32.mrf.mxu0
    %v1493 = vadd.f32 %v1300, %v1492
    %v1494 = vpop.f32.mrf.mxu0
    %v1495 = vadd.f32 %v1302, %v1494
    %v1496 = vpop.f32.mrf.mxu0
    %v1497 = vadd.f32 %v1304, %v1496
    %1498 = vmatprep.mubr.bf16.mxu0 0
    %1499 = vmatmul.mubr.bf16.gmra.mxu0 %v1087
    %v1500 = vpop.f32.mrf.mxu0
    %v1501 = vadd.f32 %v1308, %v1500
    %v1502 = vpop.f32.mrf.mxu0
    %v1503 = vadd.f32 %v1310, %v1502
    %v1504 = vpop.f32.mrf.mxu0
    %v1505 = vadd.f32 %v1312, %v1504
    %v1506 = vpop.f32.mrf.mxu0
    %v1507 = vadd.f32 %v1314, %v1506
    %1508 = vdwg.mxu0
    %s1509 = scalar_lea.vmem [#allocation10], 256
    %v1510 = vld [vmem:[%s1509] sm:$0xff]
    %v1511 = vld [vmem:[%s1509 + $0x8] sm:$0xff]
    %v1512 = vld [vmem:[%s1509 + $0x10] sm:$0xff]
    %v1513 = vld [vmem:[%s1509 + $0x18] sm:$0xff]
    %v1514 = vld [vmem:[%s1509 + $0x20] sm:$0xff]
    %v1515 = vld [vmem:[%s1509 + $0x28] sm:$0xff]
    %v1516 = vld [vmem:[%s1509 + $0x30] sm:$0xff]
    %v1517 = vld [vmem:[%s1509 + $0x38] sm:$0xff]
    %v1518 = vld [vmem:[%s1509 + $0x40] sm:$0xff]
    %v1519 = vld [vmem:[%s1509 + $0x48] sm:$0xff]
    %v1520 = vld [vmem:[%s1509 + $0x50] sm:$0xff]
    %v1521 = vld [vmem:[%s1509 + $0x58] sm:$0xff]
    %v1522 = vld [vmem:[%s1509 + $0x60] sm:$0xff]
    %v1523 = vld [vmem:[%s1509 + $0x68] sm:$0xff]
    %v1524 = vld [vmem:[%s1509 + $0x70] sm:$0xff]
    %v1525 = vld [vmem:[%s1509 + $0x78] sm:$0xff]
    %v1542 = vunpack.c.l.b16 %v1510
    %v1543 = vunpack.c.h.b16 %v1510
    %v1544 = vunpack.c.l.b16 %v1511
    %v1545 = vunpack.c.h.b16 %v1511
    %v1546 = vunpack.c.l.b16 %v1512
    %v1547 = vunpack.c.h.b16 %v1512
    %v1548 = vunpack.c.l.b16 %v1513
    %v1549 = vunpack.c.h.b16 %v1513
    %v1550 = vunpack.c.l.b16 %v1514
    %v1551 = vunpack.c.h.b16 %v1514
    %v1552 = vunpack.c.l.b16 %v1515
    %v1553 = vunpack.c.h.b16 %v1515
    %v1554 = vunpack.c.l.b16 %v1516
    %v1555 = vunpack.c.h.b16 %v1516
    %v1556 = vunpack.c.l.b16 %v1517
    %v1557 = vunpack.c.h.b16 %v1517
    %v1558 = vunpack.c.l.b16 %v1518
    %v1559 = vunpack.c.h.b16 %v1518
    %v1560 = vunpack.c.l.b16 %v1519
    %v1561 = vunpack.c.h.b16 %v1519
    %v1562 = vunpack.c.l.b16 %v1520
    %v1563 = vunpack.c.h.b16 %v1520
    %v1564 = vunpack.c.l.b16 %v1521
    %v1565 = vunpack.c.h.b16 %v1521
    %v1566 = vunpack.c.l.b16 %v1522
    %v1567 = vunpack.c.h.b16 %v1522
    %v1568 = vunpack.c.l.b16 %v1523
    %v1569 = vunpack.c.h.b16 %v1523
    %v1570 = vunpack.c.l.b16 %v1524
    %v1571 = vunpack.c.h.b16 %v1524
    %v1572 = vunpack.c.l.b16 %v1525
    %v1573 = vunpack.c.h.b16 %v1525
    %v1574 = vpack.c.b16 %v1544, %v1542
    %v1575 = vpack.c.b16 %v1545, %v1543
    %v1576 = vpack.c.b16 %v1548, %v1546
    %v1577 = vpack.c.b16 %v1549, %v1547
    %v1578 = vpack.c.b16 %v1552, %v1550
    %v1579 = vpack.c.b16 %v1553, %v1551
    %v1580 = vpack.c.b16 %v1556, %v1554
    %v1581 = vpack.c.b16 %v1557, %v1555
    %v1582 = vpack.c.b16 %v1560, %v1558
    %v1583 = vpack.c.b16 %v1561, %v1559
    %v1584 = vpack.c.b16 %v1564, %v1562
    %v1585 = vpack.c.b16 %v1565, %v1563
    %v1586 = vpack.c.b16 %v1568, %v1566
    %v1587 = vpack.c.b16 %v1569, %v1567
    %v1588 = vpack.c.b16 %v1572, %v1570
    %v1589 = vpack.c.b16 %v1573, %v1571
    %1606 = vmatprep.subr.bf16.mxu0 %v1589
    %1607 = vmatpush1.bf16.msra.mxu0 %v1588
    %1608 = vmatprep.subr.bf16.mxu0 %v1587
    %1609 = vmatpush1.bf16.msra.mxu0 %v1586
    %1610 = vmatprep.subr.bf16.mxu0 %v1585
    %1611 = vmatpush1.bf16.msra.mxu0 %v1584
    %1612 = vmatprep.subr.bf16.mxu0 %v1583
    %1613 = vmatpush1.bf16.msra.mxu0 %v1582
    %1614 = vmatprep.subr.bf16.mxu0 %v1581
    %1615 = vmatpush1.bf16.msra.mxu0 %v1580
    %1616 = vmatprep.subr.bf16.mxu0 %v1579
    %1617 = vmatpush1.bf16.msra.mxu0 %v1578
    %1618 = vmatprep.subr.bf16.mxu0 %v1577
    %1619 = vmatpush1.bf16.msra.mxu0 %v1576
    %1620 = vmatprep.subr.bf16.mxu0 %v1575
    %1621 = vmatpush1.bf16.msra.mxu0 %v1574
    %1622 = vmatprep.subr.bf16.mxu0 0
    %1623 = vmatpush2.bf16.msra.mxu0 0
    %1624 = vmatprep.subr.bf16.mxu0 0
    %1625 = vmatpush2.bf16.msra.mxu0 0
    %1626 = vmatprep.subr.bf16.mxu0 0
    %1627 = vmatpush2.bf16.msra.mxu0 0
    %1628 = vmatprep.subr.bf16.mxu0 0
    %1629 = vmatpush2.bf16.msra.mxu0 0
    %1630 = vmatprep.subr.bf16.mxu0 0
    %1631 = vmatpush2.bf16.msra.mxu0 0
    %1632 = vmatprep.subr.bf16.mxu0 0
    %1633 = vmatpush2.bf16.msra.mxu0 0
    %1634 = vmatprep.subr.bf16.mxu0 0
    %1635 = vmatpush2.bf16.msra.mxu0 0
    %1636 = vmatprep.subr.bf16.mxu0 0
    %1637 = vmatpush2.bf16.msra.mxu0 0
    %1638 = vmatprep.mubr.bf16.mxu0 0
    %1639 = vmatmul.mubr.bf16.gmra.mxu0 %v1082
    %v1640 = vpop.f32.mrf.mxu0
    %v1641 = vadd.f32 0.0, %v1640
    %v1642 = vpop.f32.mrf.mxu0
    %v1643 = vadd.f32 0.0, %v1642
    %v1644 = vpop.f32.mrf.mxu0
    %v1645 = vadd.f32 0.0, %v1644
    %v1646 = vpop.f32.mrf.mxu0
    %v1647 = vadd.f32 0.0, %v1646
    %1648 = vmatprep.mubr.bf16.mxu0 0
    %1649 = vmatmul.mubr.bf16.gmra.mxu0 %v1083
    %v1650 = vpop.f32.mrf.mxu0
    %v1651 = vadd.f32 0.0, %v1650
    %v1652 = vpop.f32.mrf.mxu0
    %v1653 = vadd.f32 0.0, %v1652
    %v1654 = vpop.f32.mrf.mxu0
    %v1655 = vadd.f32 0.0, %v1654
    %v1656 = vpop.f32.mrf.mxu0
    %v1657 = vadd.f32 0.0, %v1656
    %1658 = vmatprep.mubr.bf16.mxu0 0
    %1659 = vmatmul.mubr.bf16.gmra.mxu0 %v1084
    %v1660 = vpop.f32.mrf.mxu0
    %v1661 = vadd.f32 0.0, %v1660
    %v1662 = vpop.f32.mrf.mxu0
    %v1663 = vadd.f32 0.0, %v1662
    %v1664 = vpop.f32.mrf.mxu0
    %v1665 = vadd.f32 0.0, %v1664
    %v1666 = vpop.f32.mrf.mxu0
    %v1667 = vadd.f32 0.0, %v1666
    %1668 = vmatprep.mubr.bf16.mxu0 0
    %1669 = vmatmul.mubr.bf16.gmra.mxu0 %v1085
    %v1670 = vpop.f32.mrf.mxu0
    %v1671 = vadd.f32 0.0, %v1670
    %v1672 = vpop.f32.mrf.mxu0
    %v1673 = vadd.f32 0.0, %v1672
    %v1674 = vpop.f32.mrf.mxu0
    %v1675 = vadd.f32 0.0, %v1674
    %v1676 = vpop.f32.mrf.mxu0
    %v1677 = vadd.f32 0.0, %v1676
    %1678 = vmatprep.mubr.bf16.mxu0 0
    %1679 = vmatmul.mubr.bf16.gmra.mxu0 %v1086
    %v1680 = vpop.f32.mrf.mxu0
    %v1681 = vadd.f32 0.0, %v1680
    %v1682 = vpop.f32.mrf.mxu0
    %v1683 = vadd.f32 0.0, %v1682
    %v1684 = vpop.f32.mrf.mxu0
    %v1685 = vadd.f32 0.0, %v1684
    %v1686 = vpop.f32.mrf.mxu0
    %v1687 = vadd.f32 0.0, %v1686
    %1688 = vmatprep.mubr.bf16.mxu0 0
    %1689 = vmatmul.mubr.bf16.gmra.mxu0 %v1087
    %v1690 = vpop.f32.mrf.mxu0
    %v1691 = vadd.f32 0.0, %v1690
    %v1692 = vpop.f32.mrf.mxu0
    %v1693 = vadd.f32 0.0, %v1692
    %v1694 = vpop.f32.mrf.mxu0
    %v1695 = vadd.f32 0.0, %v1694
    %v1696 = vpop.f32.mrf.mxu0
    %v1697 = vadd.f32 0.0, %v1696
    %1698 = vmatprep.mubr.bf16.mxu0 0
    %1699 = vmatmul.mubr.bf16.gmra.mxu0 %v1088
    %v1700 = vpop.f32.mrf.mxu0
    %v1701 = vadd.f32 0.0, %v1700
    %v1702 = vpop.f32.mrf.mxu0
    %v1703 = vadd.f32 0.0, %v1702
    %v1704 = vpop.f32.mrf.mxu0
    %v1705 = vadd.f32 0.0, %v1704
    %v1706 = vpop.f32.mrf.mxu0
    %v1707 = vadd.f32 0.0, %v1706
    %1708 = vmatprep.mubr.bf16.mxu0 0
    %1709 = vmatmul.mubr.bf16.gmra.mxu0 %v1089
    %v1710 = vpop.f32.mrf.mxu0
    %v1711 = vadd.f32 0.0, %v1710
    %v1712 = vpop.f32.mrf.mxu0
    %v1713 = vadd.f32 0.0, %v1712
    %v1714 = vpop.f32.mrf.mxu0
    %v1715 = vadd.f32 0.0, %v1714
    %v1716 = vpop.f32.mrf.mxu0
    %v1717 = vadd.f32 0.0, %v1716
    %1718 = vdwg.mxu0
    %v1719 = vadd.f32 %v1431, %v1641
    %v1720 = vadd.f32 %v1433, %v1643
    %v1721 = vadd.f32 %v1435, %v1645
    %v1722 = vadd.f32 %v1437, %v1647
    %v1723 = vadd.f32 %v1441, %v1651
    %v1724 = vadd.f32 %v1443, %v1653
    %v1725 = vadd.f32 %v1445, %v1655
    %v1726 = vadd.f32 %v1447, %v1657
    %v1727 = vadd.f32 %v1451, %v1661
    %v1728 = vadd.f32 %v1453, %v1663
    %v1729 = vadd.f32 %v1455, %v1665
    %v1730 = vadd.f32 %v1457, %v1667
    %v1731 = vadd.f32 %v1461, %v1671
    %v1732 = vadd.f32 %v1463, %v1673
    %v1733 = vadd.f32 %v1465, %v1675
    %v1734 = vadd.f32 %v1467, %v1677
    %v1735 = vadd.f32 %v1471, %v1681
    %v1736 = vadd.f32 %v1473, %v1683
    %v1737 = vadd.f32 %v1475, %v1685
    %v1738 = vadd.f32 %v1477, %v1687
    %v1739 = vadd.f32 %v1481, %v1691
    %v1740 = vadd.f32 %v1483, %v1693
    %v1741 = vadd.f32 %v1485, %v1695
    %v1742 = vadd.f32 %v1487, %v1697
    %v1743 = vadd.f32 %v1491, %v1701
    %v1744 = vadd.f32 %v1493, %v1703
    %v1745 = vadd.f32 %v1495, %v1705
    %v1746 = vadd.f32 %v1497, %v1707
    %v1747 = vadd.f32 %v1501, %v1711
    %v1748 = vadd.f32 %v1503, %v1713
    %v1749 = vadd.f32 %v1505, %v1715
    %v1750 = vadd.f32 %v1507, %v1717
    %v1751 = vld [vmem:[%s6] sm:$0x3]
    %v1753 = vlaneseq
    %v1754 = vshrl.u32 %v1753, 7
    %v1755 = vsub.s32 0, %v1754
    %v1756 = vrot.slane %v1751, %v1755
    %v1757 = vlaneseq
    %v1758 = vshrl.u32 %v1757, 7
    %v1759 = vsub.s32 1, %v1758
    %v1760 = vrot.slane %v1751, %v1759
    %v1763 = vadd.f32 %v1719, %v1756
    %v1764 = vadd.f32 %v1720, %v1760
    %v1765 = vadd.f32 %v1721, %v1756
    %v1766 = vadd.f32 %v1722, %v1760
    %v1767 = vadd.f32 %v1723, %v1756
    %v1768 = vadd.f32 %v1724, %v1760
    %v1769 = vadd.f32 %v1725, %v1756
    %v1770 = vadd.f32 %v1726, %v1760
    %v1771 = vadd.f32 %v1727, %v1756
    %v1772 = vadd.f32 %v1728, %v1760
    %v1773 = vadd.f32 %v1729, %v1756
    %v1774 = vadd.f32 %v1730, %v1760
    %v1775 = vadd.f32 %v1731, %v1756
    %v1776 = vadd.f32 %v1732, %v1760
    %v1777 = vadd.f32 %v1733, %v1756
    %v1778 = vadd.f32 %v1734, %v1760
    %v1779 = vadd.f32 %v1735, %v1756
    %v1780 = vadd.f32 %v1736, %v1760
    %v1781 = vadd.f32 %v1737, %v1756
    %v1782 = vadd.f32 %v1738, %v1760
    %v1783 = vadd.f32 %v1739, %v1756
    %v1784 = vadd.f32 %v1740, %v1760
    %v1785 = vadd.f32 %v1741, %v1756
    %v1786 = vadd.f32 %v1742, %v1760
    %v1787 = vadd.f32 %v1743, %v1756
    %v1788 = vadd.f32 %v1744, %v1760
    %v1789 = vadd.f32 %v1745, %v1756
    %v1790 = vadd.f32 %v1746, %v1760
    %v1791 = vadd.f32 %v1747, %v1756
    %v1792 = vadd.f32 %v1748, %v1760
    %v1793 = vadd.f32 %v1749, %v1756
    %v1794 = vadd.f32 %v1750, %v1760
    %v1795 = vmax.f32 %v1763, 0.0
    %v1796 = vmax.f32 %v1764, 0.0
    %v1797 = vmax.f32 %v1765, 0.0
    %v1798 = vmax.f32 %v1766, 0.0
    %v1799 = vmax.f32 %v1767, 0.0
    %v1800 = vmax.f32 %v1768, 0.0
    %v1801 = vmax.f32 %v1769, 0.0
    %v1802 = vmax.f32 %v1770, 0.0
    %v1803 = vmax.f32 %v1771, 0.0
    %v1804 = vmax.f32 %v1772, 0.0
    %v1805 = vmax.f32 %v1773, 0.0
    %v1806 = vmax.f32 %v1774, 0.0
    %v1807 = vmax.f32 %v1775, 0.0
    %v1808 = vmax.f32 %v1776, 0.0
    %v1809 = vmax.f32 %v1777, 0.0
    %v1810 = vmax.f32 %v1778, 0.0
    %v1811 = vmax.f32 %v1779, 0.0
    %v1812 = vmax.f32 %v1780, 0.0
    %v1813 = vmax.f32 %v1781, 0.0
    %v1814 = vmax.f32 %v1782, 0.0
    %v1815 = vmax.f32 %v1783, 0.0
    %v1816 = vmax.f32 %v1784, 0.0
    %v1817 = vmax.f32 %v1785, 0.0
    %v1818 = vmax.f32 %v1786, 0.0
    %v1819 = vmax.f32 %v1787, 0.0
    %v1820 = vmax.f32 %v1788, 0.0
    %v1821 = vmax.f32 %v1789, 0.0
    %v1822 = vmax.f32 %v1790, 0.0
    %v1823 = vmax.f32 %v1791, 0.0
    %v1824 = vmax.f32 %v1792, 0.0
    %v1825 = vmax.f32 %v1793, 0.0
    %v1826 = vmax.f32 %v1794, 0.0
    %v1827 = vpack.c.bf16 %v1797, %v1795
    %v1828 = vpack.c.bf16 %v1798, %v1796
    %v1829 = vpack.c.bf16 %v1801, %v1799
    %v1830 = vpack.c.bf16 %v1802, %v1800
    %v1831 = vpack.c.bf16 %v1805, %v1803
    %v1832 = vpack.c.bf16 %v1806, %v1804
    %v1833 = vpack.c.bf16 %v1809, %v1807
    %v1834 = vpack.c.bf16 %v1810, %v1808
    %v1835 = vpack.c.bf16 %v1813, %v1811
    %v1836 = vpack.c.bf16 %v1814, %v1812
    %v1837 = vpack.c.bf16 %v1817, %v1815
    %v1838 = vpack.c.bf16 %v1818, %v1816
    %v1839 = vpack.c.bf16 %v1821, %v1819
    %v1840 = vpack.c.bf16 %v1822, %v1820
    %v1841 = vpack.c.bf16 %v1825, %v1823
    %v1842 = vpack.c.bf16 %v1826, %v1824
    %v1843 = vld [vmem:[#allocation11] sm:$0xff]
    %v1844 = vld [vmem:[#allocation11 + $0x8] sm:$0xff]
    %v1845 = vld [vmem:[#allocation11 + $0x10] sm:$0xff]
    %v1846 = vld [vmem:[#allocation11 + $0x18] sm:$0xff]
    %v1847 = vld [vmem:[#allocation11 + $0x20] sm:$0xff]
    %v1848 = vld [vmem:[#allocation11 + $0x28] sm:$0xff]
    %v1849 = vld [vmem:[#allocation11 + $0x30] sm:$0xff]
    %v1850 = vld [vmem:[#allocation11 + $0x38] sm:$0xff]
    %v1851 = vld [vmem:[#allocation11 + $0x40] sm:$0xff]
    %v1852 = vld [vmem:[#allocation11 + $0x48] sm:$0xff]
    %v1853 = vld [vmem:[#allocation11 + $0x50] sm:$0xff]
    %v1854 = vld [vmem:[#allocation11 + $0x58] sm:$0xff]
    %v1855 = vld [vmem:[#allocation11 + $0x60] sm:$0xff]
    %v1856 = vld [vmem:[#allocation11 + $0x68] sm:$0xff]
    %v1857 = vld [vmem:[#allocation11 + $0x70] sm:$0xff]
    %v1858 = vld [vmem:[#allocation11 + $0x78] sm:$0xff]
    %v1859 = vld [vmem:[#allocation11 + $0x80] sm:$0xff]
    %v1860 = vld [vmem:[#allocation11 + $0x88] sm:$0xff]
    %v1861 = vld [vmem:[#allocation11 + $0x90] sm:$0xff]
    %v1862 = vld [vmem:[#allocation11 + $0x98] sm:$0xff]
    %v1863 = vld [vmem:[#allocation11 + $0xa0] sm:$0xff]
    %v1864 = vld [vmem:[#allocation11 + $0xa8] sm:$0xff]
    %v1865 = vld [vmem:[#allocation11 + $0xb0] sm:$0xff]
    %v1866 = vld [vmem:[#allocation11 + $0xb8] sm:$0xff]
    %v1867 = vld [vmem:[#allocation11 + $0xc0] sm:$0xff]
    %v1868 = vld [vmem:[#allocation11 + $0xc8] sm:$0xff]
    %v1869 = vld [vmem:[#allocation11 + $0xd0] sm:$0xff]
    %v1870 = vld [vmem:[#allocation11 + $0xd8] sm:$0xff]
    %v1871 = vld [vmem:[#allocation11 + $0xe0] sm:$0xff]
    %v1872 = vld [vmem:[#allocation11 + $0xe8] sm:$0xff]
    %v1873 = vld [vmem:[#allocation11 + $0xf0] sm:$0xff]
    %v1874 = vld [vmem:[#allocation11 + $0xf8] sm:$0xff]
    %v1875 = vld [vmem:[#allocation11 + $0x100] sm:$0xff]
    %v1876 = vld [vmem:[#allocation11 + $0x108] sm:$0xff]
    %v1877 = vld [vmem:[#allocation11 + $0x110] sm:$0xff]
    %v1878 = vld [vmem:[#allocation11 + $0x118] sm:$0xff]
    %v1879 = vld [vmem:[#allocation11 + $0x120] sm:$0xff]
    %v1880 = vld [vmem:[#allocation11 + $0x128] sm:$0xff]
    %v1881 = vld [vmem:[#allocation11 + $0x130] sm:$0xff]
    %v1882 = vld [vmem:[#allocation11 + $0x138] sm:$0xff]
    %v1883 = vld [vmem:[#allocation11 + $0x140] sm:$0xff]
    %v1884 = vld [vmem:[#allocation11 + $0x148] sm:$0xff]
    %v1885 = vld [vmem:[#allocation11 + $0x150] sm:$0xff]
    %v1886 = vld [vmem:[#allocation11 + $0x158] sm:$0xff]
    %v1887 = vld [vmem:[#allocation11 + $0x160] sm:$0xff]
    %v1888 = vld [vmem:[#allocation11 + $0x168] sm:$0xff]
    %v1889 = vld [vmem:[#allocation11 + $0x170] sm:$0xff]
    %v1890 = vld [vmem:[#allocation11 + $0x178] sm:$0xff]
    %v1891 = vld [vmem:[#allocation11 + $0x180] sm:$0xff]
    %v1892 = vld [vmem:[#allocation11 + $0x188] sm:$0xff]
    %v1893 = vld [vmem:[#allocation11 + $0x190] sm:$0xff]
    %v1894 = vld [vmem:[#allocation11 + $0x198] sm:$0xff]
    %v1895 = vld [vmem:[#allocation11 + $0x1a0] sm:$0xff]
    %v1896 = vld [vmem:[#allocation11 + $0x1a8] sm:$0xff]
    %v1897 = vld [vmem:[#allocation11 + $0x1b0] sm:$0xff]
    %v1898 = vld [vmem:[#allocation11 + $0x1b8] sm:$0xff]
    %v1899 = vld [vmem:[#allocation11 + $0x1c0] sm:$0xff]
    %v1900 = vld [vmem:[#allocation11 + $0x1c8] sm:$0xff]
    %v1901 = vld [vmem:[#allocation11 + $0x1d0] sm:$0xff]
    %v1902 = vld [vmem:[#allocation11 + $0x1d8] sm:$0xff]
    %v1903 = vld [vmem:[#allocation11 + $0x1e0] sm:$0xff]
    %v1904 = vld [vmem:[#allocation11 + $0x1e8] sm:$0xff]
    %v1905 = vld [vmem:[#allocation11 + $0x1f0] sm:$0xff]
    %v1906 = vld [vmem:[#allocation11 + $0x1f8] sm:$0xff]
    %s1907 = scalar_lea.vmem [#allocation11], 512
    %v1908 = vld [vmem:[%s1907] sm:$0xff]
    %v1909 = vld [vmem:[%s1907 + $0x8] sm:$0xff]
    %v1910 = vld [vmem:[%s1907 + $0x10] sm:$0xff]
    %v1911 = vld [vmem:[%s1907 + $0x18] sm:$0xff]
    %v1912 = vld [vmem:[%s1907 + $0x20] sm:$0xff]
    %v1913 = vld [vmem:[%s1907 + $0x28] sm:$0xff]
    %v1914 = vld [vmem:[%s1907 + $0x30] sm:$0xff]
    %v1915 = vld [vmem:[%s1907 + $0x38] sm:$0xff]
    %v1916 = vld [vmem:[%s1907 + $0x40] sm:$0xff]
    %v1917 = vld [vmem:[%s1907 + $0x48] sm:$0xff]
    %v1918 = vld [vmem:[%s1907 + $0x50] sm:$0xff]
    %v1919 = vld [vmem:[%s1907 + $0x58] sm:$0xff]
    %v1920 = vld [vmem:[%s1907 + $0x60] sm:$0xff]
    %v1921 = vld [vmem:[%s1907 + $0x68] sm:$0xff]
    %v1922 = vld [vmem:[%s1907 + $0x70] sm:$0xff]
    %v1923 = vld [vmem:[%s1907 + $0x78] sm:$0xff]
    %v1924 = vld [vmem:[%s1907 + $0x80] sm:$0xff]
    %v1925 = vld [vmem:[%s1907 + $0x88] sm:$0xff]
    %v1926 = vld [vmem:[%s1907 + $0x90] sm:$0xff]
    %v1927 = vld [vmem:[%s1907 + $0x98] sm:$0xff]
    %v1928 = vld [vmem:[%s1907 + $0xa0] sm:$0xff]
    %v1929 = vld [vmem:[%s1907 + $0xa8] sm:$0xff]
    %v1930 = vld [vmem:[%s1907 + $0xb0] sm:$0xff]
    %v1931 = vld [vmem:[%s1907 + $0xb8] sm:$0xff]
    %v1932 = vld [vmem:[%s1907 + $0xc0] sm:$0xff]
    %v1933 = vld [vmem:[%s1907 + $0xc8] sm:$0xff]
    %v1934 = vld [vmem:[%s1907 + $0xd0] sm:$0xff]
    %v1935 = vld [vmem:[%s1907 + $0xd8] sm:$0xff]
    %v1936 = vld [vmem:[%s1907 + $0xe0] sm:$0xff]
    %v1937 = vld [vmem:[%s1907 + $0xe8] sm:$0xff]
    %v1938 = vld [vmem:[%s1907 + $0xf0] sm:$0xff]
    %v1939 = vld [vmem:[%s1907 + $0xf8] sm:$0xff]
    %v1940 = vld [vmem:[%s1907 + $0x100] sm:$0xff]
    %v1941 = vld [vmem:[%s1907 + $0x108] sm:$0xff]
    %v1942 = vld [vmem:[%s1907 + $0x110] sm:$0xff]
    %v1943 = vld [vmem:[%s1907 + $0x118] sm:$0xff]
    %v1944 = vld [vmem:[%s1907 + $0x120] sm:$0xff]
    %v1945 = vld [vmem:[%s1907 + $0x128] sm:$0xff]
    %v1946 = vld [vmem:[%s1907 + $0x130] sm:$0xff]
    %v1947 = vld [vmem:[%s1907 + $0x138] sm:$0xff]
    %v1948 = vld [vmem:[%s1907 + $0x140] sm:$0xff]
    %v1949 = vld [vmem:[%s1907 + $0x148] sm:$0xff]
    %v1950 = vld [vmem:[%s1907 + $0x150] sm:$0xff]
    %v1951 = vld [vmem:[%s1907 + $0x158] sm:$0xff]
    %v1952 = vld [vmem:[%s1907 + $0x160] sm:$0xff]
    %v1953 = vld [vmem:[%s1907 + $0x168] sm:$0xff]
    %v1954 = vld [vmem:[%s1907 + $0x170] sm:$0xff]
    %v1955 = vld [vmem:[%s1907 + $0x178] sm:$0xff]
    %v1956 = vld [vmem:[%s1907 + $0x180] sm:$0xff]
    %v1957 = vld [vmem:[%s1907 + $0x188] sm:$0xff]
    %v1958 = vld [vmem:[%s1907 + $0x190] sm:$0xff]
    %v1959 = vld [vmem:[%s1907 + $0x198] sm:$0xff]
    %v1960 = vld [vmem:[%s1907 + $0x1a0] sm:$0xff]
    %v1961 = vld [vmem:[%s1907 + $0x1a8] sm:$0xff]
    %v1962 = vld [vmem:[%s1907 + $0x1b0] sm:$0xff]
    %v1963 = vld [vmem:[%s1907 + $0x1b8] sm:$0xff]
    %v1964 = vld [vmem:[%s1907 + $0x1c0] sm:$0xff]
    %v1965 = vld [vmem:[%s1907 + $0x1c8] sm:$0xff]
    %v1966 = vld [vmem:[%s1907 + $0x1d0] sm:$0xff]
    %v1967 = vld [vmem:[%s1907 + $0x1d8] sm:$0xff]
    %v1968 = vld [vmem:[%s1907 + $0x1e0] sm:$0xff]
    %v1969 = vld [vmem:[%s1907 + $0x1e8] sm:$0xff]
    %v1970 = vld [vmem:[%s1907 + $0x1f0] sm:$0xff]
    %v1971 = vld [vmem:[%s1907 + $0x1f8] sm:$0xff]
    %v2036 = vunpack.c.l.b16 %v1908
    %v2037 = vunpack.c.h.b16 %v1908
    %v2038 = vunpack.c.l.b16 %v1909
    %v2039 = vunpack.c.h.b16 %v1909
    %v2040 = vunpack.c.l.b16 %v1910
    %v2041 = vunpack.c.h.b16 %v1910
    %v2042 = vunpack.c.l.b16 %v1911
    %v2043 = vunpack.c.h.b16 %v1911
    %v2044 = vunpack.c.l.b16 %v1912
    %v2045 = vunpack.c.h.b16 %v1912
    %v2046 = vunpack.c.l.b16 %v1913
    %v2047 = vunpack.c.h.b16 %v1913
    %v2048 = vunpack.c.l.b16 %v1914
    %v2049 = vunpack.c.h.b16 %v1914
    %v2050 = vunpack.c.l.b16 %v1915
    %v2051 = vunpack.c.h.b16 %v1915
    %v2052 = vunpack.c.l.b16 %v1916
    %v2053 = vunpack.c.h.b16 %v1916
    %v2054 = vunpack.c.l.b16 %v1917
    %v2055 = vunpack.c.h.b16 %v1917
    %v2056 = vunpack.c.l.b16 %v1918
    %v2057 = vunpack.c.h.b16 %v1918
    %v2058 = vunpack.c.l.b16 %v1919
    %v2059 = vunpack.c.h.b16 %v1919
    %v2060 = vunpack.c.l.b16 %v1920
    %v2061 = vunpack.c.h.b16 %v1920
    %v2062 = vunpack.c.l.b16 %v1921
    %v2063 = vunpack.c.h.b16 %v1921
    %v2064 = vunpack.c.l.b16 %v1922
    %v2065 = vunpack.c.h.b16 %v1922
    %v2066 = vunpack.c.l.b16 %v1923
    %v2067 = vunpack.c.h.b16 %v1923
    %v2068 = vunpack.c.l.b16 %v1924
    %v2069 = vunpack.c.h.b16 %v1924
    %v2070 = vunpack.c.l.b16 %v1925
    %v2071 = vunpack.c.h.b16 %v1925
    %v2072 = vunpack.c.l.b16 %v1926
    %v2073 = vunpack.c.h.b16 %v1926
    %v2074 = vunpack.c.l.b16 %v1927
    %v2075 = vunpack.c.h.b16 %v1927
    %v2076 = vunpack.c.l.b16 %v1928
    %v2077 = vunpack.c.h.b16 %v1928
    %v2078 = vunpack.c.l.b16 %v1929
    %v2079 = vunpack.c.h.b16 %v1929
    %v2080 = vunpack.c.l.b16 %v1930
    %v2081 = vunpack.c.h.b16 %v1930
    %v2082 = vunpack.c.l.b16 %v1931
    %v2083 = vunpack.c.h.b16 %v1931
    %v2084 = vunpack.c.l.b16 %v1932
    %v2085 = vunpack.c.h.b16 %v1932
    %v2086 = vunpack.c.l.b16 %v1933
    %v2087 = vunpack.c.h.b16 %v1933
    %v2088 = vunpack.c.l.b16 %v1934
    %v2089 = vunpack.c.h.b16 %v1934
    %v2090 = vunpack.c.l.b16 %v1935
    %v2091 = vunpack.c.h.b16 %v1935
    %v2092 = vunpack.c.l.b16 %v1936
    %v2093 = vunpack.c.h.b16 %v1936
    %v2094 = vunpack.c.l.b16 %v1937
    %v2095 = vunpack.c.h.b16 %v1937
    %v2096 = vunpack.c.l.b16 %v1938
    %v2097 = vunpack.c.h.b16 %v1938
    %v2098 = vunpack.c.l.b16 %v1939
    %v2099 = vunpack.c.h.b16 %v1939
    %v2100 = vunpack.c.l.b16 %v1940
    %v2101 = vunpack.c.h.b16 %v1940
    %v2102 = vunpack.c.l.b16 %v1941
    %v2103 = vunpack.c.h.b16 %v1941
    %v2104 = vunpack.c.l.b16 %v1942
    %v2105 = vunpack.c.h.b16 %v1942
    %v2106 = vunpack.c.l.b16 %v1943
    %v2107 = vunpack.c.h.b16 %v1943
    %v2108 = vunpack.c.l.b16 %v1944
    %v2109 = vunpack.c.h.b16 %v1944
    %v2110 = vunpack.c.l.b16 %v1945
    %v2111 = vunpack.c.h.b16 %v1945
    %v2112 = vunpack.c.l.b16 %v1946
    %v2113 = vunpack.c.h.b16 %v1946
    %v2114 = vunpack.c.l.b16 %v1947
    %v2115 = vunpack.c.h.b16 %v1947
    %v2116 = vunpack.c.l.b16 %v1948
    %v2117 = vunpack.c.h.b16 %v1948
    %v2118 = vunpack.c.l.b16 %v1949
    %v2119 = vunpack.c.h.b16 %v1949
    %v2120 = vunpack.c.l.b16 %v1950
    %v2121 = vunpack.c.h.b16 %v1950
    %v2122 = vunpack.c.l.b16 %v1951
    %v2123 = vunpack.c.h.b16 %v1951
    %v2124 = vunpack.c.l.b16 %v1952
    %v2125 = vunpack.c.h.b16 %v1952
    %v2126 = vunpack.c.l.b16 %v1953
    %v2127 = vunpack.c.h.b16 %v1953
    %v2128 = vunpack.c.l.b16 %v1954
    %v2129 = vunpack.c.h.b16 %v1954
    %v2130 = vunpack.c.l.b16 %v1955
    %v2131 = vunpack.c.h.b16 %v1955
    %v2132 = vunpack.c.l.b16 %v1956
    %v2133 = vunpack.c.h.b16 %v1956
    %v2134 = vunpack.c.l.b16 %v1957
    %v2135 = vunpack.c.h.b16 %v1957
    %v2136 = vunpack.c.l.b16 %v1958
    %v2137 = vunpack.c.h.b16 %v1958
    %v2138 = vunpack.c.l.b16 %v1959
    %v2139 = vunpack.c.h.b16 %v1959
    %v2140 = vunpack.c.l.b16 %v1960
    %v2141 = vunpack.c.h.b16 %v1960
    %v2142 = vunpack.c.l.b16 %v1961
    %v2143 = vunpack.c.h.b16 %v1961
    %v2144 = vunpack.c.l.b16 %v1962
    %v2145 = vunpack.c.h.b16 %v1962
    %v2146 = vunpack.c.l.b16 %v1963
    %v2147 = vunpack.c.h.b16 %v1963
    %v2148 = vunpack.c.l.b16 %v1964
    %v2149 = vunpack.c.h.b16 %v1964
    %v2150 = vunpack.c.l.b16 %v1965
    %v2151 = vunpack.c.h.b16 %v1965
    %v2152 = vunpack.c.l.b16 %v1966
    %v2153 = vunpack.c.h.b16 %v1966
    %v2154 = vunpack.c.l.b16 %v1967
    %v2155 = vunpack.c.h.b16 %v1967
    %v2156 = vunpack.c.l.b16 %v1968
    %v2157 = vunpack.c.h.b16 %v1968
    %v2158 = vunpack.c.l.b16 %v1969
    %v2159 = vunpack.c.h.b16 %v1969
    %v2160 = vunpack.c.l.b16 %v1970
    %v2161 = vunpack.c.h.b16 %v1970
    %v2162 = vunpack.c.l.b16 %v1971
    %v2163 = vunpack.c.h.b16 %v1971
    %v2164 = vpack.c.b16 %v2040, %v2036
    %v2165 = vpack.c.b16 %v2041, %v2037
    %v2166 = vpack.c.b16 %v2042, %v2038
    %v2167 = vpack.c.b16 %v2043, %v2039
    %v2168 = vpack.c.b16 %v2048, %v2044
    %v2169 = vpack.c.b16 %v2049, %v2045
    %v2170 = vpack.c.b16 %v2050, %v2046
    %v2171 = vpack.c.b16 %v2051, %v2047
    %v2172 = vpack.c.b16 %v2056, %v2052
    %v2173 = vpack.c.b16 %v2057, %v2053
    %v2174 = vpack.c.b16 %v2058, %v2054
    %v2175 = vpack.c.b16 %v2059, %v2055
    %v2176 = vpack.c.b16 %v2064, %v2060
    %v2177 = vpack.c.b16 %v2065, %v2061
    %v2178 = vpack.c.b16 %v2066, %v2062
    %v2179 = vpack.c.b16 %v2067, %v2063
    %v2180 = vpack.c.b16 %v2072, %v2068
    %v2181 = vpack.c.b16 %v2073, %v2069
    %v2182 = vpack.c.b16 %v2074, %v2070
    %v2183 = vpack.c.b16 %v2075, %v2071
    %v2184 = vpack.c.b16 %v2080, %v2076
    %v2185 = vpack.c.b16 %v2081, %v2077
    %v2186 = vpack.c.b16 %v2082, %v2078
    %v2187 = vpack.c.b16 %v2083, %v2079
    %v2188 = vpack.c.b16 %v2088, %v2084
    %v2189 = vpack.c.b16 %v2089, %v2085
    %v2190 = vpack.c.b16 %v2090, %v2086
    %v2191 = vpack.c.b16 %v2091, %v2087
    %v2192 = vpack.c.b16 %v2096, %v2092
    %v2193 = vpack.c.b16 %v2097, %v2093
    %v2194 = vpack.c.b16 %v2098, %v2094
    %v2195 = vpack.c.b16 %v2099, %v2095
    %v2196 = vpack.c.b16 %v2104, %v2100
    %v2197 = vpack.c.b16 %v2105, %v2101
    %v2198 = vpack.c.b16 %v2106, %v2102
    %v2199 = vpack.c.b16 %v2107, %v2103
    %v2200 = vpack.c.b16 %v2112, %v2108
    %v2201 = vpack.c.b16 %v2113, %v2109
    %v2202 = vpack.c.b16 %v2114, %v2110
    %v2203 = vpack.c.b16 %v2115, %v2111
    %v2204 = vpack.c.b16 %v2120, %v2116
    %v2205 = vpack.c.b16 %v2121, %v2117
    %v2206 = vpack.c.b16 %v2122, %v2118
    %v2207 = vpack.c.b16 %v2123, %v2119
    %v2208 = vpack.c.b16 %v2128, %v2124
    %v2209 = vpack.c.b16 %v2129, %v2125
    %v2210 = vpack.c.b16 %v2130, %v2126
    %v2211 = vpack.c.b16 %v2131, %v2127
    %v2212 = vpack.c.b16 %v2136, %v2132
    %v2213 = vpack.c.b16 %v2137, %v2133
    %v2214 = vpack.c.b16 %v2138, %v2134
    %v2215 = vpack.c.b16 %v2139, %v2135
    %v2216 = vpack.c.b16 %v2144, %v2140
    %v2217 = vpack.c.b16 %v2145, %v2141
    %v2218 = vpack.c.b16 %v2146, %v2142
    %v2219 = vpack.c.b16 %v2147, %v2143
    %v2220 = vpack.c.b16 %v2152, %v2148
    %v2221 = vpack.c.b16 %v2153, %v2149
    %v2222 = vpack.c.b16 %v2154, %v2150
    %v2223 = vpack.c.b16 %v2155, %v2151
    %v2224 = vpack.c.b16 %v2160, %v2156
    %v2225 = vpack.c.b16 %v2161, %v2157
    %v2226 = vpack.c.b16 %v2162, %v2158
    %v2227 = vpack.c.b16 %v2163, %v2159
    %2292 = vmatprep.subr.bf16.mxu0 %v2193
    %2293 = vmatpush1.bf16.msra.mxu0 %v2192
    %2294 = vmatprep.subr.bf16.mxu0 %v2189
    %2295 = vmatpush1.bf16.msra.mxu0 %v2188
    %2296 = vmatprep.subr.bf16.mxu0 %v2185
    %2297 = vmatpush1.bf16.msra.mxu0 %v2184
    %2298 = vmatprep.subr.bf16.mxu0 %v2181
    %2299 = vmatpush1.bf16.msra.mxu0 %v2180
    %2300 = vmatprep.subr.bf16.mxu0 %v2177
    %2301 = vmatpush1.bf16.msra.mxu0 %v2176
    %2302 = vmatprep.subr.bf16.mxu0 %v2173
    %2303 = vmatpush1.bf16.msra.mxu0 %v2172
    %2304 = vmatprep.subr.bf16.mxu0 %v2169
    %2305 = vmatpush1.bf16.msra.mxu0 %v2168
    %2306 = vmatprep.subr.bf16.mxu0 %v2165
    %2307 = vmatpush1.bf16.msra.mxu0 %v2164
    %2308 = vmatprep.subr.bf16.mxu0 %v2225
    %2309 = vmatpush2.bf16.msra.mxu0 %v2224
    %2310 = vmatprep.subr.bf16.mxu0 %v2221
    %2311 = vmatpush2.bf16.msra.mxu0 %v2220
    %2312 = vmatprep.subr.bf16.mxu0 %v2217
    %2313 = vmatpush2.bf16.msra.mxu0 %v2216
    %2314 = vmatprep.subr.bf16.mxu0 %v2213
    %2315 = vmatpush2.bf16.msra.mxu0 %v2212
    %2316 = vmatprep.subr.bf16.mxu0 %v2209
    %2317 = vmatpush2.bf16.msra.mxu0 %v2208
    %2318 = vmatprep.subr.bf16.mxu0 %v2205
    %2319 = vmatpush2.bf16.msra.mxu0 %v2204
    %2320 = vmatprep.subr.bf16.mxu0 %v2201
    %2321 = vmatpush2.bf16.msra.mxu0 %v2200
    %2322 = vmatprep.subr.bf16.mxu0 %v2197
    %2323 = vmatpush2.bf16.msra.mxu0 %v2196
    %2324 = vmatprep.mubr.bf16.mxu0 %v1830
    %2325 = vmatmul.mubr.bf16.gmra.mxu0 %v1829
    %v2326 = vpop.f32.mrf.mxu0
    %v2327 = vadd.f32 0.0, %v2326
    %v2328 = vpop.f32.mrf.mxu0
    %v2329 = vadd.f32 0.0, %v2328
    %v2330 = vpop.f32.mrf.mxu0
    %v2331 = vadd.f32 0.0, %v2330
    %v2332 = vpop.f32.mrf.mxu0
    %v2333 = vadd.f32 0.0, %v2332
    %2334 = vmatprep.mubr.bf16.mxu0 %v1832
    %2335 = vmatmul.mubr.bf16.gmra.mxu0 %v1831
    %v2336 = vpop.f32.mrf.mxu0
    %v2337 = vadd.f32 0.0, %v2336
    %v2338 = vpop.f32.mrf.mxu0
    %v2339 = vadd.f32 0.0, %v2338
    %v2340 = vpop.f32.mrf.mxu0
    %v2341 = vadd.f32 0.0, %v2340
    %v2342 = vpop.f32.mrf.mxu0
    %v2343 = vadd.f32 0.0, %v2342
    %2344 = vmatprep.mubr.bf16.mxu0 %v1834
    %2345 = vmatmul.mubr.bf16.gmra.mxu0 %v1833
    %v2346 = vpop.f32.mrf.mxu0
    %v2347 = vadd.f32 0.0, %v2346
    %v2348 = vpop.f32.mrf.mxu0
    %v2349 = vadd.f32 0.0, %v2348
    %v2350 = vpop.f32.mrf.mxu0
    %v2351 = vadd.f32 0.0, %v2350
    %v2352 = vpop.f32.mrf.mxu0
    %v2353 = vadd.f32 0.0, %v2352
    %2354 = vmatprep.mubr.bf16.mxu0 %v1836
    %2355 = vmatmul.mubr.bf16.gmra.mxu0 %v1835
    %v2356 = vpop.f32.mrf.mxu0
    %v2357 = vadd.f32 0.0, %v2356
    %v2358 = vpop.f32.mrf.mxu0
    %v2359 = vadd.f32 0.0, %v2358
    %v2360 = vpop.f32.mrf.mxu0
    %v2361 = vadd.f32 0.0, %v2360
    %v2362 = vpop.f32.mrf.mxu0
    %v2363 = vadd.f32 0.0, %v2362
    %2364 = vmatprep.mubr.bf16.mxu0 %v1838
    %2365 = vmatmul.mubr.bf16.gmra.mxu0 %v1837
    %v2366 = vpop.f32.mrf.mxu0
    %v2367 = vadd.f32 0.0, %v2366
    %v2368 = vpop.f32.mrf.mxu0
    %v2369 = vadd.f32 0.0, %v2368
    %v2370 = vpop.f32.mrf.mxu0
    %v2371 = vadd.f32 0.0, %v2370
    %v2372 = vpop.f32.mrf.mxu0
    %v2373 = vadd.f32 0.0, %v2372
    %2374 = vmatprep.mubr.bf16.mxu0 %v1840
    %2375 = vmatmul.mubr.bf16.gmra.mxu0 %v1839
    %v2376 = vpop.f32.mrf.mxu0
    %v2377 = vadd.f32 0.0, %v2376
    %v2378 = vpop.f32.mrf.mxu0
    %v2379 = vadd.f32 0.0, %v2378
    %v2380 = vpop.f32.mrf.mxu0
    %v2381 = vadd.f32 0.0, %v2380
    %v2382 = vpop.f32.mrf.mxu0
    %v2383 = vadd.f32 0.0, %v2382
    %2384 = vdwg.mxu0
    %2385 = vmatprep.subr.bf16.mxu0 %v2195
    %2386 = vmatpush1.bf16.msra.mxu0 %v2194
    %2387 = vmatprep.subr.bf16.mxu0 %v2191
    %2388 = vmatpush1.bf16.msra.mxu0 %v2190
    %2389 = vmatprep.subr.bf16.mxu0 %v2187
    %2390 = vmatpush1.bf16.msra.mxu0 %v2186
    %2391 = vmatprep.subr.bf16.mxu0 %v2183
    %2392 = vmatpush1.bf16.msra.mxu0 %v2182
    %2393 = vmatprep.subr.bf16.mxu0 %v2179
    %2394 = vmatpush1.bf16.msra.mxu0 %v2178
    %2395 = vmatprep.subr.bf16.mxu0 %v2175
    %2396 = vmatpush1.bf16.msra.mxu0 %v2174
    %2397 = vmatprep.subr.bf16.mxu0 %v2171
    %2398 = vmatpush1.bf16.msra.mxu0 %v2170
    %2399 = vmatprep.subr.bf16.mxu0 %v2167
    %2400 = vmatpush1.bf16.msra.mxu0 %v2166
    %2401 = vmatprep.subr.bf16.mxu0 %v2227
    %2402 = vmatpush2.bf16.msra.mxu0 %v2226
    %2403 = vmatprep.subr.bf16.mxu0 %v2223
    %2404 = vmatpush2.bf16.msra.mxu0 %v2222
    %2405 = vmatprep.subr.bf16.mxu0 %v2219
    %2406 = vmatpush2.bf16.msra.mxu0 %v2218
    %2407 = vmatprep.subr.bf16.mxu0 %v2215
    %2408 = vmatpush2.bf16.msra.mxu0 %v2214
    %2409 = vmatprep.subr.bf16.mxu0 %v2211
    %2410 = vmatpush2.bf16.msra.mxu0 %v2210
    %2411 = vmatprep.subr.bf16.mxu0 %v2207
    %2412 = vmatpush2.bf16.msra.mxu0 %v2206
    %2413 = vmatprep.subr.bf16.mxu0 %v2203
    %2414 = vmatpush2.bf16.msra.mxu0 %v2202
    %2415 = vmatprep.subr.bf16.mxu0 %v2199
    %2416 = vmatpush2.bf16.msra.mxu0 %v2198
    %2417 = vmatprep.mubr.bf16.mxu0 %v1830
    %2418 = vmatmul.mubr.bf16.gmra.mxu0 %v1829
    %v2419 = vpop.f32.mrf.mxu0
    %v2420 = vadd.f32 0.0, %v2419
    %v2421 = vpop.f32.mrf.mxu0
    %v2422 = vadd.f32 0.0, %v2421
    %v2423 = vpop.f32.mrf.mxu0
    %v2424 = vadd.f32 0.0, %v2423
    %v2425 = vpop.f32.mrf.mxu0
    %v2426 = vadd.f32 0.0, %v2425
    %2427 = vmatprep.mubr.bf16.mxu0 %v1832
    %2428 = vmatmul.mubr.bf16.gmra.mxu0 %v1831
    %v2429 = vpop.f32.mrf.mxu0
    %v2430 = vadd.f32 0.0, %v2429
    %v2431 = vpop.f32.mrf.mxu0
    %v2432 = vadd.f32 0.0, %v2431
    %v2433 = vpop.f32.mrf.mxu0
    %v2434 = vadd.f32 0.0, %v2433
    %v2435 = vpop.f32.mrf.mxu0
    %v2436 = vadd.f32 0.0, %v2435
    %2437 = vmatprep.mubr.bf16.mxu0 %v1834
    %2438 = vmatmul.mubr.bf16.gmra.mxu0 %v1833
    %v2439 = vpop.f32.mrf.mxu0
    %v2440 = vadd.f32 0.0, %v2439
    %v2441 = vpop.f32.mrf.mxu0
    %v2442 = vadd.f32 0.0, %v2441
    %v2443 = vpop.f32.mrf.mxu0
    %v2444 = vadd.f32 0.0, %v2443
    %v2445 = vpop.f32.mrf.mxu0
    %v2446 = vadd.f32 0.0, %v2445
    %2447 = vmatprep.mubr.bf16.mxu0 %v1836
    %2448 = vmatmul.mubr.bf16.gmra.mxu0 %v1835
    %v2449 = vpop.f32.mrf.mxu0
    %v2450 = vadd.f32 0.0, %v2449
    %v2451 = vpop.f32.mrf.mxu0
    %v2452 = vadd.f32 0.0, %v2451
    %v2453 = vpop.f32.mrf.mxu0
    %v2454 = vadd.f32 0.0, %v2453
    %v2455 = vpop.f32.mrf.mxu0
    %v2456 = vadd.f32 0.0, %v2455
    %2457 = vmatprep.mubr.bf16.mxu0 %v1838
    %2458 = vmatmul.mubr.bf16.gmra.mxu0 %v1837
    %v2459 = vpop.f32.mrf.mxu0
    %v2460 = vadd.f32 0.0, %v2459
    %v2461 = vpop.f32.mrf.mxu0
    %v2462 = vadd.f32 0.0, %v2461
    %v2463 = vpop.f32.mrf.mxu0
    %v2464 = vadd.f32 0.0, %v2463
    %v2465 = vpop.f32.mrf.mxu0
    %v2466 = vadd.f32 0.0, %v2465
    %2467 = vmatprep.mubr.bf16.mxu0 %v1840
    %2468 = vmatmul.mubr.bf16.gmra.mxu0 %v1839
    %v2469 = vpop.f32.mrf.mxu0
    %v2470 = vadd.f32 0.0, %v2469
    %v2471 = vpop.f32.mrf.mxu0
    %v2472 = vadd.f32 0.0, %v2471
    %v2473 = vpop.f32.mrf.mxu0
    %v2474 = vadd.f32 0.0, %v2473
    %v2475 = vpop.f32.mrf.mxu0
    %v2476 = vadd.f32 0.0, %v2475
    %2477 = vdwg.mxu0
    %v2542 = vunpack.c.l.b16 %v1843
    %v2543 = vunpack.c.h.b16 %v1843
    %v2544 = vunpack.c.l.b16 %v1844
    %v2545 = vunpack.c.h.b16 %v1844
    %v2546 = vunpack.c.l.b16 %v1845
    %v2547 = vunpack.c.h.b16 %v1845
    %v2548 = vunpack.c.l.b16 %v1846
    %v2549 = vunpack.c.h.b16 %v1846
    %v2550 = vunpack.c.l.b16 %v1847
    %v2551 = vunpack.c.h.b16 %v1847
    %v2552 = vunpack.c.l.b16 %v1848
    %v2553 = vunpack.c.h.b16 %v1848
    %v2554 = vunpack.c.l.b16 %v1849
    %v2555 = vunpack.c.h.b16 %v1849
    %v2556 = vunpack.c.l.b16 %v1850
    %v2557 = vunpack.c.h.b16 %v1850
    %v2558 = vunpack.c.l.b16 %v1851
    %v2559 = vunpack.c.h.b16 %v1851
    %v2560 = vunpack.c.l.b16 %v1852
    %v2561 = vunpack.c.h.b16 %v1852
    %v2562 = vunpack.c.l.b16 %v1853
    %v2563 = vunpack.c.h.b16 %v1853
    %v2564 = vunpack.c.l.b16 %v1854
    %v2565 = vunpack.c.h.b16 %v1854
    %v2566 = vunpack.c.l.b16 %v1855
    %v2567 = vunpack.c.h.b16 %v1855
    %v2568 = vunpack.c.l.b16 %v1856
    %v2569 = vunpack.c.h.b16 %v1856
    %v2570 = vunpack.c.l.b16 %v1857
    %v2571 = vunpack.c.h.b16 %v1857
    %v2572 = vunpack.c.l.b16 %v1858
    %v2573 = vunpack.c.h.b16 %v1858
    %v2574 = vunpack.c.l.b16 %v1859
    %v2575 = vunpack.c.h.b16 %v1859
    %v2576 = vunpack.c.l.b16 %v1860
    %v2577 = vunpack.c.h.b16 %v1860
    %v2578 = vunpack.c.l.b16 %v1861
    %v2579 = vunpack.c.h.b16 %v1861
    %v2580 = vunpack.c.l.b16 %v1862
    %v2581 = vunpack.c.h.b16 %v1862
    %v2582 = vunpack.c.l.b16 %v1863
    %v2583 = vunpack.c.h.b16 %v1863
    %v2584 = vunpack.c.l.b16 %v1864
    %v2585 = vunpack.c.h.b16 %v1864
    %v2586 = vunpack.c.l.b16 %v1865
    %v2587 = vunpack.c.h.b16 %v1865
    %v2588 = vunpack.c.l.b16 %v1866
    %v2589 = vunpack.c.h.b16 %v1866
    %v2590 = vunpack.c.l.b16 %v1867
    %v2591 = vunpack.c.h.b16 %v1867
    %v2592 = vunpack.c.l.b16 %v1868
    %v2593 = vunpack.c.h.b16 %v1868
    %v2594 = vunpack.c.l.b16 %v1869
    %v2595 = vunpack.c.h.b16 %v1869
    %v2596 = vunpack.c.l.b16 %v1870
    %v2597 = vunpack.c.h.b16 %v1870
    %v2598 = vunpack.c.l.b16 %v1871
    %v2599 = vunpack.c.h.b16 %v1871
    %v2600 = vunpack.c.l.b16 %v1872
    %v2601 = vunpack.c.h.b16 %v1872
    %v2602 = vunpack.c.l.b16 %v1873
    %v2603 = vunpack.c.h.b16 %v1873
    %v2604 = vunpack.c.l.b16 %v1874
    %v2605 = vunpack.c.h.b16 %v1874
    %v2606 = vunpack.c.l.b16 %v1875
    %v2607 = vunpack.c.h.b16 %v1875
    %v2608 = vunpack.c.l.b16 %v1876
    %v2609 = vunpack.c.h.b16 %v1876
    %v2610 = vunpack.c.l.b16 %v1877
    %v2611 = vunpack.c.h.b16 %v1877
    %v2612 = vunpack.c.l.b16 %v1878
    %v2613 = vunpack.c.h.b16 %v1878
    %v2614 = vunpack.c.l.b16 %v1879
    %v2615 = vunpack.c.h.b16 %v1879
    %v2616 = vunpack.c.l.b16 %v1880
    %v2617 = vunpack.c.h.b16 %v1880
    %v2618 = vunpack.c.l.b16 %v1881
    %v2619 = vunpack.c.h.b16 %v1881
    %v2620 = vunpack.c.l.b16 %v1882
    %v2621 = vunpack.c.h.b16 %v1882
    %v2622 = vunpack.c.l.b16 %v1883
    %v2623 = vunpack.c.h.b16 %v1883
    %v2624 = vunpack.c.l.b16 %v1884
    %v2625 = vunpack.c.h.b16 %v1884
    %v2626 = vunpack.c.l.b16 %v1885
    %v2627 = vunpack.c.h.b16 %v1885
    %v2628 = vunpack.c.l.b16 %v1886
    %v2629 = vunpack.c.h.b16 %v1886
    %v2630 = vunpack.c.l.b16 %v1887
    %v2631 = vunpack.c.h.b16 %v1887
    %v2632 = vunpack.c.l.b16 %v1888
    %v2633 = vunpack.c.h.b16 %v1888
    %v2634 = vunpack.c.l.b16 %v1889
    %v2635 = vunpack.c.h.b16 %v1889
    %v2636 = vunpack.c.l.b16 %v1890
    %v2637 = vunpack.c.h.b16 %v1890
    %v2638 = vunpack.c.l.b16 %v1891
    %v2639 = vunpack.c.h.b16 %v1891
    %v2640 = vunpack.c.l.b16 %v1892
    %v2641 = vunpack.c.h.b16 %v1892
    %v2642 = vunpack.c.l.b16 %v1893
    %v2643 = vunpack.c.h.b16 %v1893
    %v2644 = vunpack.c.l.b16 %v1894
    %v2645 = vunpack.c.h.b16 %v1894
    %v2646 = vunpack.c.l.b16 %v1895
    %v2647 = vunpack.c.h.b16 %v1895
    %v2648 = vunpack.c.l.b16 %v1896
    %v2649 = vunpack.c.h.b16 %v1896
    %v2650 = vunpack.c.l.b16 %v1897
    %v2651 = vunpack.c.h.b16 %v1897
    %v2652 = vunpack.c.l.b16 %v1898
    %v2653 = vunpack.c.h.b16 %v1898
    %v2654 = vunpack.c.l.b16 %v1899
    %v2655 = vunpack.c.h.b16 %v1899
    %v2656 = vunpack.c.l.b16 %v1900
    %v2657 = vunpack.c.h.b16 %v1900
    %v2658 = vunpack.c.l.b16 %v1901
    %v2659 = vunpack.c.h.b16 %v1901
    %v2660 = vunpack.c.l.b16 %v1902
    %v2661 = vunpack.c.h.b16 %v1902
    %v2662 = vunpack.c.l.b16 %v1903
    %v2663 = vunpack.c.h.b16 %v1903
    %v2664 = vunpack.c.l.b16 %v1904
    %v2665 = vunpack.c.h.b16 %v1904
    %v2666 = vunpack.c.l.b16 %v1905
    %v2667 = vunpack.c.h.b16 %v1905
    %v2668 = vunpack.c.l.b16 %v1906
    %v2669 = vunpack.c.h.b16 %v1906
    %v2670 = vpack.c.b16 %v2546, %v2542
    %v2671 = vpack.c.b16 %v2547, %v2543
    %v2672 = vpack.c.b16 %v2548, %v2544
    %v2673 = vpack.c.b16 %v2549, %v2545
    %v2674 = vpack.c.b16 %v2554, %v2550
    %v2675 = vpack.c.b16 %v2555, %v2551
    %v2676 = vpack.c.b16 %v2556, %v2552
    %v2677 = vpack.c.b16 %v2557, %v2553
    %v2678 = vpack.c.b16 %v2562, %v2558
    %v2679 = vpack.c.b16 %v2563, %v2559
    %v2680 = vpack.c.b16 %v2564, %v2560
    %v2681 = vpack.c.b16 %v2565, %v2561
    %v2682 = vpack.c.b16 %v2570, %v2566
    %v2683 = vpack.c.b16 %v2571, %v2567
    %v2684 = vpack.c.b16 %v2572, %v2568
    %v2685 = vpack.c.b16 %v2573, %v2569
    %v2686 = vpack.c.b16 %v2578, %v2574
    %v2687 = vpack.c.b16 %v2579, %v2575
    %v2688 = vpack.c.b16 %v2580, %v2576
    %v2689 = vpack.c.b16 %v2581, %v2577
    %v2690 = vpack.c.b16 %v2586, %v2582
    %v2691 = vpack.c.b16 %v2587, %v2583
    %v2692 = vpack.c.b16 %v2588, %v2584
    %v2693 = vpack.c.b16 %v2589, %v2585
    %v2694 = vpack.c.b16 %v2594, %v2590
    %v2695 = vpack.c.b16 %v2595, %v2591
    %v2696 = vpack.c.b16 %v2596, %v2592
    %v2697 = vpack.c.b16 %v2597, %v2593
    %v2698 = vpack.c.b16 %v2602, %v2598
    %v2699 = vpack.c.b16 %v2603, %v2599
    %v2700 = vpack.c.b16 %v2604, %v2600
    %v2701 = vpack.c.b16 %v2605, %v2601
    %v2702 = vpack.c.b16 %v2610, %v2606
    %v2703 = vpack.c.b16 %v2611, %v2607
    %v2704 = vpack.c.b16 %v2612, %v2608
    %v2705 = vpack.c.b16 %v2613, %v2609
    %v2706 = vpack.c.b16 %v2618, %v2614
    %v2707 = vpack.c.b16 %v2619, %v2615
    %v2708 = vpack.c.b16 %v2620, %v2616
    %v2709 = vpack.c.b16 %v2621, %v2617
    %v2710 = vpack.c.b16 %v2626, %v2622
    %v2711 = vpack.c.b16 %v2627, %v2623
    %v2712 = vpack.c.b16 %v2628, %v2624
    %v2713 = vpack.c.b16 %v2629, %v2625
    %v2714 = vpack.c.b16 %v2634, %v2630
    %v2715 = vpack.c.b16 %v2635, %v2631
    %v2716 = vpack.c.b16 %v2636, %v2632
    %v2717 = vpack.c.b16 %v2637, %v2633
    %v2718 = vpack.c.b16 %v2642, %v2638
    %v2719 = vpack.c.b16 %v2643, %v2639
    %v2720 = vpack.c.b16 %v2644, %v2640
    %v2721 = vpack.c.b16 %v2645, %v2641
    %v2722 = vpack.c.b16 %v2650, %v2646
    %v2723 = vpack.c.b16 %v2651, %v2647
    %v2724 = vpack.c.b16 %v2652, %v2648
    %v2725 = vpack.c.b16 %v2653, %v2649
    %v2726 = vpack.c.b16 %v2658, %v2654
    %v2727 = vpack.c.b16 %v2659, %v2655
    %v2728 = vpack.c.b16 %v2660, %v2656
    %v2729 = vpack.c.b16 %v2661, %v2657
    %v2730 = vpack.c.b16 %v2666, %v2662
    %v2731 = vpack.c.b16 %v2667, %v2663
    %v2732 = vpack.c.b16 %v2668, %v2664
    %v2733 = vpack.c.b16 %v2669, %v2665
    %2798 = vmatprep.subr.bf16.mxu0 %v2699
    %2799 = vmatpush1.bf16.msra.mxu0 %v2698
    %2800 = vmatprep.subr.bf16.mxu0 %v2695
    %2801 = vmatpush1.bf16.msra.mxu0 %v2694
    %2802 = vmatprep.subr.bf16.mxu0 %v2691
    %2803 = vmatpush1.bf16.msra.mxu0 %v2690
    %2804 = vmatprep.subr.bf16.mxu0 %v2687
    %2805 = vmatpush1.bf16.msra.mxu0 %v2686
    %2806 = vmatprep.subr.bf16.mxu0 %v2683
    %2807 = vmatpush1.bf16.msra.mxu0 %v2682
    %2808 = vmatprep.subr.bf16.mxu0 %v2679
    %2809 = vmatpush1.bf16.msra.mxu0 %v2678
    %2810 = vmatprep.subr.bf16.mxu0 %v2675
    %2811 = vmatpush1.bf16.msra.mxu0 %v2674
    %2812 = vmatprep.subr.bf16.mxu0 %v2671
    %2813 = vmatpush1.bf16.msra.mxu0 %v2670
    %2814 = vmatprep.subr.bf16.mxu0 %v2731
    %2815 = vmatpush2.bf16.msra.mxu0 %v2730
    %2816 = vmatprep.subr.bf16.mxu0 %v2727
    %2817 = vmatpush2.bf16.msra.mxu0 %v2726
    %2818 = vmatprep.subr.bf16.mxu0 %v2723
    %2819 = vmatpush2.bf16.msra.mxu0 %v2722
    %2820 = vmatprep.subr.bf16.mxu0 %v2719
    %2821 = vmatpush2.bf16.msra.mxu0 %v2718
    %2822 = vmatprep.subr.bf16.mxu0 %v2715
    %2823 = vmatpush2.bf16.msra.mxu0 %v2714
    %2824 = vmatprep.subr.bf16.mxu0 %v2711
    %2825 = vmatpush2.bf16.msra.mxu0 %v2710
    %2826 = vmatprep.subr.bf16.mxu0 %v2707
    %2827 = vmatpush2.bf16.msra.mxu0 %v2706
    %2828 = vmatprep.subr.bf16.mxu0 %v2703
    %2829 = vmatpush2.bf16.msra.mxu0 %v2702
    %2830 = vmatprep.mubr.bf16.mxu0 %v1828
    %2831 = vmatmul.mubr.bf16.gmra.mxu0 %v1827
    %v2832 = vpop.f32.mrf.mxu0
    %v2833 = vadd.f32 %v2327, %v2832
    %v2834 = vpop.f32.mrf.mxu0
    %v2835 = vadd.f32 %v2329, %v2834
    %v2836 = vpop.f32.mrf.mxu0
    %v2837 = vadd.f32 %v2331, %v2836
    %v2838 = vpop.f32.mrf.mxu0
    %v2839 = vadd.f32 %v2333, %v2838
    %2840 = vmatprep.mubr.bf16.mxu0 %v1830
    %2841 = vmatmul.mubr.bf16.gmra.mxu0 %v1829
    %v2842 = vpop.f32.mrf.mxu0
    %v2843 = vadd.f32 %v2337, %v2842
    %v2844 = vpop.f32.mrf.mxu0
    %v2845 = vadd.f32 %v2339, %v2844
    %v2846 = vpop.f32.mrf.mxu0
    %v2847 = vadd.f32 %v2341, %v2846
    %v2848 = vpop.f32.mrf.mxu0
    %v2849 = vadd.f32 %v2343, %v2848
    %2850 = vmatprep.mubr.bf16.mxu0 %v1832
    %2851 = vmatmul.mubr.bf16.gmra.mxu0 %v1831
    %v2852 = vpop.f32.mrf.mxu0
    %v2853 = vadd.f32 %v2347, %v2852
    %v2854 = vpop.f32.mrf.mxu0
    %v2855 = vadd.f32 %v2349, %v2854
    %v2856 = vpop.f32.mrf.mxu0
    %v2857 = vadd.f32 %v2351, %v2856
    %v2858 = vpop.f32.mrf.mxu0
    %v2859 = vadd.f32 %v2353, %v2858
    %2860 = vmatprep.mubr.bf16.mxu0 %v1834
    %2861 = vmatmul.mubr.bf16.gmra.mxu0 %v1833
    %v2862 = vpop.f32.mrf.mxu0
    %v2863 = vadd.f32 %v2357, %v2862
    %v2864 = vpop.f32.mrf.mxu0
    %v2865 = vadd.f32 %v2359, %v2864
    %v2866 = vpop.f32.mrf.mxu0
    %v2867 = vadd.f32 %v2361, %v2866
    %v2868 = vpop.f32.mrf.mxu0
    %v2869 = vadd.f32 %v2363, %v2868
    %2870 = vmatprep.mubr.bf16.mxu0 %v1836
    %2871 = vmatmul.mubr.bf16.gmra.mxu0 %v1835
    %v2872 = vpop.f32.mrf.mxu0
    %v2873 = vadd.f32 %v2367, %v2872
    %v2874 = vpop.f32.mrf.mxu0
    %v2875 = vadd.f32 %v2369, %v2874
    %v2876 = vpop.f32.mrf.mxu0
    %v2877 = vadd.f32 %v2371, %v2876
    %v2878 = vpop.f32.mrf.mxu0
    %v2879 = vadd.f32 %v2373, %v2878
    %2880 = vmatprep.mubr.bf16.mxu0 %v1838
    %2881 = vmatmul.mubr.bf16.gmra.mxu0 %v1837
    %v2882 = vpop.f32.mrf.mxu0
    %v2883 = vadd.f32 %v2377, %v2882
    %v2884 = vpop.f32.mrf.mxu0
    %v2885 = vadd.f32 %v2379, %v2884
    %v2886 = vpop.f32.mrf.mxu0
    %v2887 = vadd.f32 %v2381, %v2886
    %v2888 = vpop.f32.mrf.mxu0
    %v2889 = vadd.f32 %v2383, %v2888
    %2890 = vdwg.mxu0
    %2891 = vmatprep.subr.bf16.mxu0 %v2701
    %2892 = vmatpush1.bf16.msra.mxu0 %v2700
    %2893 = vmatprep.subr.bf16.mxu0 %v2697
    %2894 = vmatpush1.bf16.msra.mxu0 %v2696
    %2895 = vmatprep.subr.bf16.mxu0 %v2693
    %2896 = vmatpush1.bf16.msra.mxu0 %v2692
    %2897 = vmatprep.subr.bf16.mxu0 %v2689
    %2898 = vmatpush1.bf16.msra.mxu0 %v2688
    %2899 = vmatprep.subr.bf16.mxu0 %v2685
    %2900 = vmatpush1.bf16.msra.mxu0 %v2684
    %2901 = vmatprep.subr.bf16.mxu0 %v2681
    %2902 = vmatpush1.bf16.msra.mxu0 %v2680
    %2903 = vmatprep.subr.bf16.mxu0 %v2677
    %2904 = vmatpush1.bf16.msra.mxu0 %v2676
    %2905 = vmatprep.subr.bf16.mxu0 %v2673
    %2906 = vmatpush1.bf16.msra.mxu0 %v2672
    %2907 = vmatprep.subr.bf16.mxu0 %v2733
    %2908 = vmatpush2.bf16.msra.mxu0 %v2732
    %2909 = vmatprep.subr.bf16.mxu0 %v2729
    %2910 = vmatpush2.bf16.msra.mxu0 %v2728
    %2911 = vmatprep.subr.bf16.mxu0 %v2725
    %2912 = vmatpush2.bf16.msra.mxu0 %v2724
    %2913 = vmatprep.subr.bf16.mxu0 %v2721
    %2914 = vmatpush2.bf16.msra.mxu0 %v2720
    %2915 = vmatprep.subr.bf16.mxu0 %v2717
    %2916 = vmatpush2.bf16.msra.mxu0 %v2716
    %2917 = vmatprep.subr.bf16.mxu0 %v2713
    %2918 = vmatpush2.bf16.msra.mxu0 %v2712
    %2919 = vmatprep.subr.bf16.mxu0 %v2709
    %2920 = vmatpush2.bf16.msra.mxu0 %v2708
    %2921 = vmatprep.subr.bf16.mxu0 %v2705
    %2922 = vmatpush2.bf16.msra.mxu0 %v2704
    %2923 = vmatprep.mubr.bf16.mxu0 %v1828
    %2924 = vmatmul.mubr.bf16.gmra.mxu0 %v1827
    %v2925 = vpop.f32.mrf.mxu0
    %v2926 = vadd.f32 %v2420, %v2925
    %v2927 = vpop.f32.mrf.mxu0
    %v2928 = vadd.f32 %v2422, %v2927
    %v2929 = vpop.f32.mrf.mxu0
    %v2930 = vadd.f32 %v2424, %v2929
    %v2931 = vpop.f32.mrf.mxu0
    %v2932 = vadd.f32 %v2426, %v2931
    %2933 = vmatprep.mubr.bf16.mxu0 %v1830
    %2934 = vmatmul.mubr.bf16.gmra.mxu0 %v1829
    %v2935 = vpop.f32.mrf.mxu0
    %v2936 = vadd.f32 %v2430, %v2935
    %v2937 = vpop.f32.mrf.mxu0
    %v2938 = vadd.f32 %v2432, %v2937
    %v2939 = vpop.f32.mrf.mxu0
    %v2940 = vadd.f32 %v2434, %v2939
    %v2941 = vpop.f32.mrf.mxu0
    %v2942 = vadd.f32 %v2436, %v2941
    %2943 = vmatprep.mubr.bf16.mxu0 %v1832
    %2944 = vmatmul.mubr.bf16.gmra.mxu0 %v1831
    %v2945 = vpop.f32.mrf.mxu0
    %v2946 = vadd.f32 %v2440, %v2945
    %v2947 = vpop.f32.mrf.mxu0
    %v2948 = vadd.f32 %v2442, %v2947
    %v2949 = vpop.f32.mrf.mxu0
    %v2950 = vadd.f32 %v2444, %v2949
    %v2951 = vpop.f32.mrf.mxu0
    %v2952 = vadd.f32 %v2446, %v2951
    %2953 = vmatprep.mubr.bf16.mxu0 %v1834
    %2954 = vmatmul.mubr.bf16.gmra.mxu0 %v1833
    %v2955 = vpop.f32.mrf.mxu0
    %v2956 = vadd.f32 %v2450, %v2955
    %v2957 = vpop.f32.mrf.mxu0
    %v2958 = vadd.f32 %v2452, %v2957
    %v2959 = vpop.f32.mrf.mxu0
    %v2960 = vadd.f32 %v2454, %v2959
    %v2961 = vpop.f32.mrf.mxu0
    %v2962 = vadd.f32 %v2456, %v2961
    %2963 = vmatprep.mubr.bf16.mxu0 %v1836
    %2964 = vmatmul.mubr.bf16.gmra.mxu0 %v1835
    %v2965 = vpop.f32.mrf.mxu0
    %v2966 = vadd.f32 %v2460, %v2965
    %v2967 = vpop.f32.mrf.mxu0
    %v2968 = vadd.f32 %v2462, %v2967
    %v2969 = vpop.f32.mrf.mxu0
    %v2970 = vadd.f32 %v2464, %v2969
    %v2971 = vpop.f32.mrf.mxu0
    %v2972 = vadd.f32 %v2466, %v2971
    %2973 = vmatprep.mubr.bf16.mxu0 %v1838
    %2974 = vmatmul.mubr.bf16.gmra.mxu0 %v1837
    %v2975 = vpop.f32.mrf.mxu0
    %v2976 = vadd.f32 %v2470, %v2975
    %v2977 = vpop.f32.mrf.mxu0
    %v2978 = vadd.f32 %v2472, %v2977
    %v2979 = vpop.f32.mrf.mxu0
    %v2980 = vadd.f32 %v2474, %v2979
    %v2981 = vpop.f32.mrf.mxu0
    %v2982 = vadd.f32 %v2476, %v2981
    %2983 = vdwg.mxu0
    %s2984 = scalar_lea.vmem [#allocation11], 1024
    %v2985 = vld [vmem:[%s2984] sm:$0xff]
    %v2986 = vld [vmem:[%s2984 + $0x8] sm:$0xff]
    %v2987 = vld [vmem:[%s2984 + $0x10] sm:$0xff]
    %v2988 = vld [vmem:[%s2984 + $0x18] sm:$0xff]
    %v2989 = vld [vmem:[%s2984 + $0x20] sm:$0xff]
    %v2990 = vld [vmem:[%s2984 + $0x28] sm:$0xff]
    %v2991 = vld [vmem:[%s2984 + $0x30] sm:$0xff]
    %v2992 = vld [vmem:[%s2984 + $0x38] sm:$0xff]
    %v2993 = vld [vmem:[%s2984 + $0x40] sm:$0xff]
    %v2994 = vld [vmem:[%s2984 + $0x48] sm:$0xff]
    %v2995 = vld [vmem:[%s2984 + $0x50] sm:$0xff]
    %v2996 = vld [vmem:[%s2984 + $0x58] sm:$0xff]
    %v2997 = vld [vmem:[%s2984 + $0x60] sm:$0xff]
    %v2998 = vld [vmem:[%s2984 + $0x68] sm:$0xff]
    %v2999 = vld [vmem:[%s2984 + $0x70] sm:$0xff]
    %v3000 = vld [vmem:[%s2984 + $0x78] sm:$0xff]
    %v3001 = vld [vmem:[%s2984 + $0x80] sm:$0xff]
    %v3002 = vld [vmem:[%s2984 + $0x88] sm:$0xff]
    %v3003 = vld [vmem:[%s2984 + $0x90] sm:$0xff]
    %v3004 = vld [vmem:[%s2984 + $0x98] sm:$0xff]
    %v3005 = vld [vmem:[%s2984 + $0xa0] sm:$0xff]
    %v3006 = vld [vmem:[%s2984 + $0xa8] sm:$0xff]
    %v3007 = vld [vmem:[%s2984 + $0xb0] sm:$0xff]
    %v3008 = vld [vmem:[%s2984 + $0xb8] sm:$0xff]
    %v3009 = vld [vmem:[%s2984 + $0xc0] sm:$0xff]
    %v3010 = vld [vmem:[%s2984 + $0xc8] sm:$0xff]
    %v3011 = vld [vmem:[%s2984 + $0xd0] sm:$0xff]
    %v3012 = vld [vmem:[%s2984 + $0xd8] sm:$0xff]
    %v3013 = vld [vmem:[%s2984 + $0xe0] sm:$0xff]
    %v3014 = vld [vmem:[%s2984 + $0xe8] sm:$0xff]
    %v3015 = vld [vmem:[%s2984 + $0xf0] sm:$0xff]
    %v3016 = vld [vmem:[%s2984 + $0xf8] sm:$0xff]
    %v3017 = vld [vmem:[%s2984 + $0x100] sm:$0xff]
    %v3018 = vld [vmem:[%s2984 + $0x108] sm:$0xff]
    %v3019 = vld [vmem:[%s2984 + $0x110] sm:$0xff]
    %v3020 = vld [vmem:[%s2984 + $0x118] sm:$0xff]
    %v3021 = vld [vmem:[%s2984 + $0x120] sm:$0xff]
    %v3022 = vld [vmem:[%s2984 + $0x128] sm:$0xff]
    %v3023 = vld [vmem:[%s2984 + $0x130] sm:$0xff]
    %v3024 = vld [vmem:[%s2984 + $0x138] sm:$0xff]
    %v3025 = vld [vmem:[%s2984 + $0x140] sm:$0xff]
    %v3026 = vld [vmem:[%s2984 + $0x148] sm:$0xff]
    %v3027 = vld [vmem:[%s2984 + $0x150] sm:$0xff]
    %v3028 = vld [vmem:[%s2984 + $0x158] sm:$0xff]
    %v3029 = vld [vmem:[%s2984 + $0x160] sm:$0xff]
    %v3030 = vld [vmem:[%s2984 + $0x168] sm:$0xff]
    %v3031 = vld [vmem:[%s2984 + $0x170] sm:$0xff]
    %v3032 = vld [vmem:[%s2984 + $0x178] sm:$0xff]
    %v3033 = vld [vmem:[%s2984 + $0x180] sm:$0xff]
    %v3034 = vld [vmem:[%s2984 + $0x188] sm:$0xff]
    %v3035 = vld [vmem:[%s2984 + $0x190] sm:$0xff]
    %v3036 = vld [vmem:[%s2984 + $0x198] sm:$0xff]
    %v3037 = vld [vmem:[%s2984 + $0x1a0] sm:$0xff]
    %v3038 = vld [vmem:[%s2984 + $0x1a8] sm:$0xff]
    %v3039 = vld [vmem:[%s2984 + $0x1b0] sm:$0xff]
    %v3040 = vld [vmem:[%s2984 + $0x1b8] sm:$0xff]
    %v3041 = vld [vmem:[%s2984 + $0x1c0] sm:$0xff]
    %v3042 = vld [vmem:[%s2984 + $0x1c8] sm:$0xff]
    %v3043 = vld [vmem:[%s2984 + $0x1d0] sm:$0xff]
    %v3044 = vld [vmem:[%s2984 + $0x1d8] sm:$0xff]
    %v3045 = vld [vmem:[%s2984 + $0x1e0] sm:$0xff]
    %v3046 = vld [vmem:[%s2984 + $0x1e8] sm:$0xff]
    %v3047 = vld [vmem:[%s2984 + $0x1f0] sm:$0xff]
    %v3048 = vld [vmem:[%s2984 + $0x1f8] sm:$0xff]
    %v3113 = vunpack.c.l.b16 %v2985
    %v3114 = vunpack.c.h.b16 %v2985
    %v3115 = vunpack.c.l.b16 %v2986
    %v3116 = vunpack.c.h.b16 %v2986
    %v3117 = vunpack.c.l.b16 %v2987
    %v3118 = vunpack.c.h.b16 %v2987
    %v3119 = vunpack.c.l.b16 %v2988
    %v3120 = vunpack.c.h.b16 %v2988
    %v3121 = vunpack.c.l.b16 %v2989
    %v3122 = vunpack.c.h.b16 %v2989
    %v3123 = vunpack.c.l.b16 %v2990
    %v3124 = vunpack.c.h.b16 %v2990
    %v3125 = vunpack.c.l.b16 %v2991
    %v3126 = vunpack.c.h.b16 %v2991
    %v3127 = vunpack.c.l.b16 %v2992
    %v3128 = vunpack.c.h.b16 %v2992
    %v3129 = vunpack.c.l.b16 %v2993
    %v3130 = vunpack.c.h.b16 %v2993
    %v3131 = vunpack.c.l.b16 %v2994
    %v3132 = vunpack.c.h.b16 %v2994
    %v3133 = vunpack.c.l.b16 %v2995
    %v3134 = vunpack.c.h.b16 %v2995
    %v3135 = vunpack.c.l.b16 %v2996
    %v3136 = vunpack.c.h.b16 %v2996
    %v3137 = vunpack.c.l.b16 %v2997
    %v3138 = vunpack.c.h.b16 %v2997
    %v3139 = vunpack.c.l.b16 %v2998
    %v3140 = vunpack.c.h.b16 %v2998
    %v3141 = vunpack.c.l.b16 %v2999
    %v3142 = vunpack.c.h.b16 %v2999
    %v3143 = vunpack.c.l.b16 %v3000
    %v3144 = vunpack.c.h.b16 %v3000
    %v3145 = vunpack.c.l.b16 %v3001
    %v3146 = vunpack.c.h.b16 %v3001
    %v3147 = vunpack.c.l.b16 %v3002
    %v3148 = vunpack.c.h.b16 %v3002
    %v3149 = vunpack.c.l.b16 %v3003
    %v3150 = vunpack.c.h.b16 %v3003
    %v3151 = vunpack.c.l.b16 %v3004
    %v3152 = vunpack.c.h.b16 %v3004
    %v3153 = vunpack.c.l.b16 %v3005
    %v3154 = vunpack.c.h.b16 %v3005
    %v3155 = vunpack.c.l.b16 %v3006
    %v3156 = vunpack.c.h.b16 %v3006
    %v3157 = vunpack.c.l.b16 %v3007
    %v3158 = vunpack.c.h.b16 %v3007
    %v3159 = vunpack.c.l.b16 %v3008
    %v3160 = vunpack.c.h.b16 %v3008
    %v3161 = vunpack.c.l.b16 %v3009
    %v3162 = vunpack.c.h.b16 %v3009
    %v3163 = vunpack.c.l.b16 %v3010
    %v3164 = vunpack.c.h.b16 %v3010
    %v3165 = vunpack.c.l.b16 %v3011
    %v3166 = vunpack.c.h.b16 %v3011
    %v3167 = vunpack.c.l.b16 %v3012
    %v3168 = vunpack.c.h.b16 %v3012
    %v3169 = vunpack.c.l.b16 %v3013
    %v3170 = vunpack.c.h.b16 %v3013
    %v3171 = vunpack.c.l.b16 %v3014
    %v3172 = vunpack.c.h.b16 %v3014
    %v3173 = vunpack.c.l.b16 %v3015
    %v3174 = vunpack.c.h.b16 %v3015
    %v3175 = vunpack.c.l.b16 %v3016
    %v3176 = vunpack.c.h.b16 %v3016
    %v3177 = vunpack.c.l.b16 %v3017
    %v3178 = vunpack.c.h.b16 %v3017
    %v3179 = vunpack.c.l.b16 %v3018
    %v3180 = vunpack.c.h.b16 %v3018
    %v3181 = vunpack.c.l.b16 %v3019
    %v3182 = vunpack.c.h.b16 %v3019
    %v3183 = vunpack.c.l.b16 %v3020
    %v3184 = vunpack.c.h.b16 %v3020
    %v3185 = vunpack.c.l.b16 %v3021
    %v3186 = vunpack.c.h.b16 %v3021
    %v3187 = vunpack.c.l.b16 %v3022
    %v3188 = vunpack.c.h.b16 %v3022
    %v3189 = vunpack.c.l.b16 %v3023
    %v3190 = vunpack.c.h.b16 %v3023
    %v3191 = vunpack.c.l.b16 %v3024
    %v3192 = vunpack.c.h.b16 %v3024
    %v3193 = vunpack.c.l.b16 %v3025
    %v3194 = vunpack.c.h.b16 %v3025
    %v3195 = vunpack.c.l.b16 %v3026
    %v3196 = vunpack.c.h.b16 %v3026
    %v3197 = vunpack.c.l.b16 %v3027
    %v3198 = vunpack.c.h.b16 %v3027
    %v3199 = vunpack.c.l.b16 %v3028
    %v3200 = vunpack.c.h.b16 %v3028
    %v3201 = vunpack.c.l.b16 %v3029
    %v3202 = vunpack.c.h.b16 %v3029
    %v3203 = vunpack.c.l.b16 %v3030
    %v3204 = vunpack.c.h.b16 %v3030
    %v3205 = vunpack.c.l.b16 %v3031
    %v3206 = vunpack.c.h.b16 %v3031
    %v3207 = vunpack.c.l.b16 %v3032
    %v3208 = vunpack.c.h.b16 %v3032
    %v3209 = vunpack.c.l.b16 %v3033
    %v3210 = vunpack.c.h.b16 %v3033
    %v3211 = vunpack.c.l.b16 %v3034
    %v3212 = vunpack.c.h.b16 %v3034
    %v3213 = vunpack.c.l.b16 %v3035
    %v3214 = vunpack.c.h.b16 %v3035
    %v3215 = vunpack.c.l.b16 %v3036
    %v3216 = vunpack.c.h.b16 %v3036
    %v3217 = vunpack.c.l.b16 %v3037
    %v3218 = vunpack.c.h.b16 %v3037
    %v3219 = vunpack.c.l.b16 %v3038
    %v3220 = vunpack.c.h.b16 %v3038
    %v3221 = vunpack.c.l.b16 %v3039
    %v3222 = vunpack.c.h.b16 %v3039
    %v3223 = vunpack.c.l.b16 %v3040
    %v3224 = vunpack.c.h.b16 %v3040
    %v3225 = vunpack.c.l.b16 %v3041
    %v3226 = vunpack.c.h.b16 %v3041
    %v3227 = vunpack.c.l.b16 %v3042
    %v3228 = vunpack.c.h.b16 %v3042
    %v3229 = vunpack.c.l.b16 %v3043
    %v3230 = vunpack.c.h.b16 %v3043
    %v3231 = vunpack.c.l.b16 %v3044
    %v3232 = vunpack.c.h.b16 %v3044
    %v3233 = vunpack.c.l.b16 %v3045
    %v3234 = vunpack.c.h.b16 %v3045
    %v3235 = vunpack.c.l.b16 %v3046
    %v3236 = vunpack.c.h.b16 %v3046
    %v3237 = vunpack.c.l.b16 %v3047
    %v3238 = vunpack.c.h.b16 %v3047
    %v3239 = vunpack.c.l.b16 %v3048
    %v3240 = vunpack.c.h.b16 %v3048
    %v3241 = vpack.c.b16 %v3117, %v3113
    %v3242 = vpack.c.b16 %v3118, %v3114
    %v3243 = vpack.c.b16 %v3119, %v3115
    %v3244 = vpack.c.b16 %v3120, %v3116
    %v3245 = vpack.c.b16 %v3125, %v3121
    %v3246 = vpack.c.b16 %v3126, %v3122
    %v3247 = vpack.c.b16 %v3127, %v3123
    %v3248 = vpack.c.b16 %v3128, %v3124
    %v3249 = vpack.c.b16 %v3133, %v3129
    %v3250 = vpack.c.b16 %v3134, %v3130
    %v3251 = vpack.c.b16 %v3135, %v3131
    %v3252 = vpack.c.b16 %v3136, %v3132
    %v3253 = vpack.c.b16 %v3141, %v3137
    %v3254 = vpack.c.b16 %v3142, %v3138
    %v3255 = vpack.c.b16 %v3143, %v3139
    %v3256 = vpack.c.b16 %v3144, %v3140
    %v3257 = vpack.c.b16 %v3149, %v3145
    %v3258 = vpack.c.b16 %v3150, %v3146
    %v3259 = vpack.c.b16 %v3151, %v3147
    %v3260 = vpack.c.b16 %v3152, %v3148
    %v3261 = vpack.c.b16 %v3157, %v3153
    %v3262 = vpack.c.b16 %v3158, %v3154
    %v3263 = vpack.c.b16 %v3159, %v3155
    %v3264 = vpack.c.b16 %v3160, %v3156
    %v3265 = vpack.c.b16 %v3165, %v3161
    %v3266 = vpack.c.b16 %v3166, %v3162
    %v3267 = vpack.c.b16 %v3167, %v3163
    %v3268 = vpack.c.b16 %v3168, %v3164
    %v3269 = vpack.c.b16 %v3173, %v3169
    %v3270 = vpack.c.b16 %v3174, %v3170
    %v3271 = vpack.c.b16 %v3175, %v3171
    %v3272 = vpack.c.b16 %v3176, %v3172
    %v3273 = vpack.c.b16 %v3181, %v3177
    %v3274 = vpack.c.b16 %v3182, %v3178
    %v3275 = vpack.c.b16 %v3183, %v3179
    %v3276 = vpack.c.b16 %v3184, %v3180
    %v3277 = vpack.c.b16 %v3189, %v3185
    %v3278 = vpack.c.b16 %v3190, %v3186
    %v3279 = vpack.c.b16 %v3191, %v3187
    %v3280 = vpack.c.b16 %v3192, %v3188
    %v3281 = vpack.c.b16 %v3197, %v3193
    %v3282 = vpack.c.b16 %v3198, %v3194
    %v3283 = vpack.c.b16 %v3199, %v3195
    %v3284 = vpack.c.b16 %v3200, %v3196
    %v3285 = vpack.c.b16 %v3205, %v3201
    %v3286 = vpack.c.b16 %v3206, %v3202
    %v3287 = vpack.c.b16 %v3207, %v3203
    %v3288 = vpack.c.b16 %v3208, %v3204
    %v3289 = vpack.c.b16 %v3213, %v3209
    %v3290 = vpack.c.b16 %v3214, %v3210
    %v3291 = vpack.c.b16 %v3215, %v3211
    %v3292 = vpack.c.b16 %v3216, %v3212
    %v3293 = vpack.c.b16 %v3221, %v3217
    %v3294 = vpack.c.b16 %v3222, %v3218
    %v3295 = vpack.c.b16 %v3223, %v3219
    %v3296 = vpack.c.b16 %v3224, %v3220
    %v3297 = vpack.c.b16 %v3229, %v3225
    %v3298 = vpack.c.b16 %v3230, %v3226
    %v3299 = vpack.c.b16 %v3231, %v3227
    %v3300 = vpack.c.b16 %v3232, %v3228
    %v3301 = vpack.c.b16 %v3237, %v3233
    %v3302 = vpack.c.b16 %v3238, %v3234
    %v3303 = vpack.c.b16 %v3239, %v3235
    %v3304 = vpack.c.b16 %v3240, %v3236
    %3369 = vmatprep.subr.bf16.mxu0 %v3270
    %3370 = vmatpush1.bf16.msra.mxu0 %v3269
    %3371 = vmatprep.subr.bf16.mxu0 %v3266
    %3372 = vmatpush1.bf16.msra.mxu0 %v3265
    %3373 = vmatprep.subr.bf16.mxu0 %v3262
    %3374 = vmatpush1.bf16.msra.mxu0 %v3261
    %3375 = vmatprep.subr.bf16.mxu0 %v3258
    %3376 = vmatpush1.bf16.msra.mxu0 %v3257
    %3377 = vmatprep.subr.bf16.mxu0 %v3254
    %3378 = vmatpush1.bf16.msra.mxu0 %v3253
    %3379 = vmatprep.subr.bf16.mxu0 %v3250
    %3380 = vmatpush1.bf16.msra.mxu0 %v3249
    %3381 = vmatprep.subr.bf16.mxu0 %v3246
    %3382 = vmatpush1.bf16.msra.mxu0 %v3245
    %3383 = vmatprep.subr.bf16.mxu0 %v3242
    %3384 = vmatpush1.bf16.msra.mxu0 %v3241
    %3385 = vmatprep.subr.bf16.mxu0 %v3302
    %3386 = vmatpush2.bf16.msra.mxu0 %v3301
    %3387 = vmatprep.subr.bf16.mxu0 %v3298
    %3388 = vmatpush2.bf16.msra.mxu0 %v3297
    %3389 = vmatprep.subr.bf16.mxu0 %v3294
    %3390 = vmatpush2.bf16.msra.mxu0 %v3293
    %3391 = vmatprep.subr.bf16.mxu0 %v3290
    %3392 = vmatpush2.bf16.msra.mxu0 %v3289
    %3393 = vmatprep.subr.bf16.mxu0 %v3286
    %3394 = vmatpush2.bf16.msra.mxu0 %v3285
    %3395 = vmatprep.subr.bf16.mxu0 %v3282
    %3396 = vmatpush2.bf16.msra.mxu0 %v3281
    %3397 = vmatprep.subr.bf16.mxu0 %v3278
    %3398 = vmatpush2.bf16.msra.mxu0 %v3277
    %3399 = vmatprep.subr.bf16.mxu0 %v3274
    %3400 = vmatpush2.bf16.msra.mxu0 %v3273
    %3401 = vmatprep.mubr.bf16.mxu0 %v1832
    %3402 = vmatmul.mubr.bf16.gmra.mxu0 %v1831
    %v3403 = vpop.f32.mrf.mxu0
    %v3404 = vadd.f32 0.0, %v3403
    %v3405 = vpop.f32.mrf.mxu0
    %v3406 = vadd.f32 0.0, %v3405
    %v3407 = vpop.f32.mrf.mxu0
    %v3408 = vadd.f32 0.0, %v3407
    %v3409 = vpop.f32.mrf.mxu0
    %v3410 = vadd.f32 0.0, %v3409
    %3411 = vmatprep.mubr.bf16.mxu0 %v1834
    %3412 = vmatmul.mubr.bf16.gmra.mxu0 %v1833
    %v3413 = vpop.f32.mrf.mxu0
    %v3414 = vadd.f32 0.0, %v3413
    %v3415 = vpop.f32.mrf.mxu0
    %v3416 = vadd.f32 0.0, %v3415
    %v3417 = vpop.f32.mrf.mxu0
    %v3418 = vadd.f32 0.0, %v3417
    %v3419 = vpop.f32.mrf.mxu0
    %v3420 = vadd.f32 0.0, %v3419
    %3421 = vmatprep.mubr.bf16.mxu0 %v1836
    %3422 = vmatmul.mubr.bf16.gmra.mxu0 %v1835
    %v3423 = vpop.f32.mrf.mxu0
    %v3424 = vadd.f32 0.0, %v3423
    %v3425 = vpop.f32.mrf.mxu0
    %v3426 = vadd.f32 0.0, %v3425
    %v3427 = vpop.f32.mrf.mxu0
    %v3428 = vadd.f32 0.0, %v3427
    %v3429 = vpop.f32.mrf.mxu0
    %v3430 = vadd.f32 0.0, %v3429
    %3431 = vmatprep.mubr.bf16.mxu0 %v1838
    %3432 = vmatmul.mubr.bf16.gmra.mxu0 %v1837
    %v3433 = vpop.f32.mrf.mxu0
    %v3434 = vadd.f32 0.0, %v3433
    %v3435 = vpop.f32.mrf.mxu0
    %v3436 = vadd.f32 0.0, %v3435
    %v3437 = vpop.f32.mrf.mxu0
    %v3438 = vadd.f32 0.0, %v3437
    %v3439 = vpop.f32.mrf.mxu0
    %v3440 = vadd.f32 0.0, %v3439
    %3441 = vmatprep.mubr.bf16.mxu0 %v1840
    %3442 = vmatmul.mubr.bf16.gmra.mxu0 %v1839
    %v3443 = vpop.f32.mrf.mxu0
    %v3444 = vadd.f32 0.0, %v3443
    %v3445 = vpop.f32.mrf.mxu0
    %v3446 = vadd.f32 0.0, %v3445
    %v3447 = vpop.f32.mrf.mxu0
    %v3448 = vadd.f32 0.0, %v3447
    %v3449 = vpop.f32.mrf.mxu0
    %v3450 = vadd.f32 0.0, %v3449
    %3451 = vmatprep.mubr.bf16.mxu0 %v1842
    %3452 = vmatmul.mubr.bf16.gmra.mxu0 %v1841
    %v3453 = vpop.f32.mrf.mxu0
    %v3454 = vadd.f32 0.0, %v3453
    %v3455 = vpop.f32.mrf.mxu0
    %v3456 = vadd.f32 0.0, %v3455
    %v3457 = vpop.f32.mrf.mxu0
    %v3458 = vadd.f32 0.0, %v3457
    %v3459 = vpop.f32.mrf.mxu0
    %v3460 = vadd.f32 0.0, %v3459
    %3461 = vdwg.mxu0
    %3462 = vmatprep.subr.bf16.mxu0 %v3272
    %3463 = vmatpush1.bf16.msra.mxu0 %v3271
    %3464 = vmatprep.subr.bf16.mxu0 %v3268
    %3465 = vmatpush1.bf16.msra.mxu0 %v3267
    %3466 = vmatprep.subr.bf16.mxu0 %v3264
    %3467 = vmatpush1.bf16.msra.mxu0 %v3263
    %3468 = vmatprep.subr.bf16.mxu0 %v3260
    %3469 = vmatpush1.bf16.msra.mxu0 %v3259
    %3470 = vmatprep.subr.bf16.mxu0 %v3256
    %3471 = vmatpush1.bf16.msra.mxu0 %v3255
    %3472 = vmatprep.subr.bf16.mxu0 %v3252
    %3473 = vmatpush1.bf16.msra.mxu0 %v3251
    %3474 = vmatprep.subr.bf16.mxu0 %v3248
    %3475 = vmatpush1.bf16.msra.mxu0 %v3247
    %3476 = vmatprep.subr.bf16.mxu0 %v3244
    %3477 = vmatpush1.bf16.msra.mxu0 %v3243
    %3478 = vmatprep.subr.bf16.mxu0 %v3304
    %3479 = vmatpush2.bf16.msra.mxu0 %v3303
    %3480 = vmatprep.subr.bf16.mxu0 %v3300
    %3481 = vmatpush2.bf16.msra.mxu0 %v3299
    %3482 = vmatprep.subr.bf16.mxu0 %v3296
    %3483 = vmatpush2.bf16.msra.mxu0 %v3295
    %3484 = vmatprep.subr.bf16.mxu0 %v3292
    %3485 = vmatpush2.bf16.msra.mxu0 %v3291
    %3486 = vmatprep.subr.bf16.mxu0 %v3288
    %3487 = vmatpush2.bf16.msra.mxu0 %v3287
    %3488 = vmatprep.subr.bf16.mxu0 %v3284
    %3489 = vmatpush2.bf16.msra.mxu0 %v3283
    %3490 = vmatprep.subr.bf16.mxu0 %v3280
    %3491 = vmatpush2.bf16.msra.mxu0 %v3279
    %3492 = vmatprep.subr.bf16.mxu0 %v3276
    %3493 = vmatpush2.bf16.msra.mxu0 %v3275
    %3494 = vmatprep.mubr.bf16.mxu0 %v1832
    %3495 = vmatmul.mubr.bf16.gmra.mxu0 %v1831
    %v3496 = vpop.f32.mrf.mxu0
    %v3497 = vadd.f32 0.0, %v3496
    %v3498 = vpop.f32.mrf.mxu0
    %v3499 = vadd.f32 0.0, %v3498
    %v3500 = vpop.f32.mrf.mxu0
    %v3501 = vadd.f32 0.0, %v3500
    %v3502 = vpop.f32.mrf.mxu0
    %v3503 = vadd.f32 0.0, %v3502
    %3504 = vmatprep.mubr.bf16.mxu0 %v1834
    %3505 = vmatmul.mubr.bf16.gmra.mxu0 %v1833
    %v3506 = vpop.f32.mrf.mxu0
    %v3507 = vadd.f32 0.0, %v3506
    %v3508 = vpop.f32.mrf.mxu0
    %v3509 = vadd.f32 0.0, %v3508
    %v3510 = vpop.f32.mrf.mxu0
    %v3511 = vadd.f32 0.0, %v3510
    %v3512 = vpop.f32.mrf.mxu0
    %v3513 = vadd.f32 0.0, %v3512
    %3514 = vmatprep.mubr.bf16.mxu0 %v1836
    %3515 = vmatmul.mubr.bf16.gmra.mxu0 %v1835
    %v3516 = vpop.f32.mrf.mxu0
    %v3517 = vadd.f32 0.0, %v3516
    %v3518 = vpop.f32.mrf.mxu0
    %v3519 = vadd.f32 0.0, %v3518
    %v3520 = vpop.f32.mrf.mxu0
    %v3521 = vadd.f32 0.0, %v3520
    %v3522 = vpop.f32.mrf.mxu0
    %v3523 = vadd.f32 0.0, %v3522
    %3524 = vmatprep.mubr.bf16.mxu0 %v1838
    %3525 = vmatmul.mubr.bf16.gmra.mxu0 %v1837
    %v3526 = vpop.f32.mrf.mxu0
    %v3527 = vadd.f32 0.0, %v3526
    %v3528 = vpop.f32.mrf.mxu0
    %v3529 = vadd.f32 0.0, %v3528
    %v3530 = vpop.f32.mrf.mxu0
    %v3531 = vadd.f32 0.0, %v3530
    %v3532 = vpop.f32.mrf.mxu0
    %v3533 = vadd.f32 0.0, %v3532
    %3534 = vmatprep.mubr.bf16.mxu0 %v1840
    %3535 = vmatmul.mubr.bf16.gmra.mxu0 %v1839
    %v3536 = vpop.f32.mrf.mxu0
    %v3537 = vadd.f32 0.0, %v3536
    %v3538 = vpop.f32.mrf.mxu0
    %v3539 = vadd.f32 0.0, %v3538
    %v3540 = vpop.f32.mrf.mxu0
    %v3541 = vadd.f32 0.0, %v3540
    %v3542 = vpop.f32.mrf.mxu0
    %v3543 = vadd.f32 0.0, %v3542
    %3544 = vmatprep.mubr.bf16.mxu0 %v1842
    %3545 = vmatmul.mubr.bf16.gmra.mxu0 %v1841
    %v3546 = vpop.f32.mrf.mxu0
    %v3547 = vadd.f32 0.0, %v3546
    %v3548 = vpop.f32.mrf.mxu0
    %v3549 = vadd.f32 0.0, %v3548
    %v3550 = vpop.f32.mrf.mxu0
    %v3551 = vadd.f32 0.0, %v3550
    %v3552 = vpop.f32.mrf.mxu0
    %v3553 = vadd.f32 0.0, %v3552
    %3554 = vdwg.mxu0
    %v3555 = vadd.f32 %v2833, %v3404
    %v3556 = vadd.f32 %v2835, %v3406
    %v3557 = vadd.f32 %v2926, %v3497
    %v3558 = vadd.f32 %v2928, %v3499
    %v3559 = vadd.f32 %v2837, %v3408
    %v3560 = vadd.f32 %v2839, %v3410
    %v3561 = vadd.f32 %v2930, %v3501
    %v3562 = vadd.f32 %v2932, %v3503
    %v3563 = vadd.f32 %v2843, %v3414
    %v3564 = vadd.f32 %v2845, %v3416
    %v3565 = vadd.f32 %v2936, %v3507
    %v3566 = vadd.f32 %v2938, %v3509
    %v3567 = vadd.f32 %v2847, %v3418
    %v3568 = vadd.f32 %v2849, %v3420
    %v3569 = vadd.f32 %v2940, %v3511
    %v3570 = vadd.f32 %v2942, %v3513
    %v3571 = vadd.f32 %v2853, %v3424
    %v3572 = vadd.f32 %v2855, %v3426
    %v3573 = vadd.f32 %v2946, %v3517
    %v3574 = vadd.f32 %v2948, %v3519
    %v3575 = vadd.f32 %v2857, %v3428
    %v3576 = vadd.f32 %v2859, %v3430
    %v3577 = vadd.f32 %v2950, %v3521
    %v3578 = vadd.f32 %v2952, %v3523
    %v3579 = vadd.f32 %v2863, %v3434
    %v3580 = vadd.f32 %v2865, %v3436
    %v3581 = vadd.f32 %v2956, %v3527
    %v3582 = vadd.f32 %v2958, %v3529
    %v3583 = vadd.f32 %v2867, %v3438
    %v3584 = vadd.f32 %v2869, %v3440
    %v3585 = vadd.f32 %v2960, %v3531
    %v3586 = vadd.f32 %v2962, %v3533
    %v3587 = vadd.f32 %v2873, %v3444
    %v3588 = vadd.f32 %v2875, %v3446
    %v3589 = vadd.f32 %v2966, %v3537
    %v3590 = vadd.f32 %v2968, %v3539
    %v3591 = vadd.f32 %v2877, %v3448
    %v3592 = vadd.f32 %v2879, %v3450
    %v3593 = vadd.f32 %v2970, %v3541
    %v3594 = vadd.f32 %v2972, %v3543
    %v3595 = vadd.f32 %v2883, %v3454
    %v3596 = vadd.f32 %v2885, %v3456
    %v3597 = vadd.f32 %v2976, %v3547
    %v3598 = vadd.f32 %v2978, %v3549
    %v3599 = vadd.f32 %v2887, %v3458
    %v3600 = vadd.f32 %v2889, %v3460
    %v3601 = vadd.f32 %v2980, %v3551
    %v3602 = vadd.f32 %v2982, %v3553
    %v3603 = vld [vmem:[%s8] sm:$0xf]
    %v3605 = vlaneseq
    %v3606 = vshrl.u32 %v3605, 7
    %v3607 = vsub.s32 0, %v3606
    %v3608 = vrot.slane %v3603, %v3607
    %v3609 = vlaneseq
    %v3610 = vshrl.u32 %v3609, 7
    %v3611 = vsub.s32 1, %v3610
    %v3612 = vrot.slane %v3603, %v3611
    %v3613 = vlaneseq
    %v3614 = vshrl.u32 %v3613, 7
    %v3615 = vsub.s32 2, %v3614
    %v3616 = vrot.slane %v3603, %v3615
    %v3617 = vlaneseq
    %v3618 = vshrl.u32 %v3617, 7
    %v3619 = vsub.s32 3, %v3618
    %v3620 = vrot.slane %v3603, %v3619
    %v3625 = vadd.f32 %v3555, %v3608
    %v3626 = vadd.f32 %v3556, %v3612
    %v3627 = vadd.f32 %v3557, %v3616
    %v3628 = vadd.f32 %v3558, %v3620
    %v3629 = vadd.f32 %v3559, %v3608
    %v3630 = vadd.f32 %v3560, %v3612
    %v3631 = vadd.f32 %v3561, %v3616
    %v3632 = vadd.f32 %v3562, %v3620
    %v3633 = vadd.f32 %v3563, %v3608
    %v3634 = vadd.f32 %v3564, %v3612
    %v3635 = vadd.f32 %v3565, %v3616
    %v3636 = vadd.f32 %v3566, %v3620
    %v3637 = vadd.f32 %v3567, %v3608
    %v3638 = vadd.f32 %v3568, %v3612
    %v3639 = vadd.f32 %v3569, %v3616
    %v3640 = vadd.f32 %v3570, %v3620
    %v3641 = vadd.f32 %v3571, %v3608
    %v3642 = vadd.f32 %v3572, %v3612
    %v3643 = vadd.f32 %v3573, %v3616
    %v3644 = vadd.f32 %v3574, %v3620
    %v3645 = vadd.f32 %v3575, %v3608
    %v3646 = vadd.f32 %v3576, %v3612
    %v3647 = vadd.f32 %v3577, %v3616
    %v3648 = vadd.f32 %v3578, %v3620
    %v3649 = vadd.f32 %v3579, %v3608
    %v3650 = vadd.f32 %v3580, %v3612
    %v3651 = vadd.f32 %v3581, %v3616
    %v3652 = vadd.f32 %v3582, %v3620
    %v3653 = vadd.f32 %v3583, %v3608
    %v3654 = vadd.f32 %v3584, %v3612
    %v3655 = vadd.f32 %v3585, %v3616
    %v3656 = vadd.f32 %v3586, %v3620
    %v3657 = vadd.f32 %v3587, %v3608
    %v3658 = vadd.f32 %v3588, %v3612
    %v3659 = vadd.f32 %v3589, %v3616
    %v3660 = vadd.f32 %v3590, %v3620
    %v3661 = vadd.f32 %v3591, %v3608
    %v3662 = vadd.f32 %v3592, %v3612
    %v3663 = vadd.f32 %v3593, %v3616
    %v3664 = vadd.f32 %v3594, %v3620
    %v3665 = vadd.f32 %v3595, %v3608
    %v3666 = vadd.f32 %v3596, %v3612
    %v3667 = vadd.f32 %v3597, %v3616
    %v3668 = vadd.f32 %v3598, %v3620
    %v3669 = vadd.f32 %v3599, %v3608
    %v3670 = vadd.f32 %v3600, %v3612
    %v3671 = vadd.f32 %v3601, %v3616
    %v3672 = vadd.f32 %v3602, %v3620
    %v3673 = vmax.f32 %v3625, 0.0
    %v3674 = vmax.f32 %v3626, 0.0
    %v3675 = vmax.f32 %v3627, 0.0
    %v3676 = vmax.f32 %v3628, 0.0
    %v3677 = vmax.f32 %v3629, 0.0
    %v3678 = vmax.f32 %v3630, 0.0
    %v3679 = vmax.f32 %v3631, 0.0
    %v3680 = vmax.f32 %v3632, 0.0
    %v3681 = vmax.f32 %v3633, 0.0
    %v3682 = vmax.f32 %v3634, 0.0
    %v3683 = vmax.f32 %v3635, 0.0
    %v3684 = vmax.f32 %v3636, 0.0
    %v3685 = vmax.f32 %v3637, 0.0
    %v3686 = vmax.f32 %v3638, 0.0
    %v3687 = vmax.f32 %v3639, 0.0
    %v3688 = vmax.f32 %v3640, 0.0
    %v3689 = vmax.f32 %v3641, 0.0
    %v3690 = vmax.f32 %v3642, 0.0
    %v3691 = vmax.f32 %v3643, 0.0
    %v3692 = vmax.f32 %v3644, 0.0
    %v3693 = vmax.f32 %v3645, 0.0
    %v3694 = vmax.f32 %v3646, 0.0
    %v3695 = vmax.f32 %v3647, 0.0
    %v3696 = vmax.f32 %v3648, 0.0
    %v3697 = vmax.f32 %v3649, 0.0
    %v3698 = vmax.f32 %v3650, 0.0
    %v3699 = vmax.f32 %v3651, 0.0
    %v3700 = vmax.f32 %v3652, 0.0
    %v3701 = vmax.f32 %v3653, 0.0
    %v3702 = vmax.f32 %v3654, 0.0
    %v3703 = vmax.f32 %v3655, 0.0
    %v3704 = vmax.f32 %v3656, 0.0
    %v3705 = vmax.f32 %v3657, 0.0
    %v3706 = vmax.f32 %v3658, 0.0
    %v3707 = vmax.f32 %v3659, 0.0
    %v3708 = vmax.f32 %v3660, 0.0
    %v3709 = vmax.f32 %v3661, 0.0
    %v3710 = vmax.f32 %v3662, 0.0
    %v3711 = vmax.f32 %v3663, 0.0
    %v3712 = vmax.f32 %v3664, 0.0
    %v3713 = vmax.f32 %v3665, 0.0
    %v3714 = vmax.f32 %v3666, 0.0
    %v3715 = vmax.f32 %v3667, 0.0
    %v3716 = vmax.f32 %v3668, 0.0
    %v3717 = vmax.f32 %v3669, 0.0
    %v3718 = vmax.f32 %v3670, 0.0
    %v3719 = vmax.f32 %v3671, 0.0
    %v3720 = vmax.f32 %v3672, 0.0
    %v3721 = vpack.c.bf16 %v3677, %v3673
    %v3722 = vpack.c.bf16 %v3678, %v3674
    %v3723 = vpack.c.bf16 %v3679, %v3675
    %v3724 = vpack.c.bf16 %v3680, %v3676
    %v3725 = vpack.c.bf16 %v3685, %v3681
    %v3726 = vpack.c.bf16 %v3686, %v3682
    %v3727 = vpack.c.bf16 %v3687, %v3683
    %v3728 = vpack.c.bf16 %v3688, %v3684
    %v3729 = vpack.c.bf16 %v3693, %v3689
    %v3730 = vpack.c.bf16 %v3694, %v3690
    %v3731 = vpack.c.bf16 %v3695, %v3691
    %v3732 = vpack.c.bf16 %v3696, %v3692
    %v3733 = vpack.c.bf16 %v3701, %v3697
    %v3734 = vpack.c.bf16 %v3702, %v3698
    %v3735 = vpack.c.bf16 %v3703, %v3699
    %v3736 = vpack.c.bf16 %v3704, %v3700
    %v3737 = vpack.c.bf16 %v3709, %v3705
    %v3738 = vpack.c.bf16 %v3710, %v3706
    %v3739 = vpack.c.bf16 %v3711, %v3707
    %v3740 = vpack.c.bf16 %v3712, %v3708
    %v3741 = vpack.c.bf16 %v3717, %v3713
    %v3742 = vpack.c.bf16 %v3718, %v3714
    %v3743 = vpack.c.bf16 %v3719, %v3715
    %v3744 = vpack.c.bf16 %v3720, %v3716
    %v3745 = vld [vmem:[%s10] sm:$0x1]
    %v3747 = vlaneseq
    %v3748 = vshrl.u32 %v3747, 7
    %v3749 = vsub.s32 0, %v3748
    %v3750 = vrot.slane %v3745, %v3749
    %v3752 = vld [vmem:[#allocation13] sm:$0xf]
    %v3753 = vld [vmem:[#allocation13 + $0x4] sm:$0xf]
    %v3754 = vld [vmem:[#allocation13 + $0x8] sm:$0xf]
    %v3755 = vld [vmem:[#allocation13 + $0xc] sm:$0xf]
    %v3756 = vld [vmem:[#allocation13 + $0x10] sm:$0xf]
    %v3757 = vld [vmem:[#allocation13 + $0x14] sm:$0xf]
    %v3758 = vld [vmem:[#allocation13 + $0x18] sm:$0xf]
    %v3759 = vld [vmem:[#allocation13 + $0x1c] sm:$0xf]
    %v3760 = vld [vmem:[#allocation13 + $0x20] sm:$0xf]
    %v3761 = vld [vmem:[#allocation13 + $0x24] sm:$0xf]
    %v3762 = vld [vmem:[#allocation13 + $0x28] sm:$0xf]
    %v3763 = vld [vmem:[#allocation13 + $0x2c] sm:$0xf]
    %v3764 = vld [vmem:[#allocation13 + $0x30] sm:$0xf]
    %v3765 = vld [vmem:[#allocation13 + $0x34] sm:$0xf]
    %v3766 = vld [vmem:[#allocation13 + $0x38] sm:$0xf]
    %v3767 = vld [vmem:[#allocation13 + $0x3c] sm:$0xf]
    %v3768 = vld [vmem:[#allocation13 + $0x40] sm:$0xf]
    %v3769 = vld [vmem:[#allocation13 + $0x44] sm:$0xf]
    %v3770 = vld [vmem:[#allocation13 + $0x48] sm:$0xf]
    %v3771 = vld [vmem:[#allocation13 + $0x4c] sm:$0xf]
    %v3772 = vld [vmem:[#allocation13 + $0x50] sm:$0xf]
    %v3773 = vld [vmem:[#allocation13 + $0x54] sm:$0xf]
    %v3774 = vld [vmem:[#allocation13 + $0x58] sm:$0xf]
    %v3775 = vld [vmem:[#allocation13 + $0x5c] sm:$0xf]
    %v3776 = vld [vmem:[#allocation13 + $0x60] sm:$0xf]
    %v3777 = vld [vmem:[#allocation13 + $0x64] sm:$0xf]
    %v3778 = vld [vmem:[#allocation13 + $0x68] sm:$0xf]
    %v3779 = vld [vmem:[#allocation13 + $0x6c] sm:$0xf]
    %v3780 = vld [vmem:[#allocation13 + $0x70] sm:$0xf]
    %v3781 = vld [vmem:[#allocation13 + $0x74] sm:$0xf]
    %v3782 = vld [vmem:[#allocation13 + $0x78] sm:$0xf]
    %v3783 = vld [vmem:[#allocation13 + $0x7c] sm:$0xf]
    %v3784 = vld [vmem:[#allocation13 + $0x80] sm:$0xf]
    %v3785 = vld [vmem:[#allocation13 + $0x84] sm:$0xf]
    %v3786 = vld [vmem:[#allocation13 + $0x88] sm:$0xf]
    %v3787 = vld [vmem:[#allocation13 + $0x8c] sm:$0xf]
    %v3788 = vld [vmem:[#allocation13 + $0x90] sm:$0xf]
    %v3789 = vld [vmem:[#allocation13 + $0x94] sm:$0xf]
    %v3790 = vld [vmem:[#allocation13 + $0x98] sm:$0xf]
    %v3791 = vld [vmem:[#allocation13 + $0x9c] sm:$0xf]
    %v3792 = vld [vmem:[#allocation13 + $0xa0] sm:$0xf]
    %v3793 = vld [vmem:[#allocation13 + $0xa4] sm:$0xf]
    %v3794 = vld [vmem:[#allocation13 + $0xa8] sm:$0xf]
    %v3795 = vld [vmem:[#allocation13 + $0xac] sm:$0xf]
    %v3796 = vld [vmem:[#allocation13 + $0xb0] sm:$0xf]
    %v3797 = vld [vmem:[#allocation13 + $0xb4] sm:$0xf]
    %v3798 = vld [vmem:[#allocation13 + $0xb8] sm:$0xf]
    %v3799 = vld [vmem:[#allocation13 + $0xbc] sm:$0xf]
    %v3800 = vld [vmem:[#allocation13 + $0xc0] sm:$0xf]
    %v3801 = vld [vmem:[#allocation13 + $0xc4] sm:$0xf]
    %v3802 = vld [vmem:[#allocation13 + $0xc8] sm:$0xf]
    %v3803 = vld [vmem:[#allocation13 + $0xcc] sm:$0xf]
    %v3804 = vld [vmem:[#allocation13 + $0xd0] sm:$0xf]
    %v3805 = vld [vmem:[#allocation13 + $0xd4] sm:$0xf]
    %v3806 = vld [vmem:[#allocation13 + $0xd8] sm:$0xf]
    %v3807 = vld [vmem:[#allocation13 + $0xdc] sm:$0xf]
    %v3808 = vld [vmem:[#allocation13 + $0xe0] sm:$0xf]
    %v3809 = vld [vmem:[#allocation13 + $0xe4] sm:$0xf]
    %v3810 = vld [vmem:[#allocation13 + $0xe8] sm:$0xf]
    %v3811 = vld [vmem:[#allocation13 + $0xec] sm:$0xf]
    %v3812 = vld [vmem:[#allocation13 + $0xf0] sm:$0xf]
    %v3813 = vld [vmem:[#allocation13 + $0xf4] sm:$0xf]
    %v3814 = vld [vmem:[#allocation13 + $0xf8] sm:$0xf]
    %v3815 = vld [vmem:[#allocation13 + $0xfc] sm:$0xf]
    %v3880 = vunpack.c.l.b16 %v3752
    %v3881 = vunpack.c.l.b16 %v3753
    %v3882 = vunpack.c.l.b16 %v3754
    %v3883 = vunpack.c.l.b16 %v3755
    %v3884 = vunpack.c.l.b16 %v3756
    %v3885 = vunpack.c.l.b16 %v3757
    %v3886 = vunpack.c.l.b16 %v3758
    %v3887 = vunpack.c.l.b16 %v3759
    %v3888 = vunpack.c.l.b16 %v3760
    %v3889 = vunpack.c.l.b16 %v3761
    %v3890 = vunpack.c.l.b16 %v3762
    %v3891 = vunpack.c.l.b16 %v3763
    %v3892 = vunpack.c.l.b16 %v3764
    %v3893 = vunpack.c.l.b16 %v3765
    %v3894 = vunpack.c.l.b16 %v3766
    %v3895 = vunpack.c.l.b16 %v3767
    %v3896 = vunpack.c.l.b16 %v3768
    %v3897 = vunpack.c.l.b16 %v3769
    %v3898 = vunpack.c.l.b16 %v3770
    %v3899 = vunpack.c.l.b16 %v3771
    %v3900 = vunpack.c.l.b16 %v3772
    %v3901 = vunpack.c.l.b16 %v3773
    %v3902 = vunpack.c.l.b16 %v3774
    %v3903 = vunpack.c.l.b16 %v3775
    %v3904 = vunpack.c.l.b16 %v3776
    %v3905 = vunpack.c.l.b16 %v3777
    %v3906 = vunpack.c.l.b16 %v3778
    %v3907 = vunpack.c.l.b16 %v3779
    %v3908 = vunpack.c.l.b16 %v3780
    %v3909 = vunpack.c.l.b16 %v3781
    %v3910 = vunpack.c.l.b16 %v3782
    %v3911 = vunpack.c.l.b16 %v3783
    %v3912 = vunpack.c.l.b16 %v3784
    %v3913 = vunpack.c.l.b16 %v3785
    %v3914 = vunpack.c.l.b16 %v3786
    %v3915 = vunpack.c.l.b16 %v3787
    %v3916 = vunpack.c.l.b16 %v3788
    %v3917 = vunpack.c.l.b16 %v3789
    %v3918 = vunpack.c.l.b16 %v3790
    %v3919 = vunpack.c.l.b16 %v3791
    %v3920 = vunpack.c.l.b16 %v3792
    %v3921 = vunpack.c.l.b16 %v3793
    %v3922 = vunpack.c.l.b16 %v3794
    %v3923 = vunpack.c.l.b16 %v3795
    %v3924 = vunpack.c.l.b16 %v3796
    %v3925 = vunpack.c.l.b16 %v3797
    %v3926 = vunpack.c.l.b16 %v3798
    %v3927 = vunpack.c.l.b16 %v3799
    %v3928 = vunpack.c.l.b16 %v3800
    %v3929 = vunpack.c.l.b16 %v3801
    %v3930 = vunpack.c.l.b16 %v3802
    %v3931 = vunpack.c.l.b16 %v3803
    %v3932 = vunpack.c.l.b16 %v3804
    %v3933 = vunpack.c.l.b16 %v3805
    %v3934 = vunpack.c.l.b16 %v3806
    %v3935 = vunpack.c.l.b16 %v3807
    %v3936 = vunpack.c.l.b16 %v3808
    %v3937 = vunpack.c.l.b16 %v3809
    %v3938 = vunpack.c.l.b16 %v3810
    %v3939 = vunpack.c.l.b16 %v3811
    %v3940 = vunpack.c.l.b16 %v3812
    %v3941 = vunpack.c.l.b16 %v3813
    %v3942 = vunpack.c.l.b16 %v3814
    %v3943 = vunpack.c.l.b16 %v3815
    %v3944 = vpack.c.b16 %v3881, %v3880
    %v3945 = vpack.c.b16 %v3883, %v3882
    %v3946 = vpack.c.b16 %v3885, %v3884
    %v3947 = vpack.c.b16 %v3887, %v3886
    %v3948 = vpack.c.b16 %v3889, %v3888
    %v3949 = vpack.c.b16 %v3891, %v3890
    %v3950 = vpack.c.b16 %v3893, %v3892
    %v3951 = vpack.c.b16 %v3895, %v3894
    %v3952 = vpack.c.b16 %v3897, %v3896
    %v3953 = vpack.c.b16 %v3899, %v3898
    %v3954 = vpack.c.b16 %v3901, %v3900
    %v3955 = vpack.c.b16 %v3903, %v3902
    %v3956 = vpack.c.b16 %v3905, %v3904
    %v3957 = vpack.c.b16 %v3907, %v3906
    %v3958 = vpack.c.b16 %v3909, %v3908
    %v3959 = vpack.c.b16 %v3911, %v3910
    %v3960 = vpack.c.b16 %v3913, %v3912
    %v3961 = vpack.c.b16 %v3915, %v3914
    %v3962 = vpack.c.b16 %v3917, %v3916
    %v3963 = vpack.c.b16 %v3919, %v3918
    %v3964 = vpack.c.b16 %v3921, %v3920
    %v3965 = vpack.c.b16 %v3923, %v3922
    %v3966 = vpack.c.b16 %v3925, %v3924
    %v3967 = vpack.c.b16 %v3927, %v3926
    %v3968 = vpack.c.b16 %v3929, %v3928
    %v3969 = vpack.c.b16 %v3931, %v3930
    %v3970 = vpack.c.b16 %v3933, %v3932
    %v3971 = vpack.c.b16 %v3935, %v3934
    %v3972 = vpack.c.b16 %v3937, %v3936
    %v3973 = vpack.c.b16 %v3939, %v3938
    %v3974 = vpack.c.b16 %v3941, %v3940
    %v3975 = vpack.c.b16 %v3943, %v3942
    %4008 = vmatprep.subr.bf16.mxu0 0
    %4009 = vmatpush1.bf16.msra.mxu0 %v3951
    %4010 = vmatprep.subr.bf16.mxu0 0
    %4011 = vmatpush1.bf16.msra.mxu0 %v3950
    %4012 = vmatprep.subr.bf16.mxu0 0
    %4013 = vmatpush1.bf16.msra.mxu0 %v3949
    %4014 = vmatprep.subr.bf16.mxu0 0
    %4015 = vmatpush1.bf16.msra.mxu0 %v3948
    %4016 = vmatprep.subr.bf16.mxu0 0
    %4017 = vmatpush1.bf16.msra.mxu0 %v3947
    %4018 = vmatprep.subr.bf16.mxu0 0
    %4019 = vmatpush1.bf16.msra.mxu0 %v3946
    %4020 = vmatprep.subr.bf16.mxu0 0
    %4021 = vmatpush1.bf16.msra.mxu0 %v3945
    %4022 = vmatprep.subr.bf16.mxu0 0
    %4023 = vmatpush1.bf16.msra.mxu0 %v3944
    %4024 = vmatprep.subr.bf16.mxu0 0
    %4025 = vmatpush2.bf16.msra.mxu0 %v3959
    %4026 = vmatprep.subr.bf16.mxu0 0
    %4027 = vmatpush2.bf16.msra.mxu0 %v3958
    %4028 = vmatprep.subr.bf16.mxu0 0
    %4029 = vmatpush2.bf16.msra.mxu0 %v3957
    %4030 = vmatprep.subr.bf16.mxu0 0
    %4031 = vmatpush2.bf16.msra.mxu0 %v3956
    %4032 = vmatprep.subr.bf16.mxu0 0
    %4033 = vmatpush2.bf16.msra.mxu0 %v3955
    %4034 = vmatprep.subr.bf16.mxu0 0
    %4035 = vmatpush2.bf16.msra.mxu0 %v3954
    %4036 = vmatprep.subr.bf16.mxu0 0
    %4037 = vmatpush2.bf16.msra.mxu0 %v3953
    %4038 = vmatprep.subr.bf16.mxu0 0
    %4039 = vmatpush2.bf16.msra.mxu0 %v3952
    %4040 = vmatprep.mubr.bf16.mxu0 %v3722
    %4041 = vmatmul.mubr.bf16.gmra.mxu0 %v3721
    %v4042 = vpop.f32.mrf.mxu0
    %v4043 = vadd.f32 0.0, %v4042
    %v4044 = vpop.f32.mrf.mxu0
    %v4045 = vpop.f32.mrf.mxu0
    %v4046 = vadd.f32 0.0, %v4045
    %v4047 = vpop.f32.mrf.mxu0
    %4048 = vdwg.mxu0
    %4049 = vmatprep.subr.bf16.mxu0 0
    %4050 = vmatpush1.bf16.msra.mxu0 %v3967
    %4051 = vmatprep.subr.bf16.mxu0 0
    %4052 = vmatpush1.bf16.msra.mxu0 %v3966
    %4053 = vmatprep.subr.bf16.mxu0 0
    %4054 = vmatpush1.bf16.msra.mxu0 %v3965
    %4055 = vmatprep.subr.bf16.mxu0 0
    %4056 = vmatpush1.bf16.msra.mxu0 %v3964
    %4057 = vmatprep.subr.bf16.mxu0 0
    %4058 = vmatpush1.bf16.msra.mxu0 %v3963
    %4059 = vmatprep.subr.bf16.mxu0 0
    %4060 = vmatpush1.bf16.msra.mxu0 %v3962
    %4061 = vmatprep.subr.bf16.mxu0 0
    %4062 = vmatpush1.bf16.msra.mxu0 %v3961
    %4063 = vmatprep.subr.bf16.mxu0 0
    %4064 = vmatpush1.bf16.msra.mxu0 %v3960
    %4065 = vmatprep.subr.bf16.mxu0 0
    %4066 = vmatpush2.bf16.msra.mxu0 %v3975
    %4067 = vmatprep.subr.bf16.mxu0 0
    %4068 = vmatpush2.bf16.msra.mxu0 %v3974
    %4069 = vmatprep.subr.bf16.mxu0 0
    %4070 = vmatpush2.bf16.msra.mxu0 %v3973
    %4071 = vmatprep.subr.bf16.mxu0 0
    %4072 = vmatpush2.bf16.msra.mxu0 %v3972
    %4073 = vmatprep.subr.bf16.mxu0 0
    %4074 = vmatpush2.bf16.msra.mxu0 %v3971
    %4075 = vmatprep.subr.bf16.mxu0 0
    %4076 = vmatpush2.bf16.msra.mxu0 %v3970
    %4077 = vmatprep.subr.bf16.mxu0 0
    %4078 = vmatpush2.bf16.msra.mxu0 %v3969
    %4079 = vmatprep.subr.bf16.mxu0 0
    %4080 = vmatpush2.bf16.msra.mxu0 %v3968
    %4081 = vmatprep.mubr.bf16.mxu0 %v3724
    %4082 = vmatmul.mubr.bf16.gmra.mxu0 %v3723
    %v4083 = vpop.f32.mrf.mxu0
    %v4084 = vadd.f32 %v4043, %v4083
    %v4085 = vpop.f32.mrf.mxu0
    %v4086 = vpop.f32.mrf.mxu0
    %v4087 = vadd.f32 %v4046, %v4086
    %v4088 = vpop.f32.mrf.mxu0
    %4089 = vdwg.mxu0
    %v4090 = vadd.f32 %v3750, %v4084
    %v4091 = vadd.f32 %v3750, %v4087
    %s4092 = scalar_lea.vmem [#allocation13], 256
    %v4093 = vld [vmem:[%s4092] sm:$0xf]
    %v4094 = vld [vmem:[%s4092 + $0x4] sm:$0xf]
    %v4095 = vld [vmem:[%s4092 + $0x8] sm:$0xf]
    %v4096 = vld [vmem:[%s4092 + $0xc] sm:$0xf]
    %v4097 = vld [vmem:[%s4092 + $0x10] sm:$0xf]
    %v4098 = vld [vmem:[%s4092 + $0x14] sm:$0xf]
    %v4099 = vld [vmem:[%s4092 + $0x18] sm:$0xf]
    %v4100 = vld [vmem:[%s4092 + $0x1c] sm:$0xf]
    %v4101 = vld [vmem:[%s4092 + $0x20] sm:$0xf]
    %v4102 = vld [vmem:[%s4092 + $0x24] sm:$0xf]
    %v4103 = vld [vmem:[%s4092 + $0x28] sm:$0xf]
    %v4104 = vld [vmem:[%s4092 + $0x2c] sm:$0xf]
    %v4105 = vld [vmem:[%s4092 + $0x30] sm:$0xf]
    %v4106 = vld [vmem:[%s4092 + $0x34] sm:$0xf]
    %v4107 = vld [vmem:[%s4092 + $0x38] sm:$0xf]
    %v4108 = vld [vmem:[%s4092 + $0x3c] sm:$0xf]
    %v4109 = vld [vmem:[%s4092 + $0x40] sm:$0xf]
    %v4110 = vld [vmem:[%s4092 + $0x44] sm:$0xf]
    %v4111 = vld [vmem:[%s4092 + $0x48] sm:$0xf]
    %v4112 = vld [vmem:[%s4092 + $0x4c] sm:$0xf]
    %v4113 = vld [vmem:[%s4092 + $0x50] sm:$0xf]
    %v4114 = vld [vmem:[%s4092 + $0x54] sm:$0xf]
    %v4115 = vld [vmem:[%s4092 + $0x58] sm:$0xf]
    %v4116 = vld [vmem:[%s4092 + $0x5c] sm:$0xf]
    %v4117 = vld [vmem:[%s4092 + $0x60] sm:$0xf]
    %v4118 = vld [vmem:[%s4092 + $0x64] sm:$0xf]
    %v4119 = vld [vmem:[%s4092 + $0x68] sm:$0xf]
    %v4120 = vld [vmem:[%s4092 + $0x6c] sm:$0xf]
    %v4121 = vld [vmem:[%s4092 + $0x70] sm:$0xf]
    %v4122 = vld [vmem:[%s4092 + $0x74] sm:$0xf]
    %v4123 = vld [vmem:[%s4092 + $0x78] sm:$0xf]
    %v4124 = vld [vmem:[%s4092 + $0x7c] sm:$0xf]
    %v4125 = vld [vmem:[%s4092 + $0x80] sm:$0xf]
    %v4126 = vld [vmem:[%s4092 + $0x84] sm:$0xf]
    %v4127 = vld [vmem:[%s4092 + $0x88] sm:$0xf]
    %v4128 = vld [vmem:[%s4092 + $0x8c] sm:$0xf]
    %v4129 = vld [vmem:[%s4092 + $0x90] sm:$0xf]
    %v4130 = vld [vmem:[%s4092 + $0x94] sm:$0xf]
    %v4131 = vld [vmem:[%s4092 + $0x98] sm:$0xf]
    %v4132 = vld [vmem:[%s4092 + $0x9c] sm:$0xf]
    %v4133 = vld [vmem:[%s4092 + $0xa0] sm:$0xf]
    %v4134 = vld [vmem:[%s4092 + $0xa4] sm:$0xf]
    %v4135 = vld [vmem:[%s4092 + $0xa8] sm:$0xf]
    %v4136 = vld [vmem:[%s4092 + $0xac] sm:$0xf]
    %v4137 = vld [vmem:[%s4092 + $0xb0] sm:$0xf]
    %v4138 = vld [vmem:[%s4092 + $0xb4] sm:$0xf]
    %v4139 = vld [vmem:[%s4092 + $0xb8] sm:$0xf]
    %v4140 = vld [vmem:[%s4092 + $0xbc] sm:$0xf]
    %v4141 = vld [vmem:[%s4092 + $0xc0] sm:$0xf]
    %v4142 = vld [vmem:[%s4092 + $0xc4] sm:$0xf]
    %v4143 = vld [vmem:[%s4092 + $0xc8] sm:$0xf]
    %v4144 = vld [vmem:[%s4092 + $0xcc] sm:$0xf]
    %v4145 = vld [vmem:[%s4092 + $0xd0] sm:$0xf]
    %v4146 = vld [vmem:[%s4092 + $0xd4] sm:$0xf]
    %v4147 = vld [vmem:[%s4092 + $0xd8] sm:$0xf]
    %v4148 = vld [vmem:[%s4092 + $0xdc] sm:$0xf]
    %v4149 = vld [vmem:[%s4092 + $0xe0] sm:$0xf]
    %v4150 = vld [vmem:[%s4092 + $0xe4] sm:$0xf]
    %v4151 = vld [vmem:[%s4092 + $0xe8] sm:$0xf]
    %v4152 = vld [vmem:[%s4092 + $0xec] sm:$0xf]
    %v4153 = vld [vmem:[%s4092 + $0xf0] sm:$0xf]
    %v4154 = vld [vmem:[%s4092 + $0xf4] sm:$0xf]
    %v4155 = vld [vmem:[%s4092 + $0xf8] sm:$0xf]
    %v4156 = vld [vmem:[%s4092 + $0xfc] sm:$0xf]
    %v4221 = vunpack.c.l.b16 %v4093
    %v4222 = vunpack.c.l.b16 %v4094
    %v4223 = vunpack.c.l.b16 %v4095
    %v4224 = vunpack.c.l.b16 %v4096
    %v4225 = vunpack.c.l.b16 %v4097
    %v4226 = vunpack.c.l.b16 %v4098
    %v4227 = vunpack.c.l.b16 %v4099
    %v4228 = vunpack.c.l.b16 %v4100
    %v4229 = vunpack.c.l.b16 %v4101
    %v4230 = vunpack.c.l.b16 %v4102
    %v4231 = vunpack.c.l.b16 %v4103
    %v4232 = vunpack.c.l.b16 %v4104
    %v4233 = vunpack.c.l.b16 %v4105
    %v4234 = vunpack.c.l.b16 %v4106
    %v4235 = vunpack.c.l.b16 %v4107
    %v4236 = vunpack.c.l.b16 %v4108
    %v4237 = vunpack.c.l.b16 %v4109
    %v4238 = vunpack.c.l.b16 %v4110
    %v4239 = vunpack.c.l.b16 %v4111
    %v4240 = vunpack.c.l.b16 %v4112
    %v4241 = vunpack.c.l.b16 %v4113
    %v4242 = vunpack.c.l.b16 %v4114
    %v4243 = vunpack.c.l.b16 %v4115
    %v4244 = vunpack.c.l.b16 %v4116
    %v4245 = vunpack.c.l.b16 %v4117
    %v4246 = vunpack.c.l.b16 %v4118
    %v4247 = vunpack.c.l.b16 %v4119
    %v4248 = vunpack.c.l.b16 %v4120
    %v4249 = vunpack.c.l.b16 %v4121
    %v4250 = vunpack.c.l.b16 %v4122
    %v4251 = vunpack.c.l.b16 %v4123
    %v4252 = vunpack.c.l.b16 %v4124
    %v4253 = vunpack.c.l.b16 %v4125
    %v4254 = vunpack.c.l.b16 %v4126
    %v4255 = vunpack.c.l.b16 %v4127
    %v4256 = vunpack.c.l.b16 %v4128
    %v4257 = vunpack.c.l.b16 %v4129
    %v4258 = vunpack.c.l.b16 %v4130
    %v4259 = vunpack.c.l.b16 %v4131
    %v4260 = vunpack.c.l.b16 %v4132
    %v4261 = vunpack.c.l.b16 %v4133
    %v4262 = vunpack.c.l.b16 %v4134
    %v4263 = vunpack.c.l.b16 %v4135
    %v4264 = vunpack.c.l.b16 %v4136
    %v4265 = vunpack.c.l.b16 %v4137
    %v4266 = vunpack.c.l.b16 %v4138
    %v4267 = vunpack.c.l.b16 %v4139
    %v4268 = vunpack.c.l.b16 %v4140
    %v4269 = vunpack.c.l.b16 %v4141
    %v4270 = vunpack.c.l.b16 %v4142
    %v4271 = vunpack.c.l.b16 %v4143
    %v4272 = vunpack.c.l.b16 %v4144
    %v4273 = vunpack.c.l.b16 %v4145
    %v4274 = vunpack.c.l.b16 %v4146
    %v4275 = vunpack.c.l.b16 %v4147
    %v4276 = vunpack.c.l.b16 %v4148
    %v4277 = vunpack.c.l.b16 %v4149
    %v4278 = vunpack.c.l.b16 %v4150
    %v4279 = vunpack.c.l.b16 %v4151
    %v4280 = vunpack.c.l.b16 %v4152
    %v4281 = vunpack.c.l.b16 %v4153
    %v4282 = vunpack.c.l.b16 %v4154
    %v4283 = vunpack.c.l.b16 %v4155
    %v4284 = vunpack.c.l.b16 %v4156
    %v4285 = vpack.c.b16 %v4222, %v4221
    %v4286 = vpack.c.b16 %v4224, %v4223
    %v4287 = vpack.c.b16 %v4226, %v4225
    %v4288 = vpack.c.b16 %v4228, %v4227
    %v4289 = vpack.c.b16 %v4230, %v4229
    %v4290 = vpack.c.b16 %v4232, %v4231
    %v4291 = vpack.c.b16 %v4234, %v4233
    %v4292 = vpack.c.b16 %v4236, %v4235
    %v4293 = vpack.c.b16 %v4238, %v4237
    %v4294 = vpack.c.b16 %v4240, %v4239
    %v4295 = vpack.c.b16 %v4242, %v4241
    %v4296 = vpack.c.b16 %v4244, %v4243
    %v4297 = vpack.c.b16 %v4246, %v4245
    %v4298 = vpack.c.b16 %v4248, %v4247
    %v4299 = vpack.c.b16 %v4250, %v4249
    %v4300 = vpack.c.b16 %v4252, %v4251
    %v4301 = vpack.c.b16 %v4254, %v4253
    %v4302 = vpack.c.b16 %v4256, %v4255
    %v4303 = vpack.c.b16 %v4258, %v4257
    %v4304 = vpack.c.b16 %v4260, %v4259
    %v4305 = vpack.c.b16 %v4262, %v4261
    %v4306 = vpack.c.b16 %v4264, %v4263
    %v4307 = vpack.c.b16 %v4266, %v4265
    %v4308 = vpack.c.b16 %v4268, %v4267
    %v4309 = vpack.c.b16 %v4270, %v4269
    %v4310 = vpack.c.b16 %v4272, %v4271
    %v4311 = vpack.c.b16 %v4274, %v4273
    %v4312 = vpack.c.b16 %v4276, %v4275
    %v4313 = vpack.c.b16 %v4278, %v4277
    %v4314 = vpack.c.b16 %v4280, %v4279
    %v4315 = vpack.c.b16 %v4282, %v4281
    %v4316 = vpack.c.b16 %v4284, %v4283
    %4349 = vmatprep.subr.bf16.mxu0 0
    %4350 = vmatpush1.bf16.msra.mxu0 %v4292
    %4351 = vmatprep.subr.bf16.mxu0 0
    %4352 = vmatpush1.bf16.msra.mxu0 %v4291
    %4353 = vmatprep.subr.bf16.mxu0 0
    %4354 = vmatpush1.bf16.msra.mxu0 %v4290
    %4355 = vmatprep.subr.bf16.mxu0 0
    %4356 = vmatpush1.bf16.msra.mxu0 %v4289
    %4357 = vmatprep.subr.bf16.mxu0 0
    %4358 = vmatpush1.bf16.msra.mxu0 %v4288
    %4359 = vmatprep.subr.bf16.mxu0 0
    %4360 = vmatpush1.bf16.msra.mxu0 %v4287
    %4361 = vmatprep.subr.bf16.mxu0 0
    %4362 = vmatpush1.bf16.msra.mxu0 %v4286
    %4363 = vmatprep.subr.bf16.mxu0 0
    %4364 = vmatpush1.bf16.msra.mxu0 %v4285
    %4365 = vmatprep.subr.bf16.mxu0 0
    %4366 = vmatpush2.bf16.msra.mxu0 %v4300
    %4367 = vmatprep.subr.bf16.mxu0 0
    %4368 = vmatpush2.bf16.msra.mxu0 %v4299
    %4369 = vmatprep.subr.bf16.mxu0 0
    %4370 = vmatpush2.bf16.msra.mxu0 %v4298
    %4371 = vmatprep.subr.bf16.mxu0 0
    %4372 = vmatpush2.bf16.msra.mxu0 %v4297
    %4373 = vmatprep.subr.bf16.mxu0 0
    %4374 = vmatpush2.bf16.msra.mxu0 %v4296
    %4375 = vmatprep.subr.bf16.mxu0 0
    %4376 = vmatpush2.bf16.msra.mxu0 %v4295
    %4377 = vmatprep.subr.bf16.mxu0 0
    %4378 = vmatpush2.bf16.msra.mxu0 %v4294
    %4379 = vmatprep.subr.bf16.mxu0 0
    %4380 = vmatpush2.bf16.msra.mxu0 %v4293
    %4381 = vmatprep.mubr.bf16.mxu0 %v3726
    %4382 = vmatmul.mubr.bf16.gmra.mxu0 %v3725
    %v4383 = vpop.f32.mrf.mxu0
    %v4384 = vadd.f32 0.0, %v4383
    %v4385 = vpop.f32.mrf.mxu0
    %v4386 = vpop.f32.mrf.mxu0
    %v4387 = vadd.f32 0.0, %v4386
    %v4388 = vpop.f32.mrf.mxu0
    %4389 = vdwg.mxu0
    %4390 = vmatprep.subr.bf16.mxu0 0
    %4391 = vmatpush1.bf16.msra.mxu0 %v4308
    %4392 = vmatprep.subr.bf16.mxu0 0
    %4393 = vmatpush1.bf16.msra.mxu0 %v4307
    %4394 = vmatprep.subr.bf16.mxu0 0
    %4395 = vmatpush1.bf16.msra.mxu0 %v4306
    %4396 = vmatprep.subr.bf16.mxu0 0
    %4397 = vmatpush1.bf16.msra.mxu0 %v4305
    %4398 = vmatprep.subr.bf16.mxu0 0
    %4399 = vmatpush1.bf16.msra.mxu0 %v4304
    %4400 = vmatprep.subr.bf16.mxu0 0
    %4401 = vmatpush1.bf16.msra.mxu0 %v4303
    %4402 = vmatprep.subr.bf16.mxu0 0
    %4403 = vmatpush1.bf16.msra.mxu0 %v4302
    %4404 = vmatprep.subr.bf16.mxu0 0
    %4405 = vmatpush1.bf16.msra.mxu0 %v4301
    %4406 = vmatprep.subr.bf16.mxu0 0
    %4407 = vmatpush2.bf16.msra.mxu0 %v4316
    %4408 = vmatprep.subr.bf16.mxu0 0
    %4409 = vmatpush2.bf16.msra.mxu0 %v4315
    %4410 = vmatprep.subr.bf16.mxu0 0
    %4411 = vmatpush2.bf16.msra.mxu0 %v4314
    %4412 = vmatprep.subr.bf16.mxu0 0
    %4413 = vmatpush2.bf16.msra.mxu0 %v4313
    %4414 = vmatprep.subr.bf16.mxu0 0
    %4415 = vmatpush2.bf16.msra.mxu0 %v4312
    %4416 = vmatprep.subr.bf16.mxu0 0
    %4417 = vmatpush2.bf16.msra.mxu0 %v4311
    %4418 = vmatprep.subr.bf16.mxu0 0
    %4419 = vmatpush2.bf16.msra.mxu0 %v4310
    %4420 = vmatprep.subr.bf16.mxu0 0
    %4421 = vmatpush2.bf16.msra.mxu0 %v4309
    %4422 = vmatprep.mubr.bf16.mxu0 %v3728
    %4423 = vmatmul.mubr.bf16.gmra.mxu0 %v3727
    %v4424 = vpop.f32.mrf.mxu0
    %v4425 = vadd.f32 %v4384, %v4424
    %v4426 = vpop.f32.mrf.mxu0
    %v4427 = vpop.f32.mrf.mxu0
    %v4428 = vadd.f32 %v4387, %v4427
    %v4429 = vpop.f32.mrf.mxu0
    %4430 = vdwg.mxu0
    %v4431 = vadd.f32 %v4090, %v4425
    %v4432 = vadd.f32 %v4091, %v4428
    %s4433 = scalar_lea.vmem [#allocation13], 512
    %v4434 = vld [vmem:[%s4433] sm:$0xf]
    %v4435 = vld [vmem:[%s4433 + $0x4] sm:$0xf]
    %v4436 = vld [vmem:[%s4433 + $0x8] sm:$0xf]
    %v4437 = vld [vmem:[%s4433 + $0xc] sm:$0xf]
    %v4438 = vld [vmem:[%s4433 + $0x10] sm:$0xf]
    %v4439 = vld [vmem:[%s4433 + $0x14] sm:$0xf]
    %v4440 = vld [vmem:[%s4433 + $0x18] sm:$0xf]
    %v4441 = vld [vmem:[%s4433 + $0x1c] sm:$0xf]
    %v4442 = vld [vmem:[%s4433 + $0x20] sm:$0xf]
    %v4443 = vld [vmem:[%s4433 + $0x24] sm:$0xf]
    %v4444 = vld [vmem:[%s4433 + $0x28] sm:$0xf]
    %v4445 = vld [vmem:[%s4433 + $0x2c] sm:$0xf]
    %v4446 = vld [vmem:[%s4433 + $0x30] sm:$0xf]
    %v4447 = vld [vmem:[%s4433 + $0x34] sm:$0xf]
    %v4448 = vld [vmem:[%s4433 + $0x38] sm:$0xf]
    %v4449 = vld [vmem:[%s4433 + $0x3c] sm:$0xf]
    %v4450 = vld [vmem:[%s4433 + $0x40] sm:$0xf]
    %v4451 = vld [vmem:[%s4433 + $0x44] sm:$0xf]
    %v4452 = vld [vmem:[%s4433 + $0x48] sm:$0xf]
    %v4453 = vld [vmem:[%s4433 + $0x4c] sm:$0xf]
    %v4454 = vld [vmem:[%s4433 + $0x50] sm:$0xf]
    %v4455 = vld [vmem:[%s4433 + $0x54] sm:$0xf]
    %v4456 = vld [vmem:[%s4433 + $0x58] sm:$0xf]
    %v4457 = vld [vmem:[%s4433 + $0x5c] sm:$0xf]
    %v4458 = vld [vmem:[%s4433 + $0x60] sm:$0xf]
    %v4459 = vld [vmem:[%s4433 + $0x64] sm:$0xf]
    %v4460 = vld [vmem:[%s4433 + $0x68] sm:$0xf]
    %v4461 = vld [vmem:[%s4433 + $0x6c] sm:$0xf]
    %v4462 = vld [vmem:[%s4433 + $0x70] sm:$0xf]
    %v4463 = vld [vmem:[%s4433 + $0x74] sm:$0xf]
    %v4464 = vld [vmem:[%s4433 + $0x78] sm:$0xf]
    %v4465 = vld [vmem:[%s4433 + $0x7c] sm:$0xf]
    %v4466 = vld [vmem:[%s4433 + $0x80] sm:$0xf]
    %v4467 = vld [vmem:[%s4433 + $0x84] sm:$0xf]
    %v4468 = vld [vmem:[%s4433 + $0x88] sm:$0xf]
    %v4469 = vld [vmem:[%s4433 + $0x8c] sm:$0xf]
    %v4470 = vld [vmem:[%s4433 + $0x90] sm:$0xf]
    %v4471 = vld [vmem:[%s4433 + $0x94] sm:$0xf]
    %v4472 = vld [vmem:[%s4433 + $0x98] sm:$0xf]
    %v4473 = vld [vmem:[%s4433 + $0x9c] sm:$0xf]
    %v4474 = vld [vmem:[%s4433 + $0xa0] sm:$0xf]
    %v4475 = vld [vmem:[%s4433 + $0xa4] sm:$0xf]
    %v4476 = vld [vmem:[%s4433 + $0xa8] sm:$0xf]
    %v4477 = vld [vmem:[%s4433 + $0xac] sm:$0xf]
    %v4478 = vld [vmem:[%s4433 + $0xb0] sm:$0xf]
    %v4479 = vld [vmem:[%s4433 + $0xb4] sm:$0xf]
    %v4480 = vld [vmem:[%s4433 + $0xb8] sm:$0xf]
    %v4481 = vld [vmem:[%s4433 + $0xbc] sm:$0xf]
    %v4482 = vld [vmem:[%s4433 + $0xc0] sm:$0xf]
    %v4483 = vld [vmem:[%s4433 + $0xc4] sm:$0xf]
    %v4484 = vld [vmem:[%s4433 + $0xc8] sm:$0xf]
    %v4485 = vld [vmem:[%s4433 + $0xcc] sm:$0xf]
    %v4486 = vld [vmem:[%s4433 + $0xd0] sm:$0xf]
    %v4487 = vld [vmem:[%s4433 + $0xd4] sm:$0xf]
    %v4488 = vld [vmem:[%s4433 + $0xd8] sm:$0xf]
    %v4489 = vld [vmem:[%s4433 + $0xdc] sm:$0xf]
    %v4490 = vld [vmem:[%s4433 + $0xe0] sm:$0xf]
    %v4491 = vld [vmem:[%s4433 + $0xe4] sm:$0xf]
    %v4492 = vld [vmem:[%s4433 + $0xe8] sm:$0xf]
    %v4493 = vld [vmem:[%s4433 + $0xec] sm:$0xf]
    %v4494 = vld [vmem:[%s4433 + $0xf0] sm:$0xf]
    %v4495 = vld [vmem:[%s4433 + $0xf4] sm:$0xf]
    %v4496 = vld [vmem:[%s4433 + $0xf8] sm:$0xf]
    %v4497 = vld [vmem:[%s4433 + $0xfc] sm:$0xf]
    %v4562 = vunpack.c.l.b16 %v4434
    %v4563 = vunpack.c.l.b16 %v4435
    %v4564 = vunpack.c.l.b16 %v4436
    %v4565 = vunpack.c.l.b16 %v4437
    %v4566 = vunpack.c.l.b16 %v4438
    %v4567 = vunpack.c.l.b16 %v4439
    %v4568 = vunpack.c.l.b16 %v4440
    %v4569 = vunpack.c.l.b16 %v4441
    %v4570 = vunpack.c.l.b16 %v4442
    %v4571 = vunpack.c.l.b16 %v4443
    %v4572 = vunpack.c.l.b16 %v4444
    %v4573 = vunpack.c.l.b16 %v4445
    %v4574 = vunpack.c.l.b16 %v4446
    %v4575 = vunpack.c.l.b16 %v4447
    %v4576 = vunpack.c.l.b16 %v4448
    %v4577 = vunpack.c.l.b16 %v4449
    %v4578 = vunpack.c.l.b16 %v4450
    %v4579 = vunpack.c.l.b16 %v4451
    %v4580 = vunpack.c.l.b16 %v4452
    %v4581 = vunpack.c.l.b16 %v4453
    %v4582 = vunpack.c.l.b16 %v4454
    %v4583 = vunpack.c.l.b16 %v4455
    %v4584 = vunpack.c.l.b16 %v4456
    %v4585 = vunpack.c.l.b16 %v4457
    %v4586 = vunpack.c.l.b16 %v4458
    %v4587 = vunpack.c.l.b16 %v4459
    %v4588 = vunpack.c.l.b16 %v4460
    %v4589 = vunpack.c.l.b16 %v4461
    %v4590 = vunpack.c.l.b16 %v4462
    %v4591 = vunpack.c.l.b16 %v4463
    %v4592 = vunpack.c.l.b16 %v4464
    %v4593 = vunpack.c.l.b16 %v4465
    %v4594 = vunpack.c.l.b16 %v4466
    %v4595 = vunpack.c.l.b16 %v4467
    %v4596 = vunpack.c.l.b16 %v4468
    %v4597 = vunpack.c.l.b16 %v4469
    %v4598 = vunpack.c.l.b16 %v4470
    %v4599 = vunpack.c.l.b16 %v4471
    %v4600 = vunpack.c.l.b16 %v4472
    %v4601 = vunpack.c.l.b16 %v4473
    %v4602 = vunpack.c.l.b16 %v4474
    %v4603 = vunpack.c.l.b16 %v4475
    %v4604 = vunpack.c.l.b16 %v4476
    %v4605 = vunpack.c.l.b16 %v4477
    %v4606 = vunpack.c.l.b16 %v4478
    %v4607 = vunpack.c.l.b16 %v4479
    %v4608 = vunpack.c.l.b16 %v4480
    %v4609 = vunpack.c.l.b16 %v4481
    %v4610 = vunpack.c.l.b16 %v4482
    %v4611 = vunpack.c.l.b16 %v4483
    %v4612 = vunpack.c.l.b16 %v4484
    %v4613 = vunpack.c.l.b16 %v4485
    %v4614 = vunpack.c.l.b16 %v4486
    %v4615 = vunpack.c.l.b16 %v4487
    %v4616 = vunpack.c.l.b16 %v4488
    %v4617 = vunpack.c.l.b16 %v4489
    %v4618 = vunpack.c.l.b16 %v4490
    %v4619 = vunpack.c.l.b16 %v4491
    %v4620 = vunpack.c.l.b16 %v4492
    %v4621 = vunpack.c.l.b16 %v4493
    %v4622 = vunpack.c.l.b16 %v4494
    %v4623 = vunpack.c.l.b16 %v4495
    %v4624 = vunpack.c.l.b16 %v4496
    %v4625 = vunpack.c.l.b16 %v4497
    %v4626 = vpack.c.b16 %v4563, %v4562
    %v4627 = vpack.c.b16 %v4565, %v4564
    %v4628 = vpack.c.b16 %v4567, %v4566
    %v4629 = vpack.c.b16 %v4569, %v4568
    %v4630 = vpack.c.b16 %v4571, %v4570
    %v4631 = vpack.c.b16 %v4573, %v4572
    %v4632 = vpack.c.b16 %v4575, %v4574
    %v4633 = vpack.c.b16 %v4577, %v4576
    %v4634 = vpack.c.b16 %v4579, %v4578
    %v4635 = vpack.c.b16 %v4581, %v4580
    %v4636 = vpack.c.b16 %v4583, %v4582
    %v4637 = vpack.c.b16 %v4585, %v4584
    %v4638 = vpack.c.b16 %v4587, %v4586
    %v4639 = vpack.c.b16 %v4589, %v4588
    %v4640 = vpack.c.b16 %v4591, %v4590
    %v4641 = vpack.c.b16 %v4593, %v4592
    %v4642 = vpack.c.b16 %v4595, %v4594
    %v4643 = vpack.c.b16 %v4597, %v4596
    %v4644 = vpack.c.b16 %v4599, %v4598
    %v4645 = vpack.c.b16 %v4601, %v4600
    %v4646 = vpack.c.b16 %v4603, %v4602
    %v4647 = vpack.c.b16 %v4605, %v4604
    %v4648 = vpack.c.b16 %v4607, %v4606
    %v4649 = vpack.c.b16 %v4609, %v4608
    %v4650 = vpack.c.b16 %v4611, %v4610
    %v4651 = vpack.c.b16 %v4613, %v4612
    %v4652 = vpack.c.b16 %v4615, %v4614
    %v4653 = vpack.c.b16 %v4617, %v4616
    %v4654 = vpack.c.b16 %v4619, %v4618
    %v4655 = vpack.c.b16 %v4621, %v4620
    %v4656 = vpack.c.b16 %v4623, %v4622
    %v4657 = vpack.c.b16 %v4625, %v4624
    %4690 = vmatprep.subr.bf16.mxu0 0
    %4691 = vmatpush1.bf16.msra.mxu0 %v4633
    %4692 = vmatprep.subr.bf16.mxu0 0
    %4693 = vmatpush1.bf16.msra.mxu0 %v4632
    %4694 = vmatprep.subr.bf16.mxu0 0
    %4695 = vmatpush1.bf16.msra.mxu0 %v4631
    %4696 = vmatprep.subr.bf16.mxu0 0
    %4697 = vmatpush1.bf16.msra.mxu0 %v4630
    %4698 = vmatprep.subr.bf16.mxu0 0
    %4699 = vmatpush1.bf16.msra.mxu0 %v4629
    %4700 = vmatprep.subr.bf16.mxu0 0
    %4701 = vmatpush1.bf16.msra.mxu0 %v4628
    %4702 = vmatprep.subr.bf16.mxu0 0
    %4703 = vmatpush1.bf16.msra.mxu0 %v4627
    %4704 = vmatprep.subr.bf16.mxu0 0
    %4705 = vmatpush1.bf16.msra.mxu0 %v4626
    %4706 = vmatprep.subr.bf16.mxu0 0
    %4707 = vmatpush2.bf16.msra.mxu0 %v4641
    %4708 = vmatprep.subr.bf16.mxu0 0
    %4709 = vmatpush2.bf16.msra.mxu0 %v4640
    %4710 = vmatprep.subr.bf16.mxu0 0
    %4711 = vmatpush2.bf16.msra.mxu0 %v4639
    %4712 = vmatprep.subr.bf16.mxu0 0
    %4713 = vmatpush2.bf16.msra.mxu0 %v4638
    %4714 = vmatprep.subr.bf16.mxu0 0
    %4715 = vmatpush2.bf16.msra.mxu0 %v4637
    %4716 = vmatprep.subr.bf16.mxu0 0
    %4717 = vmatpush2.bf16.msra.mxu0 %v4636
    %4718 = vmatprep.subr.bf16.mxu0 0
    %4719 = vmatpush2.bf16.msra.mxu0 %v4635
    %4720 = vmatprep.subr.bf16.mxu0 0
    %4721 = vmatpush2.bf16.msra.mxu0 %v4634
    %4722 = vmatprep.mubr.bf16.mxu0 %v3730
    %4723 = vmatmul.mubr.bf16.gmra.mxu0 %v3729
    %v4724 = vpop.f32.mrf.mxu0
    %v4725 = vadd.f32 0.0, %v4724
    %v4726 = vpop.f32.mrf.mxu0
    %v4727 = vpop.f32.mrf.mxu0
    %v4728 = vadd.f32 0.0, %v4727
    %v4729 = vpop.f32.mrf.mxu0
    %4730 = vdwg.mxu0
    %4731 = vmatprep.subr.bf16.mxu0 0
    %4732 = vmatpush1.bf16.msra.mxu0 %v4649
    %4733 = vmatprep.subr.bf16.mxu0 0
    %4734 = vmatpush1.bf16.msra.mxu0 %v4648
    %4735 = vmatprep.subr.bf16.mxu0 0
    %4736 = vmatpush1.bf16.msra.mxu0 %v4647
    %4737 = vmatprep.subr.bf16.mxu0 0
    %4738 = vmatpush1.bf16.msra.mxu0 %v4646
    %4739 = vmatprep.subr.bf16.mxu0 0
    %4740 = vmatpush1.bf16.msra.mxu0 %v4645
    %4741 = vmatprep.subr.bf16.mxu0 0
    %4742 = vmatpush1.bf16.msra.mxu0 %v4644
    %4743 = vmatprep.subr.bf16.mxu0 0
    %4744 = vmatpush1.bf16.msra.mxu0 %v4643
    %4745 = vmatprep.subr.bf16.mxu0 0
    %4746 = vmatpush1.bf16.msra.mxu0 %v4642
    %4747 = vmatprep.subr.bf16.mxu0 0
    %4748 = vmatpush2.bf16.msra.mxu0 %v4657
    %4749 = vmatprep.subr.bf16.mxu0 0
    %4750 = vmatpush2.bf16.msra.mxu0 %v4656
    %4751 = vmatprep.subr.bf16.mxu0 0
    %4752 = vmatpush2.bf16.msra.mxu0 %v4655
    %4753 = vmatprep.subr.bf16.mxu0 0
    %4754 = vmatpush2.bf16.msra.mxu0 %v4654
    %4755 = vmatprep.subr.bf16.mxu0 0
    %4756 = vmatpush2.bf16.msra.mxu0 %v4653
    %4757 = vmatprep.subr.bf16.mxu0 0
    %4758 = vmatpush2.bf16.msra.mxu0 %v4652
    %4759 = vmatprep.subr.bf16.mxu0 0
    %4760 = vmatpush2.bf16.msra.mxu0 %v4651
    %4761 = vmatprep.subr.bf16.mxu0 0
    %4762 = vmatpush2.bf16.msra.mxu0 %v4650
    %4763 = vmatprep.mubr.bf16.mxu0 %v3732
    %4764 = vmatmul.mubr.bf16.gmra.mxu0 %v3731
    %v4765 = vpop.f32.mrf.mxu0
    %v4766 = vadd.f32 %v4725, %v4765
    %v4767 = vpop.f32.mrf.mxu0
    %v4768 = vpop.f32.mrf.mxu0
    %v4769 = vadd.f32 %v4728, %v4768
    %v4770 = vpop.f32.mrf.mxu0
    %4771 = vdwg.mxu0
    %v4772 = vadd.f32 %v4431, %v4766
    %v4773 = vadd.f32 %v4432, %v4769
    %s4774 = scalar_lea.vmem [#allocation13], 768
    %v4775 = vld [vmem:[%s4774] sm:$0xf]
    %v4776 = vld [vmem:[%s4774 + $0x4] sm:$0xf]
    %v4777 = vld [vmem:[%s4774 + $0x8] sm:$0xf]
    %v4778 = vld [vmem:[%s4774 + $0xc] sm:$0xf]
    %v4779 = vld [vmem:[%s4774 + $0x10] sm:$0xf]
    %v4780 = vld [vmem:[%s4774 + $0x14] sm:$0xf]
    %v4781 = vld [vmem:[%s4774 + $0x18] sm:$0xf]
    %v4782 = vld [vmem:[%s4774 + $0x1c] sm:$0xf]
    %v4783 = vld [vmem:[%s4774 + $0x20] sm:$0xf]
    %v4784 = vld [vmem:[%s4774 + $0x24] sm:$0xf]
    %v4785 = vld [vmem:[%s4774 + $0x28] sm:$0xf]
    %v4786 = vld [vmem:[%s4774 + $0x2c] sm:$0xf]
    %v4787 = vld [vmem:[%s4774 + $0x30] sm:$0xf]
    %v4788 = vld [vmem:[%s4774 + $0x34] sm:$0xf]
    %v4789 = vld [vmem:[%s4774 + $0x38] sm:$0xf]
    %v4790 = vld [vmem:[%s4774 + $0x3c] sm:$0xf]
    %v4791 = vld [vmem:[%s4774 + $0x40] sm:$0xf]
    %v4792 = vld [vmem:[%s4774 + $0x44] sm:$0xf]
    %v4793 = vld [vmem:[%s4774 + $0x48] sm:$0xf]
    %v4794 = vld [vmem:[%s4774 + $0x4c] sm:$0xf]
    %v4795 = vld [vmem:[%s4774 + $0x50] sm:$0xf]
    %v4796 = vld [vmem:[%s4774 + $0x54] sm:$0xf]
    %v4797 = vld [vmem:[%s4774 + $0x58] sm:$0xf]
    %v4798 = vld [vmem:[%s4774 + $0x5c] sm:$0xf]
    %v4799 = vld [vmem:[%s4774 + $0x60] sm:$0xf]
    %v4800 = vld [vmem:[%s4774 + $0x64] sm:$0xf]
    %v4801 = vld [vmem:[%s4774 + $0x68] sm:$0xf]
    %v4802 = vld [vmem:[%s4774 + $0x6c] sm:$0xf]
    %v4803 = vld [vmem:[%s4774 + $0x70] sm:$0xf]
    %v4804 = vld [vmem:[%s4774 + $0x74] sm:$0xf]
    %v4805 = vld [vmem:[%s4774 + $0x78] sm:$0xf]
    %v4806 = vld [vmem:[%s4774 + $0x7c] sm:$0xf]
    %v4807 = vld [vmem:[%s4774 + $0x80] sm:$0xf]
    %v4808 = vld [vmem:[%s4774 + $0x84] sm:$0xf]
    %v4809 = vld [vmem:[%s4774 + $0x88] sm:$0xf]
    %v4810 = vld [vmem:[%s4774 + $0x8c] sm:$0xf]
    %v4811 = vld [vmem:[%s4774 + $0x90] sm:$0xf]
    %v4812 = vld [vmem:[%s4774 + $0x94] sm:$0xf]
    %v4813 = vld [vmem:[%s4774 + $0x98] sm:$0xf]
    %v4814 = vld [vmem:[%s4774 + $0x9c] sm:$0xf]
    %v4815 = vld [vmem:[%s4774 + $0xa0] sm:$0xf]
    %v4816 = vld [vmem:[%s4774 + $0xa4] sm:$0xf]
    %v4817 = vld [vmem:[%s4774 + $0xa8] sm:$0xf]
    %v4818 = vld [vmem:[%s4774 + $0xac] sm:$0xf]
    %v4819 = vld [vmem:[%s4774 + $0xb0] sm:$0xf]
    %v4820 = vld [vmem:[%s4774 + $0xb4] sm:$0xf]
    %v4821 = vld [vmem:[%s4774 + $0xb8] sm:$0xf]
    %v4822 = vld [vmem:[%s4774 + $0xbc] sm:$0xf]
    %v4823 = vld [vmem:[%s4774 + $0xc0] sm:$0xf]
    %v4824 = vld [vmem:[%s4774 + $0xc4] sm:$0xf]
    %v4825 = vld [vmem:[%s4774 + $0xc8] sm:$0xf]
    %v4826 = vld [vmem:[%s4774 + $0xcc] sm:$0xf]
    %v4827 = vld [vmem:[%s4774 + $0xd0] sm:$0xf]
    %v4828 = vld [vmem:[%s4774 + $0xd4] sm:$0xf]
    %v4829 = vld [vmem:[%s4774 + $0xd8] sm:$0xf]
    %v4830 = vld [vmem:[%s4774 + $0xdc] sm:$0xf]
    %v4831 = vld [vmem:[%s4774 + $0xe0] sm:$0xf]
    %v4832 = vld [vmem:[%s4774 + $0xe4] sm:$0xf]
    %v4833 = vld [vmem:[%s4774 + $0xe8] sm:$0xf]
    %v4834 = vld [vmem:[%s4774 + $0xec] sm:$0xf]
    %v4835 = vld [vmem:[%s4774 + $0xf0] sm:$0xf]
    %v4836 = vld [vmem:[%s4774 + $0xf4] sm:$0xf]
    %v4837 = vld [vmem:[%s4774 + $0xf8] sm:$0xf]
    %v4838 = vld [vmem:[%s4774 + $0xfc] sm:$0xf]
    %v4903 = vunpack.c.l.b16 %v4775
    %v4904 = vunpack.c.l.b16 %v4776
    %v4905 = vunpack.c.l.b16 %v4777
    %v4906 = vunpack.c.l.b16 %v4778
    %v4907 = vunpack.c.l.b16 %v4779
    %v4908 = vunpack.c.l.b16 %v4780
    %v4909 = vunpack.c.l.b16 %v4781
    %v4910 = vunpack.c.l.b16 %v4782
    %v4911 = vunpack.c.l.b16 %v4783
    %v4912 = vunpack.c.l.b16 %v4784
    %v4913 = vunpack.c.l.b16 %v4785
    %v4914 = vunpack.c.l.b16 %v4786
    %v4915 = vunpack.c.l.b16 %v4787
    %v4916 = vunpack.c.l.b16 %v4788
    %v4917 = vunpack.c.l.b16 %v4789
    %v4918 = vunpack.c.l.b16 %v4790
    %v4919 = vunpack.c.l.b16 %v4791
    %v4920 = vunpack.c.l.b16 %v4792
    %v4921 = vunpack.c.l.b16 %v4793
    %v4922 = vunpack.c.l.b16 %v4794
    %v4923 = vunpack.c.l.b16 %v4795
    %v4924 = vunpack.c.l.b16 %v4796
    %v4925 = vunpack.c.l.b16 %v4797
    %v4926 = vunpack.c.l.b16 %v4798
    %v4927 = vunpack.c.l.b16 %v4799
    %v4928 = vunpack.c.l.b16 %v4800
    %v4929 = vunpack.c.l.b16 %v4801
    %v4930 = vunpack.c.l.b16 %v4802
    %v4931 = vunpack.c.l.b16 %v4803
    %v4932 = vunpack.c.l.b16 %v4804
    %v4933 = vunpack.c.l.b16 %v4805
    %v4934 = vunpack.c.l.b16 %v4806
    %v4935 = vunpack.c.l.b16 %v4807
    %v4936 = vunpack.c.l.b16 %v4808
    %v4937 = vunpack.c.l.b16 %v4809
    %v4938 = vunpack.c.l.b16 %v4810
    %v4939 = vunpack.c.l.b16 %v4811
    %v4940 = vunpack.c.l.b16 %v4812
    %v4941 = vunpack.c.l.b16 %v4813
    %v4942 = vunpack.c.l.b16 %v4814
    %v4943 = vunpack.c.l.b16 %v4815
    %v4944 = vunpack.c.l.b16 %v4816
    %v4945 = vunpack.c.l.b16 %v4817
    %v4946 = vunpack.c.l.b16 %v4818
    %v4947 = vunpack.c.l.b16 %v4819
    %v4948 = vunpack.c.l.b16 %v4820
    %v4949 = vunpack.c.l.b16 %v4821
    %v4950 = vunpack.c.l.b16 %v4822
    %v4951 = vunpack.c.l.b16 %v4823
    %v4952 = vunpack.c.l.b16 %v4824
    %v4953 = vunpack.c.l.b16 %v4825
    %v4954 = vunpack.c.l.b16 %v4826
    %v4955 = vunpack.c.l.b16 %v4827
    %v4956 = vunpack.c.l.b16 %v4828
    %v4957 = vunpack.c.l.b16 %v4829
    %v4958 = vunpack.c.l.b16 %v4830
    %v4959 = vunpack.c.l.b16 %v4831
    %v4960 = vunpack.c.l.b16 %v4832
    %v4961 = vunpack.c.l.b16 %v4833
    %v4962 = vunpack.c.l.b16 %v4834
    %v4963 = vunpack.c.l.b16 %v4835
    %v4964 = vunpack.c.l.b16 %v4836
    %v4965 = vunpack.c.l.b16 %v4837
    %v4966 = vunpack.c.l.b16 %v4838
    %v4967 = vpack.c.b16 %v4904, %v4903
    %v4968 = vpack.c.b16 %v4906, %v4905
    %v4969 = vpack.c.b16 %v4908, %v4907
    %v4970 = vpack.c.b16 %v4910, %v4909
    %v4971 = vpack.c.b16 %v4912, %v4911
    %v4972 = vpack.c.b16 %v4914, %v4913
    %v4973 = vpack.c.b16 %v4916, %v4915
    %v4974 = vpack.c.b16 %v4918, %v4917
    %v4975 = vpack.c.b16 %v4920, %v4919
    %v4976 = vpack.c.b16 %v4922, %v4921
    %v4977 = vpack.c.b16 %v4924, %v4923
    %v4978 = vpack.c.b16 %v4926, %v4925
    %v4979 = vpack.c.b16 %v4928, %v4927
    %v4980 = vpack.c.b16 %v4930, %v4929
    %v4981 = vpack.c.b16 %v4932, %v4931
    %v4982 = vpack.c.b16 %v4934, %v4933
    %v4983 = vpack.c.b16 %v4936, %v4935
    %v4984 = vpack.c.b16 %v4938, %v4937
    %v4985 = vpack.c.b16 %v4940, %v4939
    %v4986 = vpack.c.b16 %v4942, %v4941
    %v4987 = vpack.c.b16 %v4944, %v4943
    %v4988 = vpack.c.b16 %v4946, %v4945
    %v4989 = vpack.c.b16 %v4948, %v4947
    %v4990 = vpack.c.b16 %v4950, %v4949
    %v4991 = vpack.c.b16 %v4952, %v4951
    %v4992 = vpack.c.b16 %v4954, %v4953
    %v4993 = vpack.c.b16 %v4956, %v4955
    %v4994 = vpack.c.b16 %v4958, %v4957
    %v4995 = vpack.c.b16 %v4960, %v4959
    %v4996 = vpack.c.b16 %v4962, %v4961
    %v4997 = vpack.c.b16 %v4964, %v4963
    %v4998 = vpack.c.b16 %v4966, %v4965
    %5031 = vmatprep.subr.bf16.mxu0 0
    %5032 = vmatpush1.bf16.msra.mxu0 %v4974
    %5033 = vmatprep.subr.bf16.mxu0 0
    %5034 = vmatpush1.bf16.msra.mxu0 %v4973
    %5035 = vmatprep.subr.bf16.mxu0 0
    %5036 = vmatpush1.bf16.msra.mxu0 %v4972
    %5037 = vmatprep.subr.bf16.mxu0 0
    %5038 = vmatpush1.bf16.msra.mxu0 %v4971
    %5039 = vmatprep.subr.bf16.mxu0 0
    %5040 = vmatpush1.bf16.msra.mxu0 %v4970
    %5041 = vmatprep.subr.bf16.mxu0 0
    %5042 = vmatpush1.bf16.msra.mxu0 %v4969
    %5043 = vmatprep.subr.bf16.mxu0 0
    %5044 = vmatpush1.bf16.msra.mxu0 %v4968
    %5045 = vmatprep.subr.bf16.mxu0 0
    %5046 = vmatpush1.bf16.msra.mxu0 %v4967
    %5047 = vmatprep.subr.bf16.mxu0 0
    %5048 = vmatpush2.bf16.msra.mxu0 %v4982
    %5049 = vmatprep.subr.bf16.mxu0 0
    %5050 = vmatpush2.bf16.msra.mxu0 %v4981
    %5051 = vmatprep.subr.bf16.mxu0 0
    %5052 = vmatpush2.bf16.msra.mxu0 %v4980
    %5053 = vmatprep.subr.bf16.mxu0 0
    %5054 = vmatpush2.bf16.msra.mxu0 %v4979
    %5055 = vmatprep.subr.bf16.mxu0 0
    %5056 = vmatpush2.bf16.msra.mxu0 %v4978
    %5057 = vmatprep.subr.bf16.mxu0 0
    %5058 = vmatpush2.bf16.msra.mxu0 %v4977
    %5059 = vmatprep.subr.bf16.mxu0 0
    %5060 = vmatpush2.bf16.msra.mxu0 %v4976
    %5061 = vmatprep.subr.bf16.mxu0 0
    %5062 = vmatpush2.bf16.msra.mxu0 %v4975
    %5063 = vmatprep.mubr.bf16.mxu0 %v3734
    %5064 = vmatmul.mubr.bf16.gmra.mxu0 %v3733
    %v5065 = vpop.f32.mrf.mxu0
    %v5066 = vadd.f32 0.0, %v5065
    %v5067 = vpop.f32.mrf.mxu0
    %v5068 = vpop.f32.mrf.mxu0
    %v5069 = vadd.f32 0.0, %v5068
    %v5070 = vpop.f32.mrf.mxu0
    %5071 = vdwg.mxu0
    %5072 = vmatprep.subr.bf16.mxu0 0
    %5073 = vmatpush1.bf16.msra.mxu0 %v4990
    %5074 = vmatprep.subr.bf16.mxu0 0
    %5075 = vmatpush1.bf16.msra.mxu0 %v4989
    %5076 = vmatprep.subr.bf16.mxu0 0
    %5077 = vmatpush1.bf16.msra.mxu0 %v4988
    %5078 = vmatprep.subr.bf16.mxu0 0
    %5079 = vmatpush1.bf16.msra.mxu0 %v4987
    %5080 = vmatprep.subr.bf16.mxu0 0
    %5081 = vmatpush1.bf16.msra.mxu0 %v4986
    %5082 = vmatprep.subr.bf16.mxu0 0
    %5083 = vmatpush1.bf16.msra.mxu0 %v4985
    %5084 = vmatprep.subr.bf16.mxu0 0
    %5085 = vmatpush1.bf16.msra.mxu0 %v4984
    %5086 = vmatprep.subr.bf16.mxu0 0
    %5087 = vmatpush1.bf16.msra.mxu0 %v4983
    %5088 = vmatprep.subr.bf16.mxu0 0
    %5089 = vmatpush2.bf16.msra.mxu0 %v4998
    %5090 = vmatprep.subr.bf16.mxu0 0
    %5091 = vmatpush2.bf16.msra.mxu0 %v4997
    %5092 = vmatprep.subr.bf16.mxu0 0
    %5093 = vmatpush2.bf16.msra.mxu0 %v4996
    %5094 = vmatprep.subr.bf16.mxu0 0
    %5095 = vmatpush2.bf16.msra.mxu0 %v4995
    %5096 = vmatprep.subr.bf16.mxu0 0
    %5097 = vmatpush2.bf16.msra.mxu0 %v4994
    %5098 = vmatprep.subr.bf16.mxu0 0
    %5099 = vmatpush2.bf16.msra.mxu0 %v4993
    %5100 = vmatprep.subr.bf16.mxu0 0
    %5101 = vmatpush2.bf16.msra.mxu0 %v4992
    %5102 = vmatprep.subr.bf16.mxu0 0
    %5103 = vmatpush2.bf16.msra.mxu0 %v4991
    %5104 = vmatprep.mubr.bf16.mxu0 %v3736
    %5105 = vmatmul.mubr.bf16.gmra.mxu0 %v3735
    %v5106 = vpop.f32.mrf.mxu0
    %v5107 = vadd.f32 %v5066, %v5106
    %v5108 = vpop.f32.mrf.mxu0
    %v5109 = vpop.f32.mrf.mxu0
    %v5110 = vadd.f32 %v5069, %v5109
    %v5111 = vpop.f32.mrf.mxu0
    %5112 = vdwg.mxu0
    %v5113 = vadd.f32 %v4772, %v5107
    %v5114 = vadd.f32 %v4773, %v5110
    %s5115 = scalar_lea.vmem [#allocation13], 1024
    %v5116 = vld [vmem:[%s5115] sm:$0xf]
    %v5117 = vld [vmem:[%s5115 + $0x4] sm:$0xf]
    %v5118 = vld [vmem:[%s5115 + $0x8] sm:$0xf]
    %v5119 = vld [vmem:[%s5115 + $0xc] sm:$0xf]
    %v5120 = vld [vmem:[%s5115 + $0x10] sm:$0xf]
    %v5121 = vld [vmem:[%s5115 + $0x14] sm:$0xf]
    %v5122 = vld [vmem:[%s5115 + $0x18] sm:$0xf]
    %v5123 = vld [vmem:[%s5115 + $0x1c] sm:$0xf]
    %v5124 = vld [vmem:[%s5115 + $0x20] sm:$0xf]
    %v5125 = vld [vmem:[%s5115 + $0x24] sm:$0xf]
    %v5126 = vld [vmem:[%s5115 + $0x28] sm:$0xf]
    %v5127 = vld [vmem:[%s5115 + $0x2c] sm:$0xf]
    %v5128 = vld [vmem:[%s5115 + $0x30] sm:$0xf]
    %v5129 = vld [vmem:[%s5115 + $0x34] sm:$0xf]
    %v5130 = vld [vmem:[%s5115 + $0x38] sm:$0xf]
    %v5131 = vld [vmem:[%s5115 + $0x3c] sm:$0xf]
    %v5132 = vld [vmem:[%s5115 + $0x40] sm:$0xf]
    %v5133 = vld [vmem:[%s5115 + $0x44] sm:$0xf]
    %v5134 = vld [vmem:[%s5115 + $0x48] sm:$0xf]
    %v5135 = vld [vmem:[%s5115 + $0x4c] sm:$0xf]
    %v5136 = vld [vmem:[%s5115 + $0x50] sm:$0xf]
    %v5137 = vld [vmem:[%s5115 + $0x54] sm:$0xf]
    %v5138 = vld [vmem:[%s5115 + $0x58] sm:$0xf]
    %v5139 = vld [vmem:[%s5115 + $0x5c] sm:$0xf]
    %v5140 = vld [vmem:[%s5115 + $0x60] sm:$0xf]
    %v5141 = vld [vmem:[%s5115 + $0x64] sm:$0xf]
    %v5142 = vld [vmem:[%s5115 + $0x68] sm:$0xf]
    %v5143 = vld [vmem:[%s5115 + $0x6c] sm:$0xf]
    %v5144 = vld [vmem:[%s5115 + $0x70] sm:$0xf]
    %v5145 = vld [vmem:[%s5115 + $0x74] sm:$0xf]
    %v5146 = vld [vmem:[%s5115 + $0x78] sm:$0xf]
    %v5147 = vld [vmem:[%s5115 + $0x7c] sm:$0xf]
    %v5148 = vld [vmem:[%s5115 + $0x80] sm:$0xf]
    %v5149 = vld [vmem:[%s5115 + $0x84] sm:$0xf]
    %v5150 = vld [vmem:[%s5115 + $0x88] sm:$0xf]
    %v5151 = vld [vmem:[%s5115 + $0x8c] sm:$0xf]
    %v5152 = vld [vmem:[%s5115 + $0x90] sm:$0xf]
    %v5153 = vld [vmem:[%s5115 + $0x94] sm:$0xf]
    %v5154 = vld [vmem:[%s5115 + $0x98] sm:$0xf]
    %v5155 = vld [vmem:[%s5115 + $0x9c] sm:$0xf]
    %v5156 = vld [vmem:[%s5115 + $0xa0] sm:$0xf]
    %v5157 = vld [vmem:[%s5115 + $0xa4] sm:$0xf]
    %v5158 = vld [vmem:[%s5115 + $0xa8] sm:$0xf]
    %v5159 = vld [vmem:[%s5115 + $0xac] sm:$0xf]
    %v5160 = vld [vmem:[%s5115 + $0xb0] sm:$0xf]
    %v5161 = vld [vmem:[%s5115 + $0xb4] sm:$0xf]
    %v5162 = vld [vmem:[%s5115 + $0xb8] sm:$0xf]
    %v5163 = vld [vmem:[%s5115 + $0xbc] sm:$0xf]
    %v5164 = vld [vmem:[%s5115 + $0xc0] sm:$0xf]
    %v5165 = vld [vmem:[%s5115 + $0xc4] sm:$0xf]
    %v5166 = vld [vmem:[%s5115 + $0xc8] sm:$0xf]
    %v5167 = vld [vmem:[%s5115 + $0xcc] sm:$0xf]
    %v5168 = vld [vmem:[%s5115 + $0xd0] sm:$0xf]
    %v5169 = vld [vmem:[%s5115 + $0xd4] sm:$0xf]
    %v5170 = vld [vmem:[%s5115 + $0xd8] sm:$0xf]
    %v5171 = vld [vmem:[%s5115 + $0xdc] sm:$0xf]
    %v5172 = vld [vmem:[%s5115 + $0xe0] sm:$0xf]
    %v5173 = vld [vmem:[%s5115 + $0xe4] sm:$0xf]
    %v5174 = vld [vmem:[%s5115 + $0xe8] sm:$0xf]
    %v5175 = vld [vmem:[%s5115 + $0xec] sm:$0xf]
    %v5176 = vld [vmem:[%s5115 + $0xf0] sm:$0xf]
    %v5177 = vld [vmem:[%s5115 + $0xf4] sm:$0xf]
    %v5178 = vld [vmem:[%s5115 + $0xf8] sm:$0xf]
    %v5179 = vld [vmem:[%s5115 + $0xfc] sm:$0xf]
    %v5244 = vunpack.c.l.b16 %v5116
    %v5245 = vunpack.c.l.b16 %v5117
    %v5246 = vunpack.c.l.b16 %v5118
    %v5247 = vunpack.c.l.b16 %v5119
    %v5248 = vunpack.c.l.b16 %v5120
    %v5249 = vunpack.c.l.b16 %v5121
    %v5250 = vunpack.c.l.b16 %v5122
    %v5251 = vunpack.c.l.b16 %v5123
    %v5252 = vunpack.c.l.b16 %v5124
    %v5253 = vunpack.c.l.b16 %v5125
    %v5254 = vunpack.c.l.b16 %v5126
    %v5255 = vunpack.c.l.b16 %v5127
    %v5256 = vunpack.c.l.b16 %v5128
    %v5257 = vunpack.c.l.b16 %v5129
    %v5258 = vunpack.c.l.b16 %v5130
    %v5259 = vunpack.c.l.b16 %v5131
    %v5260 = vunpack.c.l.b16 %v5132
    %v5261 = vunpack.c.l.b16 %v5133
    %v5262 = vunpack.c.l.b16 %v5134
    %v5263 = vunpack.c.l.b16 %v5135
    %v5264 = vunpack.c.l.b16 %v5136
    %v5265 = vunpack.c.l.b16 %v5137
    %v5266 = vunpack.c.l.b16 %v5138
    %v5267 = vunpack.c.l.b16 %v5139
    %v5268 = vunpack.c.l.b16 %v5140
    %v5269 = vunpack.c.l.b16 %v5141
    %v5270 = vunpack.c.l.b16 %v5142
    %v5271 = vunpack.c.l.b16 %v5143
    %v5272 = vunpack.c.l.b16 %v5144
    %v5273 = vunpack.c.l.b16 %v5145
    %v5274 = vunpack.c.l.b16 %v5146
    %v5275 = vunpack.c.l.b16 %v5147
    %v5276 = vunpack.c.l.b16 %v5148
    %v5277 = vunpack.c.l.b16 %v5149
    %v5278 = vunpack.c.l.b16 %v5150
    %v5279 = vunpack.c.l.b16 %v5151
    %v5280 = vunpack.c.l.b16 %v5152
    %v5281 = vunpack.c.l.b16 %v5153
    %v5282 = vunpack.c.l.b16 %v5154
    %v5283 = vunpack.c.l.b16 %v5155
    %v5284 = vunpack.c.l.b16 %v5156
    %v5285 = vunpack.c.l.b16 %v5157
    %v5286 = vunpack.c.l.b16 %v5158
    %v5287 = vunpack.c.l.b16 %v5159
    %v5288 = vunpack.c.l.b16 %v5160
    %v5289 = vunpack.c.l.b16 %v5161
    %v5290 = vunpack.c.l.b16 %v5162
    %v5291 = vunpack.c.l.b16 %v5163
    %v5292 = vunpack.c.l.b16 %v5164
    %v5293 = vunpack.c.l.b16 %v5165
    %v5294 = vunpack.c.l.b16 %v5166
    %v5295 = vunpack.c.l.b16 %v5167
    %v5296 = vunpack.c.l.b16 %v5168
    %v5297 = vunpack.c.l.b16 %v5169
    %v5298 = vunpack.c.l.b16 %v5170
    %v5299 = vunpack.c.l.b16 %v5171
    %v5300 = vunpack.c.l.b16 %v5172
    %v5301 = vunpack.c.l.b16 %v5173
    %v5302 = vunpack.c.l.b16 %v5174
    %v5303 = vunpack.c.l.b16 %v5175
    %v5304 = vunpack.c.l.b16 %v5176
    %v5305 = vunpack.c.l.b16 %v5177
    %v5306 = vunpack.c.l.b16 %v5178
    %v5307 = vunpack.c.l.b16 %v5179
    %v5308 = vpack.c.b16 %v5245, %v5244
    %v5309 = vpack.c.b16 %v5247, %v5246
    %v5310 = vpack.c.b16 %v5249, %v5248
    %v5311 = vpack.c.b16 %v5251, %v5250
    %v5312 = vpack.c.b16 %v5253, %v5252
    %v5313 = vpack.c.b16 %v5255, %v5254
    %v5314 = vpack.c.b16 %v5257, %v5256
    %v5315 = vpack.c.b16 %v5259, %v5258
    %v5316 = vpack.c.b16 %v5261, %v5260
    %v5317 = vpack.c.b16 %v5263, %v5262
    %v5318 = vpack.c.b16 %v5265, %v5264
    %v5319 = vpack.c.b16 %v5267, %v5266
    %v5320 = vpack.c.b16 %v5269, %v5268
    %v5321 = vpack.c.b16 %v5271, %v5270
    %v5322 = vpack.c.b16 %v5273, %v5272
    %v5323 = vpack.c.b16 %v5275, %v5274
    %v5324 = vpack.c.b16 %v5277, %v5276
    %v5325 = vpack.c.b16 %v5279, %v5278
    %v5326 = vpack.c.b16 %v5281, %v5280
    %v5327 = vpack.c.b16 %v5283, %v5282
    %v5328 = vpack.c.b16 %v5285, %v5284
    %v5329 = vpack.c.b16 %v5287, %v5286
    %v5330 = vpack.c.b16 %v5289, %v5288
    %v5331 = vpack.c.b16 %v5291, %v5290
    %v5332 = vpack.c.b16 %v5293, %v5292
    %v5333 = vpack.c.b16 %v5295, %v5294
    %v5334 = vpack.c.b16 %v5297, %v5296
    %v5335 = vpack.c.b16 %v5299, %v5298
    %v5336 = vpack.c.b16 %v5301, %v5300
    %v5337 = vpack.c.b16 %v5303, %v5302
    %v5338 = vpack.c.b16 %v5305, %v5304
    %v5339 = vpack.c.b16 %v5307, %v5306
    %5372 = vmatprep.subr.bf16.mxu0 0
    %5373 = vmatpush1.bf16.msra.mxu0 %v5315
    %5374 = vmatprep.subr.bf16.mxu0 0
    %5375 = vmatpush1.bf16.msra.mxu0 %v5314
    %5376 = vmatprep.subr.bf16.mxu0 0
    %5377 = vmatpush1.bf16.msra.mxu0 %v5313
    %5378 = vmatprep.subr.bf16.mxu0 0
    %5379 = vmatpush1.bf16.msra.mxu0 %v5312
    %5380 = vmatprep.subr.bf16.mxu0 0
    %5381 = vmatpush1.bf16.msra.mxu0 %v5311
    %5382 = vmatprep.subr.bf16.mxu0 0
    %5383 = vmatpush1.bf16.msra.mxu0 %v5310
    %5384 = vmatprep.subr.bf16.mxu0 0
    %5385 = vmatpush1.bf16.msra.mxu0 %v5309
    %5386 = vmatprep.subr.bf16.mxu0 0
    %5387 = vmatpush1.bf16.msra.mxu0 %v5308
    %5388 = vmatprep.subr.bf16.mxu0 0
    %5389 = vmatpush2.bf16.msra.mxu0 %v5323
    %5390 = vmatprep.subr.bf16.mxu0 0
    %5391 = vmatpush2.bf16.msra.mxu0 %v5322
    %5392 = vmatprep.subr.bf16.mxu0 0
    %5393 = vmatpush2.bf16.msra.mxu0 %v5321
    %5394 = vmatprep.subr.bf16.mxu0 0
    %5395 = vmatpush2.bf16.msra.mxu0 %v5320
    %5396 = vmatprep.subr.bf16.mxu0 0
    %5397 = vmatpush2.bf16.msra.mxu0 %v5319
    %5398 = vmatprep.subr.bf16.mxu0 0
    %5399 = vmatpush2.bf16.msra.mxu0 %v5318
    %5400 = vmatprep.subr.bf16.mxu0 0
    %5401 = vmatpush2.bf16.msra.mxu0 %v5317
    %5402 = vmatprep.subr.bf16.mxu0 0
    %5403 = vmatpush2.bf16.msra.mxu0 %v5316
    %5404 = vmatprep.mubr.bf16.mxu0 %v3738
    %5405 = vmatmul.mubr.bf16.gmra.mxu0 %v3737
    %v5406 = vpop.f32.mrf.mxu0
    %v5407 = vadd.f32 0.0, %v5406
    %v5408 = vpop.f32.mrf.mxu0
    %v5409 = vpop.f32.mrf.mxu0
    %v5410 = vadd.f32 0.0, %v5409
    %v5411 = vpop.f32.mrf.mxu0
    %5412 = vdwg.mxu0
    %5413 = vmatprep.subr.bf16.mxu0 0
    %5414 = vmatpush1.bf16.msra.mxu0 %v5331
    %5415 = vmatprep.subr.bf16.mxu0 0
    %5416 = vmatpush1.bf16.msra.mxu0 %v5330
    %5417 = vmatprep.subr.bf16.mxu0 0
    %5418 = vmatpush1.bf16.msra.mxu0 %v5329
    %5419 = vmatprep.subr.bf16.mxu0 0
    %5420 = vmatpush1.bf16.msra.mxu0 %v5328
    %5421 = vmatprep.subr.bf16.mxu0 0
    %5422 = vmatpush1.bf16.msra.mxu0 %v5327
    %5423 = vmatprep.subr.bf16.mxu0 0
    %5424 = vmatpush1.bf16.msra.mxu0 %v5326
    %5425 = vmatprep.subr.bf16.mxu0 0
    %5426 = vmatpush1.bf16.msra.mxu0 %v5325
    %5427 = vmatprep.subr.bf16.mxu0 0
    %5428 = vmatpush1.bf16.msra.mxu0 %v5324
    %5429 = vmatprep.subr.bf16.mxu0 0
    %5430 = vmatpush2.bf16.msra.mxu0 %v5339
    %5431 = vmatprep.subr.bf16.mxu0 0
    %5432 = vmatpush2.bf16.msra.mxu0 %v5338
    %5433 = vmatprep.subr.bf16.mxu0 0
    %5434 = vmatpush2.bf16.msra.mxu0 %v5337
    %5435 = vmatprep.subr.bf16.mxu0 0
    %5436 = vmatpush2.bf16.msra.mxu0 %v5336
    %5437 = vmatprep.subr.bf16.mxu0 0
    %5438 = vmatpush2.bf16.msra.mxu0 %v5335
    %5439 = vmatprep.subr.bf16.mxu0 0
    %5440 = vmatpush2.bf16.msra.mxu0 %v5334
    %5441 = vmatprep.subr.bf16.mxu0 0
    %5442 = vmatpush2.bf16.msra.mxu0 %v5333
    %5443 = vmatprep.subr.bf16.mxu0 0
    %5444 = vmatpush2.bf16.msra.mxu0 %v5332
    %5445 = vmatprep.mubr.bf16.mxu0 %v3740
    %5446 = vmatmul.mubr.bf16.gmra.mxu0 %v3739
    %v5447 = vpop.f32.mrf.mxu0
    %v5448 = vadd.f32 %v5407, %v5447
    %v5449 = vpop.f32.mrf.mxu0
    %v5450 = vpop.f32.mrf.mxu0
    %v5451 = vadd.f32 %v5410, %v5450
    %v5452 = vpop.f32.mrf.mxu0
    %5453 = vdwg.mxu0
    %v5454 = vadd.f32 %v5113, %v5448
    %v5455 = vadd.f32 %v5114, %v5451
    %s5456 = scalar_lea.vmem [#allocation13], 1280
    %v5457 = vld [vmem:[%s5456] sm:$0xf]
    %v5458 = vld [vmem:[%s5456 + $0x4] sm:$0xf]
    %v5459 = vld [vmem:[%s5456 + $0x8] sm:$0xf]
    %v5460 = vld [vmem:[%s5456 + $0xc] sm:$0xf]
    %v5461 = vld [vmem:[%s5456 + $0x10] sm:$0xf]
    %v5462 = vld [vmem:[%s5456 + $0x14] sm:$0xf]
    %v5463 = vld [vmem:[%s5456 + $0x18] sm:$0xf]
    %v5464 = vld [vmem:[%s5456 + $0x1c] sm:$0xf]
    %v5465 = vld [vmem:[%s5456 + $0x20] sm:$0xf]
    %v5466 = vld [vmem:[%s5456 + $0x24] sm:$0xf]
    %v5467 = vld [vmem:[%s5456 + $0x28] sm:$0xf]
    %v5468 = vld [vmem:[%s5456 + $0x2c] sm:$0xf]
    %v5469 = vld [vmem:[%s5456 + $0x30] sm:$0xf]
    %v5470 = vld [vmem:[%s5456 + $0x34] sm:$0xf]
    %v5471 = vld [vmem:[%s5456 + $0x38] sm:$0xf]
    %v5472 = vld [vmem:[%s5456 + $0x3c] sm:$0xf]
    %v5473 = vld [vmem:[%s5456 + $0x40] sm:$0xf]
    %v5474 = vld [vmem:[%s5456 + $0x44] sm:$0xf]
    %v5475 = vld [vmem:[%s5456 + $0x48] sm:$0xf]
    %v5476 = vld [vmem:[%s5456 + $0x4c] sm:$0xf]
    %v5477 = vld [vmem:[%s5456 + $0x50] sm:$0xf]
    %v5478 = vld [vmem:[%s5456 + $0x54] sm:$0xf]
    %v5479 = vld [vmem:[%s5456 + $0x58] sm:$0xf]
    %v5480 = vld [vmem:[%s5456 + $0x5c] sm:$0xf]
    %v5481 = vld [vmem:[%s5456 + $0x60] sm:$0xf]
    %v5482 = vld [vmem:[%s5456 + $0x64] sm:$0xf]
    %v5483 = vld [vmem:[%s5456 + $0x68] sm:$0xf]
    %v5484 = vld [vmem:[%s5456 + $0x6c] sm:$0xf]
    %v5485 = vld [vmem:[%s5456 + $0x70] sm:$0xf]
    %v5486 = vld [vmem:[%s5456 + $0x74] sm:$0xf]
    %v5487 = vld [vmem:[%s5456 + $0x78] sm:$0xf]
    %v5488 = vld [vmem:[%s5456 + $0x7c] sm:$0xf]
    %v5489 = vld [vmem:[%s5456 + $0x80] sm:$0xf]
    %v5490 = vld [vmem:[%s5456 + $0x84] sm:$0xf]
    %v5491 = vld [vmem:[%s5456 + $0x88] sm:$0xf]
    %v5492 = vld [vmem:[%s5456 + $0x8c] sm:$0xf]
    %v5493 = vld [vmem:[%s5456 + $0x90] sm:$0xf]
    %v5494 = vld [vmem:[%s5456 + $0x94] sm:$0xf]
    %v5495 = vld [vmem:[%s5456 + $0x98] sm:$0xf]
    %v5496 = vld [vmem:[%s5456 + $0x9c] sm:$0xf]
    %v5497 = vld [vmem:[%s5456 + $0xa0] sm:$0xf]
    %v5498 = vld [vmem:[%s5456 + $0xa4] sm:$0xf]
    %v5499 = vld [vmem:[%s5456 + $0xa8] sm:$0xf]
    %v5500 = vld [vmem:[%s5456 + $0xac] sm:$0xf]
    %v5501 = vld [vmem:[%s5456 + $0xb0] sm:$0xf]
    %v5502 = vld [vmem:[%s5456 + $0xb4] sm:$0xf]
    %v5503 = vld [vmem:[%s5456 + $0xb8] sm:$0xf]
    %v5504 = vld [vmem:[%s5456 + $0xbc] sm:$0xf]
    %v5505 = vld [vmem:[%s5456 + $0xc0] sm:$0xf]
    %v5506 = vld [vmem:[%s5456 + $0xc4] sm:$0xf]
    %v5507 = vld [vmem:[%s5456 + $0xc8] sm:$0xf]
    %v5508 = vld [vmem:[%s5456 + $0xcc] sm:$0xf]
    %v5509 = vld [vmem:[%s5456 + $0xd0] sm:$0xf]
    %v5510 = vld [vmem:[%s5456 + $0xd4] sm:$0xf]
    %v5511 = vld [vmem:[%s5456 + $0xd8] sm:$0xf]
    %v5512 = vld [vmem:[%s5456 + $0xdc] sm:$0xf]
    %v5513 = vld [vmem:[%s5456 + $0xe0] sm:$0xf]
    %v5514 = vld [vmem:[%s5456 + $0xe4] sm:$0xf]
    %v5515 = vld [vmem:[%s5456 + $0xe8] sm:$0xf]
    %v5516 = vld [vmem:[%s5456 + $0xec] sm:$0xf]
    %v5517 = vld [vmem:[%s5456 + $0xf0] sm:$0xf]
    %v5518 = vld [vmem:[%s5456 + $0xf4] sm:$0xf]
    %v5519 = vld [vmem:[%s5456 + $0xf8] sm:$0xf]
    %v5520 = vld [vmem:[%s5456 + $0xfc] sm:$0xf]
    %v5585 = vunpack.c.l.b16 %v5457
    %v5586 = vunpack.c.l.b16 %v5458
    %v5587 = vunpack.c.l.b16 %v5459
    %v5588 = vunpack.c.l.b16 %v5460
    %v5589 = vunpack.c.l.b16 %v5461
    %v5590 = vunpack.c.l.b16 %v5462
    %v5591 = vunpack.c.l.b16 %v5463
    %v5592 = vunpack.c.l.b16 %v5464
    %v5593 = vunpack.c.l.b16 %v5465
    %v5594 = vunpack.c.l.b16 %v5466
    %v5595 = vunpack.c.l.b16 %v5467
    %v5596 = vunpack.c.l.b16 %v5468
    %v5597 = vunpack.c.l.b16 %v5469
    %v5598 = vunpack.c.l.b16 %v5470
    %v5599 = vunpack.c.l.b16 %v5471
    %v5600 = vunpack.c.l.b16 %v5472
    %v5601 = vunpack.c.l.b16 %v5473
    %v5602 = vunpack.c.l.b16 %v5474
    %v5603 = vunpack.c.l.b16 %v5475
    %v5604 = vunpack.c.l.b16 %v5476
    %v5605 = vunpack.c.l.b16 %v5477
    %v5606 = vunpack.c.l.b16 %v5478
    %v5607 = vunpack.c.l.b16 %v5479
    %v5608 = vunpack.c.l.b16 %v5480
    %v5609 = vunpack.c.l.b16 %v5481
    %v5610 = vunpack.c.l.b16 %v5482
    %v5611 = vunpack.c.l.b16 %v5483
    %v5612 = vunpack.c.l.b16 %v5484
    %v5613 = vunpack.c.l.b16 %v5485
    %v5614 = vunpack.c.l.b16 %v5486
    %v5615 = vunpack.c.l.b16 %v5487
    %v5616 = vunpack.c.l.b16 %v5488
    %v5617 = vunpack.c.l.b16 %v5489
    %v5618 = vunpack.c.l.b16 %v5490
    %v5619 = vunpack.c.l.b16 %v5491
    %v5620 = vunpack.c.l.b16 %v5492
    %v5621 = vunpack.c.l.b16 %v5493
    %v5622 = vunpack.c.l.b16 %v5494
    %v5623 = vunpack.c.l.b16 %v5495
    %v5624 = vunpack.c.l.b16 %v5496
    %v5625 = vunpack.c.l.b16 %v5497
    %v5626 = vunpack.c.l.b16 %v5498
    %v5627 = vunpack.c.l.b16 %v5499
    %v5628 = vunpack.c.l.b16 %v5500
    %v5629 = vunpack.c.l.b16 %v5501
    %v5630 = vunpack.c.l.b16 %v5502
    %v5631 = vunpack.c.l.b16 %v5503
    %v5632 = vunpack.c.l.b16 %v5504
    %v5633 = vunpack.c.l.b16 %v5505
    %v5634 = vunpack.c.l.b16 %v5506
    %v5635 = vunpack.c.l.b16 %v5507
    %v5636 = vunpack.c.l.b16 %v5508
    %v5637 = vunpack.c.l.b16 %v5509
    %v5638 = vunpack.c.l.b16 %v5510
    %v5639 = vunpack.c.l.b16 %v5511
    %v5640 = vunpack.c.l.b16 %v5512
    %v5641 = vunpack.c.l.b16 %v5513
    %v5642 = vunpack.c.l.b16 %v5514
    %v5643 = vunpack.c.l.b16 %v5515
    %v5644 = vunpack.c.l.b16 %v5516
    %v5645 = vunpack.c.l.b16 %v5517
    %v5646 = vunpack.c.l.b16 %v5518
    %v5647 = vunpack.c.l.b16 %v5519
    %v5648 = vunpack.c.l.b16 %v5520
    %v5649 = vpack.c.b16 %v5586, %v5585
    %v5650 = vpack.c.b16 %v5588, %v5587
    %v5651 = vpack.c.b16 %v5590, %v5589
    %v5652 = vpack.c.b16 %v5592, %v5591
    %v5653 = vpack.c.b16 %v5594, %v5593
    %v5654 = vpack.c.b16 %v5596, %v5595
    %v5655 = vpack.c.b16 %v5598, %v5597
    %v5656 = vpack.c.b16 %v5600, %v5599
    %v5657 = vpack.c.b16 %v5602, %v5601
    %v5658 = vpack.c.b16 %v5604, %v5603
    %v5659 = vpack.c.b16 %v5606, %v5605
    %v5660 = vpack.c.b16 %v5608, %v5607
    %v5661 = vpack.c.b16 %v5610, %v5609
    %v5662 = vpack.c.b16 %v5612, %v5611
    %v5663 = vpack.c.b16 %v5614, %v5613
    %v5664 = vpack.c.b16 %v5616, %v5615
    %v5665 = vpack.c.b16 %v5618, %v5617
    %v5666 = vpack.c.b16 %v5620, %v5619
    %v5667 = vpack.c.b16 %v5622, %v5621
    %v5668 = vpack.c.b16 %v5624, %v5623
    %v5669 = vpack.c.b16 %v5626, %v5625
    %v5670 = vpack.c.b16 %v5628, %v5627
    %v5671 = vpack.c.b16 %v5630, %v5629
    %v5672 = vpack.c.b16 %v5632, %v5631
    %v5673 = vpack.c.b16 %v5634, %v5633
    %v5674 = vpack.c.b16 %v5636, %v5635
    %v5675 = vpack.c.b16 %v5638, %v5637
    %v5676 = vpack.c.b16 %v5640, %v5639
    %v5677 = vpack.c.b16 %v5642, %v5641
    %v5678 = vpack.c.b16 %v5644, %v5643
    %v5679 = vpack.c.b16 %v5646, %v5645
    %v5680 = vpack.c.b16 %v5648, %v5647
    %5713 = vmatprep.subr.bf16.mxu0 0
    %5714 = vmatpush1.bf16.msra.mxu0 %v5656
    %5715 = vmatprep.subr.bf16.mxu0 0
    %5716 = vmatpush1.bf16.msra.mxu0 %v5655
    %5717 = vmatprep.subr.bf16.mxu0 0
    %5718 = vmatpush1.bf16.msra.mxu0 %v5654
    %5719 = vmatprep.subr.bf16.mxu0 0
    %5720 = vmatpush1.bf16.msra.mxu0 %v5653
    %5721 = vmatprep.subr.bf16.mxu0 0
    %5722 = vmatpush1.bf16.msra.mxu0 %v5652
    %5723 = vmatprep.subr.bf16.mxu0 0
    %5724 = vmatpush1.bf16.msra.mxu0 %v5651
    %5725 = vmatprep.subr.bf16.mxu0 0
    %5726 = vmatpush1.bf16.msra.mxu0 %v5650
    %5727 = vmatprep.subr.bf16.mxu0 0
    %5728 = vmatpush1.bf16.msra.mxu0 %v5649
    %5729 = vmatprep.subr.bf16.mxu0 0
    %5730 = vmatpush2.bf16.msra.mxu0 %v5664
    %5731 = vmatprep.subr.bf16.mxu0 0
    %5732 = vmatpush2.bf16.msra.mxu0 %v5663
    %5733 = vmatprep.subr.bf16.mxu0 0
    %5734 = vmatpush2.bf16.msra.mxu0 %v5662
    %5735 = vmatprep.subr.bf16.mxu0 0
    %5736 = vmatpush2.bf16.msra.mxu0 %v5661
    %5737 = vmatprep.subr.bf16.mxu0 0
    %5738 = vmatpush2.bf16.msra.mxu0 %v5660
    %5739 = vmatprep.subr.bf16.mxu0 0
    %5740 = vmatpush2.bf16.msra.mxu0 %v5659
    %5741 = vmatprep.subr.bf16.mxu0 0
    %5742 = vmatpush2.bf16.msra.mxu0 %v5658
    %5743 = vmatprep.subr.bf16.mxu0 0
    %5744 = vmatpush2.bf16.msra.mxu0 %v5657
    %5745 = vmatprep.mubr.bf16.mxu0 %v3742
    %5746 = vmatmul.mubr.bf16.gmra.mxu0 %v3741
    %v5747 = vpop.f32.mrf.mxu0
    %v5748 = vadd.f32 0.0, %v5747
    %v5749 = vpop.f32.mrf.mxu0
    %v5750 = vpop.f32.mrf.mxu0
    %v5751 = vadd.f32 0.0, %v5750
    %v5752 = vpop.f32.mrf.mxu0
    %5753 = vdwg.mxu0
    %5754 = vmatprep.subr.bf16.mxu0 0
    %5755 = vmatpush1.bf16.msra.mxu0 %v5672
    %5756 = vmatprep.subr.bf16.mxu0 0
    %5757 = vmatpush1.bf16.msra.mxu0 %v5671
    %5758 = vmatprep.subr.bf16.mxu0 0
    %5759 = vmatpush1.bf16.msra.mxu0 %v5670
    %5760 = vmatprep.subr.bf16.mxu0 0
    %5761 = vmatpush1.bf16.msra.mxu0 %v5669
    %5762 = vmatprep.subr.bf16.mxu0 0
    %5763 = vmatpush1.bf16.msra.mxu0 %v5668
    %5764 = vmatprep.subr.bf16.mxu0 0
    %5765 = vmatpush1.bf16.msra.mxu0 %v5667
    %5766 = vmatprep.subr.bf16.mxu0 0
    %5767 = vmatpush1.bf16.msra.mxu0 %v5666
    %5768 = vmatprep.subr.bf16.mxu0 0
    %5769 = vmatpush1.bf16.msra.mxu0 %v5665
    %5770 = vmatprep.subr.bf16.mxu0 0
    %5771 = vmatpush2.bf16.msra.mxu0 %v5680
    %5772 = vmatprep.subr.bf16.mxu0 0
    %5773 = vmatpush2.bf16.msra.mxu0 %v5679
    %5774 = vmatprep.subr.bf16.mxu0 0
    %5775 = vmatpush2.bf16.msra.mxu0 %v5678
    %5776 = vmatprep.subr.bf16.mxu0 0
    %5777 = vmatpush2.bf16.msra.mxu0 %v5677
    %5778 = vmatprep.subr.bf16.mxu0 0
    %5779 = vmatpush2.bf16.msra.mxu0 %v5676
    %5780 = vmatprep.subr.bf16.mxu0 0
    %5781 = vmatpush2.bf16.msra.mxu0 %v5675
    %5782 = vmatprep.subr.bf16.mxu0 0
    %5783 = vmatpush2.bf16.msra.mxu0 %v5674
    %5784 = vmatprep.subr.bf16.mxu0 0
    %5785 = vmatpush2.bf16.msra.mxu0 %v5673
    %5786 = vmatprep.mubr.bf16.mxu0 %v3744
    %5787 = vmatmul.mubr.bf16.gmra.mxu0 %v3743
    %v5788 = vpop.f32.mrf.mxu0
    %v5789 = vadd.f32 %v5748, %v5788
    %v5790 = vpop.f32.mrf.mxu0
    %v5791 = vpop.f32.mrf.mxu0
    %v5792 = vadd.f32 %v5751, %v5791
    %v5793 = vpop.f32.mrf.mxu0
    %5794 = vdwg.mxu0
    %v5795 = vadd.f32 %v5454, %v5789
    %v5796 = vadd.f32 %v5455, %v5792
    %v5797 = vmax.f32 %v5795, 0.0
    %v5798 = vmax.f32 %v5796, 0.0
    %v5799 = vpack.c.bf16 %v5798, %v5797
    %v5800 = vld [vmem:[#allocation14] sm:$0xf]
    %v5801 = vld [vmem:[#allocation14 + $0x4] sm:$0xf]
    %v5802 = vld [vmem:[#allocation14 + $0x8] sm:$0xf]
    %v5803 = vld [vmem:[#allocation14 + $0xc] sm:$0xf]
    %v5804 = vld [vmem:[#allocation14 + $0x10] sm:$0xf]
    %v5805 = vld [vmem:[#allocation14 + $0x14] sm:$0xf]
    %v5806 = vld [vmem:[#allocation14 + $0x18] sm:$0xf]
    %v5807 = vld [vmem:[#allocation14 + $0x1c] sm:$0xf]
    %v5808 = vld [vmem:[#allocation14 + $0x20] sm:$0xf]
    %v5809 = vld [vmem:[#allocation14 + $0x24] sm:$0xf]
    %v5810 = vld [vmem:[#allocation14 + $0x28] sm:$0xf]
    %v5811 = vld [vmem:[#allocation14 + $0x2c] sm:$0xf]
    %v5812 = vld [vmem:[#allocation14 + $0x30] sm:$0xf]
    %v5813 = vld [vmem:[#allocation14 + $0x34] sm:$0xf]
    %v5814 = vld [vmem:[#allocation14 + $0x38] sm:$0xf]
    %v5815 = vld [vmem:[#allocation14 + $0x3c] sm:$0xf]
    %v5816 = vld [vmem:[%s12] sm:$0x1]
    %v5818 = vlaneseq
    %v5819 = vshrl.u32 %v5818, 7
    %v5820 = vsub.s32 0, %v5819
    %v5821 = vrot.slane %v5816, %v5820
    %v5839 = vunpack.c.l.b16 %v5800
    %v5840 = vunpack.c.l.b16 %v5801
    %v5841 = vunpack.c.l.b16 %v5802
    %v5842 = vunpack.c.l.b16 %v5803
    %v5843 = vunpack.c.l.b16 %v5804
    %v5844 = vunpack.c.l.b16 %v5805
    %v5845 = vunpack.c.l.b16 %v5806
    %v5846 = vunpack.c.l.b16 %v5807
    %v5847 = vunpack.c.l.b16 %v5808
    %v5848 = vunpack.c.l.b16 %v5809
    %v5849 = vunpack.c.l.b16 %v5810
    %v5850 = vunpack.c.l.b16 %v5811
    %v5851 = vunpack.c.l.b16 %v5812
    %v5852 = vunpack.c.l.b16 %v5813
    %v5853 = vunpack.c.l.b16 %v5814
    %v5854 = vunpack.c.l.b16 %v5815
    %v5855 = vpack.c.b16 %v5840, %v5839
    %v5856 = vpack.c.b16 %v5842, %v5841
    %v5857 = vpack.c.b16 %v5844, %v5843
    %v5858 = vpack.c.b16 %v5846, %v5845
    %v5859 = vpack.c.b16 %v5848, %v5847
    %v5860 = vpack.c.b16 %v5850, %v5849
    %v5861 = vpack.c.b16 %v5852, %v5851
    %v5862 = vpack.c.b16 %v5854, %v5853
    %5871 = vmatprep.subr.bf16.mxu0 0
    %5872 = vmatpush1.bf16.msra.mxu0 %v5862
    %5873 = vmatprep.subr.bf16.mxu0 0
    %5874 = vmatpush1.bf16.msra.mxu0 %v5861
    %5875 = vmatprep.subr.bf16.mxu0 0
    %5876 = vmatpush1.bf16.msra.mxu0 %v5860
    %5877 = vmatprep.subr.bf16.mxu0 0
    %5878 = vmatpush1.bf16.msra.mxu0 %v5859
    %5879 = vmatprep.subr.bf16.mxu0 0
    %5880 = vmatpush1.bf16.msra.mxu0 %v5858
    %5881 = vmatprep.subr.bf16.mxu0 0
    %5882 = vmatpush1.bf16.msra.mxu0 %v5857
    %5883 = vmatprep.subr.bf16.mxu0 0
    %5884 = vmatpush1.bf16.msra.mxu0 %v5856
    %5885 = vmatprep.subr.bf16.mxu0 0
    %5886 = vmatpush1.bf16.msra.mxu0 %v5855
    %5887 = vmatprep.subr.bf16.mxu0 0
    %5888 = vmatpush2.bf16.msra.mxu0 0
    %5889 = vmatprep.subr.bf16.mxu0 0
    %5890 = vmatpush2.bf16.msra.mxu0 0
    %5891 = vmatprep.subr.bf16.mxu0 0
    %5892 = vmatpush2.bf16.msra.mxu0 0
    %5893 = vmatprep.subr.bf16.mxu0 0
    %5894 = vmatpush2.bf16.msra.mxu0 0
    %5895 = vmatprep.subr.bf16.mxu0 0
    %5896 = vmatpush2.bf16.msra.mxu0 0
    %5897 = vmatprep.subr.bf16.mxu0 0
    %5898 = vmatpush2.bf16.msra.mxu0 0
    %5899 = vmatprep.subr.bf16.mxu0 0
    %5900 = vmatpush2.bf16.msra.mxu0 0
    %5901 = vmatprep.subr.bf16.mxu0 0
    %5902 = vmatpush2.bf16.msra.mxu0 0
    %5903 = vmatprep.mubr.bf16.mxu0 0
    %5904 = vmatmul.mubr.bf16.gmra.mxu0 %v5799
    %v5905 = vpop.f32.mrf.mxu0
    %v5906 = vadd.f32 %v5821, %v5905
    %v5907 = vpop.f32.mrf.mxu0
    %v5908 = vpop.f32.mrf.mxu0
    %v5909 = vadd.f32 %v5821, %v5908
    %v5910 = vpop.f32.mrf.mxu0
    %5911 = vdwg.mxu0
    %5912 = vst [vmem:[#allocation16] sm:$0xff] %v5906
    %5913 = vst [vmem:[#allocation16 + $0x8] sm:$0xff] %v5909
    // Predicated region
    $region86: #{tpu_custom_call.1} parent=1 // pred_check
      _
    $region87: #{tpu_custom_call.1} parent=1 // pred_check_branch
      %5915 = sbr.rel (0) target = $region89
    $region88: #{tpu_custom_call.1} parent=1 // pred_region
      %s5917 = ssub.s32 256, 256
      %5918 = vsyncadd [#allocation4], %s5917
      %s5919 = sshll.u32 [#allocation16], 4
      %s5920 = int_to_ptr.vmem [resolvable:$true] %s5919
      %5925 = dma.vmem_to_hbm [thread:$0]  %s5920, 256, %s13, [#allocation4], 128, 128, 8
    $region89: #{tpu_custom_call.1} parent=1 // pred_fallthru
      _
    // Predicated region
    $region90: #{tpu_custom_call.1} parent=1 // pred_check
      _
    $region91: #{tpu_custom_call.1} parent=1 // pred_check_branch
      %5927 = sbr.rel (0) target = $region93
    $region92: #{tpu_custom_call.1} parent=1 // pred_region
      %5928 = dma.done [#allocation4], 256
    $region93: #{tpu_custom_call.1} parent=1 // pred_fallthru
      _
    %5929 = vsyncpa [#allocation3], 1
    %5930 = vsyncpa [#allocation6], 1
    %5931 = vsyncpa [#allocation9], 1
    %5932 = vsyncpa [#allocation12], 1
    %5933 = vsyncpa [#allocation15], 1
    %5934 = vsyncpa [#allocation4], 1

</llo_original>
